<compile_context>
chip_gen: v7x
topology: tpu7x:2x2x1
jax: 0.10.0
libtpu: 0.0.40
codegen_flags: <defaults>
</compile_context>

<pallas_src>
import functools

import jax
import jax.numpy as jnp
from jax.experimental import pallas as pl
from jax.experimental.pallas import tpu as pltpu


def _round_up(a, b):
    return (a + b - 1) // b * b


# =============================================================================
# Pallas kernels
# =============================================================================
def _conv_shift_mm_kernel(x_ref, w_ref, b_ref, o_ref, *, offsets, win):
    """out[b, :, l0:l0+lt] = sum_taps W_tap @ X[b, :, l0+off : l0+off+lt] + bias.

    x_ref : (1, Cin, Lx)       MXU dtype, per-batch resident (flattened T*F_pad)
    w_ref : (ntaps, Cout, Cin) MXU dtype
    b_ref : (Cout, 1)          f32
    o_ref : (1, Cout, Lt)      f32   -- lane-dense output (Lt = spatial tile)
    """
    cout = o_ref.shape[1]
    lt = o_ref.shape[2]
    l0 = pl.multiple_of(pl.program_id(1) * lt, lt)
    xwin = x_ref[0, :, pl.ds(l0, win)]                       # (Cin, win)
    acc = jnp.zeros((cout, lt), jnp.float32)
    for t, off in enumerate(offsets):                        # unrolled (<= 6 taps)
        xs = jax.lax.slice_in_dim(xwin, off, off + lt, axis=1)
        acc = acc + jnp.dot(w_ref[t], xs, preferred_element_type=jnp.float32)
    o_ref[0] = acc + b_ref[...]


def conv2d(x, w, b, *, dil_t=1, pad_t=(0, 0), pad_f=(0, 0),
           mxu_dtype=jnp.bfloat16, lane_tile=512):
    """torch.nn.Conv2d (stride 1, dilation (dil_t, 1)) on NCHW with explicit
    zero padding (ConstantPad2d semantics), via the shift+matmul kernel."""
    B, Cin, T, F = x.shape
    Cout, _, kh, kw = w.shape
    xp = jnp.pad(x, ((0, 0), (0, 0), pad_t, pad_f))
    Tp, Fp = xp.shape[2], xp.shape[3]
    T_out = Tp - dil_t * (kh - 1)
    F_out = Fp - (kw - 1)
    # Output rows keep the padded-F stride Fp so every conv tap (i, j) is a
    # single constant offset  i*dil_t*Fp + j  on the flattened spatial axis.
    L_out = T_out * Fp
    offsets = tuple(i * dil_t * Fp + j for i in range(kh) for j in range(kw))
    max_off = offsets[-1]

    lt = min(lane_tile, _round_up(L_out, 128))
    Lo_pad = _round_up(L_out, lt)
    n_lt = Lo_pad // lt
    win = lt + max_off
    Lx = _round_up(Lo_pad + max_off, 128)

    xf = xp.reshape(B, Cin, Tp * Fp)
    xf = jnp.pad(xf, ((0, 0), (0, 0), (0, Lx - Tp * Fp))).astype(mxu_dtype)
    wt = w.reshape(Cout, Cin, kh * kw).transpose(2, 0, 1).astype(mxu_dtype)
    b2 = b.reshape(Cout, 1).astype(jnp.float32)

    kernel = functools.partial(_conv_shift_mm_kernel, offsets=offsets, win=win)
    cost = pl.CostEstimate(
        flops=int(2 * B * n_lt * lt * Cout * Cin * len(offsets)),
        transcendentals=0,
        bytes_accessed=int(xf.size * xf.dtype.itemsize
                           + B * Cout * Lo_pad * 4
                           + wt.size * wt.dtype.itemsize))

    out = pl.pallas_call(
        kernel,
        out_shape=jax.ShapeDtypeStruct((B, Cout, Lo_pad), jnp.float32),
        grid=(B, n_lt),
        in_specs=[
            pl.BlockSpec((1, Cin, Lx), lambda bb, ll: (bb, 0, 0)),
            pl.BlockSpec((kh * kw, Cout, Cin), lambda bb, ll: (0, 0, 0)),
            pl.BlockSpec((Cout, 1), lambda bb, ll: (0, 0)),
        ],
        out_specs=pl.BlockSpec((1, Cout, lt), lambda bb, ll: (bb, 0, ll)),
        compiler_params=pltpu.CompilerParams(
            dimension_semantics=("parallel", "parallel")),
        cost_estimate=cost,
    )(xf, wt, b2)

    out = out[:, :, :L_out].reshape(B, Cout, T_out, Fp)[:, :, :, :F_out]
    return out


def _in_prelu_kernel(x_ref, g_ref, b_ref, a_ref, o_ref):
    # rows = (batch*channel), cols = T*F.  InstanceNorm2d (biased var, eps=1e-5,
    # affine) fused with per-channel PReLU.  f32 element-wise math.
    x = x_ref[...]
    mean = jnp.mean(x, axis=1, keepdims=True)
    var = jnp.mean(jnp.square(x - mean), axis=1, keepdims=True)
    y = (x - mean) * jax.lax.rsqrt(var + 1e-5) * g_ref[...] + b_ref[...]
    o_ref[...] = jnp.where(y > 0, y, a_ref[...] * y)


def instnorm_prelu(x, gamma, beta, alpha):
    B, C, H, W = x.shape
    rows, cols = B * C, H * W
    xr = x.reshape(rows, cols)
    g = jnp.tile(gamma, B).reshape(rows, 1)
    bt = jnp.tile(beta, B).reshape(rows, 1)
    al = jnp.tile(alpha, B).reshape(rows, 1)
    R = 8 if rows % 8 == 0 else rows
    row_spec = pl.BlockSpec((R, cols), lambda i: (i, 0))
    par_spec = pl.BlockSpec((R, 1), lambda i: (i, 0))
    out = pl.pallas_call(
        _in_prelu_kernel,
        out_shape=jax.ShapeDtypeStruct((rows, cols), jnp.float32),
        grid=(rows // R,),
        in_specs=[row_spec, par_spec, par_spec, par_spec],
        out_specs=row_spec,
        compiler_params=pltpu.CompilerParams(dimension_semantics=("parallel",)),
    )(xr, g, bt, al)
    return out.reshape(B, C, H, W)


# =============================================================================
# PhaseDecoder forward (host glue = pads / concats / sub-pixel shuffle only)
# =============================================================================
def dense_block(x, blocks, mxu_dtype):
    skip = x
    y = x
    for i in range(4):
        d = 2 ** i
        p = blocks[i]
        # ConstantPad2d((1, 1, d, 0)) + Conv2d(k=(2, 3), dilation=(d, 1))
        y = conv2d(skip, p['w'], p['b'], dil_t=d, pad_t=(d, 0), pad_f=(1, 1),
                   mxu_dtype=mxu_dtype)
        y = instnorm_prelu(y, p['g'], p['bt'], p['a'])
        skip = jnp.concatenate([y, skip], axis=1)
    return y


def _phase_decoder_impl(x, p, mxu_dtype):
    y = dense_block(x, p['db'], mxu_dtype)

    # SPConvTranspose2d(dc, dc, (1, 3), r=2): pad F by (1,1), conv to 2*dc,
    # then sub-pixel shuffle along F.
    y = conv2d(y, p['sp_w'], p['sp_b'], pad_f=(1, 1), mxu_dtype=mxu_dtype)
    B, rc, T, F = y.shape
    r = 2
    co = rc // r
    y = y.reshape(B, r, co, T, F).transpose(0, 2, 3, 4, 1).reshape(B, co, T, F * r)
    y = instnorm_prelu(y, p['g'], p['bt'], p['a'])

    # phase_conv_r + phase_conv_i fused into a single Cout=2 conv (shared input).
    w_ri = jnp.concatenate([p['r_w'], p['i_w']], axis=0)
    b_ri = jnp.concatenate([p['r_b'], p['i_b']], axis=0)
    ri = conv2d(y, w_ri, b_ri, mxu_dtype=mxu_dtype)          # (B, 2, T, F')

    # TODO(synk): atan2 kept in plain JAX glue (Mosaic transcendental lowering
    # for atan2 is not guaranteed); it is a tiny (B, T, F') elementwise op.
    pha = jnp.arctan2(ri[:, 1], ri[:, 0])                    # (B, T, F')
    return pha.transpose(0, 2, 1), ri                        # (B, F', T)


def phase_decoder(x, p, mxu_dtype=jnp.bfloat16):
    return _phase_decoder_impl(x, p, mxu_dtype)[0]


# =============================================================================
# Pure-JAX float32 reference (PyTorch PhaseDecoder semantics) for validation
# =============================================================================
def _ref_phase_decoder(x, p):
    def conv(z, w, b, dil=(1, 1), pad=((0, 0), (0, 0))):
        y = jax.lax.conv_general_dilated(
            z, w, window_strides=(1, 1), padding=pad, rhs_dilation=dil,
            dimension_numbers=('NCHW', 'OIHW', 'NCHW'))
        return y + b.reshape(1, -1, 1, 1)

    def in_prelu(z, g, bt, a):
        m = z.mean(axis=(2, 3), keepdims=True)
        v = ((z - m) ** 2).mean(axis=(2, 3), keepdims=True)
        y = ((z - m) * jax.lax.rsqrt(v + 1e-5) * g.reshape(1, -1, 1, 1)
             + bt.reshape(1, -1, 1, 1))
        return jnp.where(y > 0, y, a.reshape(1, -1, 1, 1) * y)

    skip = x
    y = x
    for i in range(4):
        d = 2 ** i
        blk = p['db'][i]
        y = conv(skip, blk['w'], blk['b'], dil=(d, 1), pad=((d, 0), (1, 1)))
        y = in_prelu(y, blk['g'], blk['bt'], blk['a'])
        skip = jnp.concatenate([y, skip], axis=1)
    y = conv(y, p['sp_w'], p['sp_b'], pad=((0, 0), (1, 1)))
    B, rc, T, F = y.shape
    y = y.reshape(B, 2, rc // 2, T, F).transpose(0, 2, 3, 4, 1).reshape(
        B, rc // 2, T, F * 2)
    y = in_prelu(y, p['g'], p['bt'], p['a'])
    xr = conv(y, p['r_w'], p['r_b'])
    xi = conv(y, p['i_w'], p['i_b'])
    ri = jnp.concatenate([xr, xi], axis=1)
    pha = jnp.arctan2(xi[:, 0], xr[:, 0]).transpose(0, 2, 1)
    return pha, ri


# =============================================================================
# Deterministic synthetic parameters
# =============================================================================
class _KeyGen:
    def __init__(self, seed):
        self._key = jax.random.PRNGKey(seed)

    def __call__(self):
        self._key, k = jax.random.split(self._key)
        return k


def _w(kg, shape, scale=0.1):
    return scale * jax.random.normal(kg(), shape, dtype=jnp.float32)


def init_params(seed, dc):
    kg = _KeyGen(seed)
    db = []
    for i in range(4):
        db.append(dict(
            w=_w(kg, (dc, dc * (i + 1), 2, 3)), b=_w(kg, (dc,)),
            g=jnp.ones((dc,), jnp.float32), bt=jnp.zeros((dc,), jnp.float32),
            a=jnp.full((dc,), 0.25, jnp.float32)))
    return dict(
        db=db,
        sp_w=_w(kg, (2 * dc, dc, 1, 3)), sp_b=_w(kg, (2 * dc,)),
        g=jnp.ones((dc,), jnp.float32), bt=jnp.zeros((dc,), jnp.float32),
        a=jnp.full((dc,), 0.25, jnp.float32),
        r_w=_w(kg, (1, dc, 1, 2)), r_b=_w(kg, (1,)),
        i_w=_w(kg, (1, dc, 1, 2)), i_b=_w(kg, (1,)))


# =============================================================================
if __name__ == "__main__":
    B, DC, T, F_IN = 2, 16, 8, 9          # (batch, h.dense_channel, time, freq)
    params = init_params(0, DC)
    x = jax.random.normal(jax.random.PRNGKey(0), (B, DC, T, F_IN),
                          dtype=jnp.float32)

    # 1) Correctness: Pallas path with f32 MXU inputs vs pure-JAX reference.
    pha32, ri32 = jax.jit(
        functools.partial(_phase_decoder_impl, mxu_dtype=jnp.float32))(x, params)
    pha_ref, ri_ref = jax.jit(_ref_phase_decoder)(x, params)
    jax.block_until_ready((pha32, ri32, pha_ref, ri_ref))
    assert bool(jnp.allclose(ri32, ri_ref, atol=1e-3, rtol=1e-3)), \
        float(jnp.max(jnp.abs(ri32 - ri_ref)))
    dpha = jnp.abs(jnp.arctan2(jnp.sin(pha32 - pha_ref),
                               jnp.cos(pha32 - pha_ref)))   # wrap-safe angle diff
    assert bool(jnp.max(dpha) < 5e-2), float(jnp.max(dpha))

    # 2) Production path: bf16 MXU inputs (f32 accumulation & element-wise math).
    fwd = jax.jit(phase_decoder)
    pha = fwd(x, params)
    jax.block_until_ready(pha)
    assert pha.shape == (B, 2 * F_IN - 1, T)
    assert bool(jnp.all(jnp.isfinite(pha)))
    print("KERNEL_OK")
</pallas_src>

<mosaic_0001>
module attributes {stable_mosaic.version = 11 : i64} {
  func.func @_conv_shift_mm_kernel(%arg0: i32, %arg1: i32, %arg2: memref<1x16x256xf32, #tpu.memory_space<vmem>>, %arg3: memref<6x16x16xf32, #tpu.memory_space<vmem>>, %arg4: memref<16x1xf32, #tpu.memory_space<vmem>>, %arg5: memref<1x16x128xf32, #tpu.memory_space<vmem>>) attributes {dimension_semantics = [#tpu.dimension_semantics<parallel>, #tpu.dimension_semantics<parallel>], iteration_bounds = array<i64: 2, 1>, scalar_prefetch = 0 : i64, scratch_operands = 0 : i64, tpu.core_type = #tpu.core_type<tc>, window_params = [{transform_indices = @transform_0, window_bounds = array<i64: 1, 16, 256>}, {pipeline_mode = #tpu.pipeline_mode<synchronous>, transform_indices = @transform_1, window_bounds = array<i64: 6, 16, 16>}, {pipeline_mode = #tpu.pipeline_mode<synchronous>, transform_indices = @transform_2, window_bounds = array<i64: 16, 1>}, {transform_indices = @transform_3, window_bounds = array<i64: 1, 16, 128>}]} {
    %c128_i32 = arith.constant 128 : i32
    %0 = arith.muli %arg1, %c128_i32 : i32
    %1 = tpu.assume_multiple %0, 128 : i32
    %c0 = arith.constant 0 : index
    %c0_0 = arith.constant 0 : index
    %2 = arith.index_cast %1 : i32 to index
    %3 = vector.load %arg2[%c0, %c0_0, %2] : memref<1x16x256xf32, #tpu.memory_space<vmem>>, vector<1x16x141xf32>
    %4 = vector.shape_cast %3 : vector<1x16x141xf32> to vector<16x141xf32>
    %cst = arith.constant 0.000000e+00 : f32
    %5 = vector.broadcast %cst : f32 to vector<16x128xf32>
    %6 = vector.extract_strided_slice %4 {offsets = [0, 0], sizes = [16, 128], strides = [1, 1]} : vector<16x141xf32> to vector<16x128xf32>
    %c0_1 = arith.constant 0 : index
    %c0_2 = arith.constant 0 : index
    %c0_3 = arith.constant 0 : index
    %7 = vector.load %arg3[%c0_1, %c0_2, %c0_3] : memref<6x16x16xf32, #tpu.memory_space<vmem>>, vector<1x16x16xf32>
    %8 = vector.shape_cast %7 : vector<1x16x16xf32> to vector<16x16xf32>
    %cst_4 = arith.constant dense<0.000000e+00> : vector<16x128xf32>
    %9 = tpu.matmul %8, %6, %cst_4 {dimension_numbers = #tpu.dot_dimension_numbers<[1], [0], [0], [1], [0, 0, 1, 1], [], []>} : vector<16x16xf32>, vector<16x128xf32>, vector<16x128xf32> -> vector<16x128xf32>
    %10 = arith.addf %5, %9 : vector<16x128xf32>
    %11 = vector.extract_strided_slice %4 {offsets = [0, 1], sizes = [16, 128], strides = [1, 1]} : vector<16x141xf32> to vector<16x128xf32>
    %c1 = arith.constant 1 : index
    %c0_5 = arith.constant 0 : index
    %c0_6 = arith.constant 0 : index
    %12 = vector.load %arg3[%c1, %c0_5, %c0_6] : memref<6x16x16xf32, #tpu.memory_space<vmem>>, vector<1x16x16xf32>
    %13 = vector.shape_cast %12 : vector<1x16x16xf32> to vector<16x16xf32>
    %cst_7 = arith.constant dense<0.000000e+00> : vector<16x128xf32>
    %14 = tpu.matmul %13, %11, %cst_7 {dimension_numbers = #tpu.dot_dimension_numbers<[1], [0], [0], [1], [0, 0, 1, 1], [], []>} : vector<16x16xf32>, vector<16x128xf32>, vector<16x128xf32> -> vector<16x128xf32>
    %15 = arith.addf %10, %14 : vector<16x128xf32>
    %16 = vector.extract_strided_slice %4 {offsets = [0, 2], sizes = [16, 128], strides = [1, 1]} : vector<16x141xf32> to vector<16x128xf32>
    %c2 = arith.constant 2 : index
    %c0_8 = arith.constant 0 : index
    %c0_9 = arith.constant 0 : index
    %17 = vector.load %arg3[%c2, %c0_8, %c0_9] : memref<6x16x16xf32, #tpu.memory_space<vmem>>, vector<1x16x16xf32>
    %18 = vector.shape_cast %17 : vector<1x16x16xf32> to vector<16x16xf32>
    %cst_10 = arith.constant dense<0.000000e+00> : vector<16x128xf32>
    %19 = tpu.matmul %18, %16, %cst_10 {dimension_numbers = #tpu.dot_dimension_numbers<[1], [0], [0], [1], [0, 0, 1, 1], [], []>} : vector<16x16xf32>, vector<16x128xf32>, vector<16x128xf32> -> vector<16x128xf32>
    %20 = arith.addf %15, %19 : vector<16x128xf32>
    %21 = vector.extract_strided_slice %4 {offsets = [0, 11], sizes = [16, 128], strides = [1, 1]} : vector<16x141xf32> to vector<16x128xf32>
    %c3 = arith.constant 3 : index
    %c0_11 = arith.constant 0 : index
    %c0_12 = arith.constant 0 : index
    %22 = vector.load %arg3[%c3, %c0_11, %c0_12] : memref<6x16x16xf32, #tpu.memory_space<vmem>>, vector<1x16x16xf32>
    %23 = vector.shape_cast %22 : vector<1x16x16xf32> to vector<16x16xf32>
    %cst_13 = arith.constant dense<0.000000e+00> : vector<16x128xf32>
    %24 = tpu.matmul %23, %21, %cst_13 {dimension_numbers = #tpu.dot_dimension_numbers<[1], [0], [0], [1], [0, 0, 1, 1], [], []>} : vector<16x16xf32>, vector<16x128xf32>, vector<16x128xf32> -> vector<16x128xf32>
    %25 = arith.addf %20, %24 : vector<16x128xf32>
    %26 = vector.extract_strided_slice %4 {offsets = [0, 12], sizes = [16, 128], strides = [1, 1]} : vector<16x141xf32> to vector<16x128xf32>
    %c4 = arith.constant 4 : index
    %c0_14 = arith.constant 0 : index
    %c0_15 = arith.constant 0 : index
    %27 = vector.load %arg3[%c4, %c0_14, %c0_15] : memref<6x16x16xf32, #tpu.memory_space<vmem>>, vector<1x16x16xf32>
    %28 = vector.shape_cast %27 : vector<1x16x16xf32> to vector<16x16xf32>
    %cst_16 = arith.constant dense<0.000000e+00> : vector<16x128xf32>
    %29 = tpu.matmul %28, %26, %cst_16 {dimension_numbers = #tpu.dot_dimension_numbers<[1], [0], [0], [1], [0, 0, 1, 1], [], []>} : vector<16x16xf32>, vector<16x128xf32>, vector<16x128xf32> -> vector<16x128xf32>
    %30 = arith.addf %25, %29 : vector<16x128xf32>
    %31 = vector.extract_strided_slice %4 {offsets = [0, 13], sizes = [16, 128], strides = [1, 1]} : vector<16x141xf32> to vector<16x128xf32>
    %c5 = arith.constant 5 : index
    %c0_17 = arith.constant 0 : index
    %c0_18 = arith.constant 0 : index
    %32 = vector.load %arg3[%c5, %c0_17, %c0_18] : memref<6x16x16xf32, #tpu.memory_space<vmem>>, vector<1x16x16xf32>
    %33 = vector.shape_cast %32 : vector<1x16x16xf32> to vector<16x16xf32>
    %cst_19 = arith.constant dense<0.000000e+00> : vector<16x128xf32>
    %34 = tpu.matmul %33, %31, %cst_19 {dimension_numbers = #tpu.dot_dimension_numbers<[1], [0], [0], [1], [0, 0, 1, 1], [], []>} : vector<16x16xf32>, vector<16x128xf32>, vector<16x128xf32> -> vector<16x128xf32>
    %35 = arith.addf %30, %34 : vector<16x128xf32>
    %c0_20 = arith.constant 0 : index
    %c0_21 = arith.constant 0 : index
    %36 = vector.load %arg4[%c0_20, %c0_21] : memref<16x1xf32, #tpu.memory_space<vmem>>, vector<16x1xf32>
    %37 = vector.broadcast %36 : vector<16x1xf32> to vector<16x128xf32>
    %38 = arith.addf %35, %37 : vector<16x128xf32>
    %c0_22 = arith.constant 0 : index
    %c0_23 = arith.constant 0 : index
    %c0_24 = arith.constant 0 : index
    %39 = vector.load %arg5[%c0_22, %c0_23, %c0_24] : memref<1x16x128xf32, #tpu.memory_space<vmem>>, vector<1x16x128xf32>
    %40 = vector.shape_cast %39 : vector<1x16x128xf32> to vector<16x128xf32>
    %41 = vector.shape_cast %38 : vector<16x128xf32> to vector<1x16x128xf32>
    tpu.vector_store %arg5[%c0_22, %c0_23, %c0_24], %41 {strides = array<i32>} : memref<1x16x128xf32, #tpu.memory_space<vmem>>, vector<1x16x128xf32>,
    return
  }
  func.func @transform_0(%arg0: i32, %arg1: i32) -> (i32, i32, i32) {
    %c0_i32 = arith.constant 0 : i32
    %c0_i32_0 = arith.constant 0 : i32
    %c0_i32_1 = arith.constant 0 : i32
    return %arg0, %c0_i32, %c0_i32_0 : i32, i32, i32
  }
  func.func @transform_1(%arg0: i32, %arg1: i32) -> (i32, i32, i32) {
    %c0_i32 = arith.constant 0 : i32
    %c0_i32_0 = arith.constant 0 : i32
    %c0_i32_1 = arith.constant 0 : i32
    %c0_i32_2 = arith.constant 0 : i32
    return %c0_i32, %c0_i32_0, %c0_i32_1 : i32, i32, i32
  }
  func.func @transform_2(%arg0: i32, %arg1: i32) -> (i32, i32) {
    %c0_i32 = arith.constant 0 : i32
    %c0_i32_0 = arith.constant 0 : i32
    %c0_i32_1 = arith.constant 0 : i32
    return %c0_i32, %c0_i32_0 : i32, i32
  }
  func.func @transform_3(%arg0: i32, %arg1: i32) -> (i32, i32, i32) {
    %c0_i32 = arith.constant 0 : i32
    %c0_i32_0 = arith.constant 0 : i32
    return %arg0, %c0_i32, %arg1 : i32, i32, i32
  }
}

module attributes {stable_mosaic.version = 11 : i64} {
  func.func @_in_prelu_kernel(%arg0: i32, %arg1: memref<8x72xf32, #tpu.memory_space<vmem>>, %arg2: memref<8x1xf32, #tpu.memory_space<vmem>>, %arg3: memref<8x1xf32, #tpu.memory_space<vmem>>, %arg4: memref<8x1xf32, #tpu.memory_space<vmem>>, %arg5: memref<8x72xf32, #tpu.memory_space<vmem>>) attributes {dimension_semantics = [#tpu.dimension_semantics<parallel>], iteration_bounds = array<i64: 4>, scalar_prefetch = 0 : i64, scratch_operands = 0 : i64, tpu.core_type = #tpu.core_type<tc>, window_params = [{transform_indices = @transform_0, window_bounds = array<i64: 8, 72>}, {transform_indices = @transform_1, window_bounds = array<i64: 8, 1>}, {transform_indices = @transform_2, window_bounds = array<i64: 8, 1>}, {transform_indices = @transform_3, window_bounds = array<i64: 8, 1>}, {transform_indices = @transform_4, window_bounds = array<i64: 8, 72>}]} {
    %c0 = arith.constant 0 : index
    %c0_0 = arith.constant 0 : index
    %0 = vector.load %arg1[%c0, %c0_0] : memref<8x72xf32, #tpu.memory_space<vmem>>, vector<8x72xf32>
    %cst = arith.constant dense<0.000000e+00> : vector<8xf32>
    %1 = vector.multi_reduction <add>, %0, %cst [1] : vector<8x72xf32> to vector<8xf32>
    %2 = vector.shape_cast %1 : vector<8xf32> to vector<8x1xf32>
    %cst_1 = arith.constant 7.200000e+01 : f32
    %3 = vector.broadcast %cst_1 : f32 to vector<8x1xf32>
    %4 = arith.divf %2, %3 : vector<8x1xf32>
    %5 = vector.broadcast %4 : vector<8x1xf32> to vector<8x72xf32>
    %6 = arith.subf %0, %5 : vector<8x72xf32>
    %7 = arith.mulf %6, %6 : vector<8x72xf32>
    %cst_2 = arith.constant dense<0.000000e+00> : vector<8xf32>
    %8 = vector.multi_reduction <add>, %7, %cst_2 [1] : vector<8x72xf32> to vector<8xf32>
    %9 = vector.shape_cast %8 : vector<8xf32> to vector<8x1xf32>
    %cst_3 = arith.constant 7.200000e+01 : f32
    %10 = vector.broadcast %cst_3 : f32 to vector<8x1xf32>
    %11 = arith.divf %9, %10 : vector<8x1xf32>
    %12 = vector.broadcast %4 : vector<8x1xf32> to vector<8x72xf32>
    %13 = arith.subf %0, %12 : vector<8x72xf32>
    %cst_4 = arith.constant 9.99999974E-6 : f32
    %14 = vector.broadcast %cst_4 : f32 to vector<8x1xf32>
    %15 = arith.addf %11, %14 : vector<8x1xf32>
    %16 = math.rsqrt %15 : vector<8x1xf32>
    %17 = vector.broadcast %16 : vector<8x1xf32> to vector<8x72xf32>
    %18 = arith.mulf %13, %17 : vector<8x72xf32>
    %c0_5 = arith.constant 0 : index
    %c0_6 = arith.constant 0 : index
    %19 = vector.load %arg2[%c0_5, %c0_6] : memref<8x1xf32, #tpu.memory_space<vmem>>, vector<8x1xf32>
    %20 = vector.broadcast %19 : vector<8x1xf32> to vector<8x72xf32>
    %21 = arith.mulf %18, %20 : vector<8x72xf32>
    %c0_7 = arith.constant 0 : index
    %c0_8 = arith.constant 0 : index
    %22 = vector.load %arg3[%c0_7, %c0_8] : memref<8x1xf32, #tpu.memory_space<vmem>>, vector<8x1xf32>
    %23 = vector.broadcast %22 : vector<8x1xf32> to vector<8x72xf32>
    %24 = arith.addf %21, %23 : vector<8x72xf32>
    %cst_9 = arith.constant 0.000000e+00 : f32
    %25 = vector.broadcast %cst_9 : f32 to vector<8x72xf32>
    %26 = arith.cmpf ogt, %24, %25 : vector<8x72xf32>
    %c0_10 = arith.constant 0 : index
    %c0_11 = arith.constant 0 : index
    %27 = vector.load %arg4[%c0_10, %c0_11] : memref<8x1xf32, #tpu.memory_space<vmem>>, vector<8x1xf32>
    %28 = vector.broadcast %27 : vector<8x1xf32> to vector<8x72xf32>
    %29 = arith.mulf %28, %24 : vector<8x72xf32>
    %30 = arith.select %26, %24, %29 : vector<8x72xi1>, vector<8x72xf32>
    %c0_12 = arith.constant 0 : index
    %c0_13 = arith.constant 0 : index
    %31 = vector.load %arg5[%c0_12, %c0_13] : memref<8x72xf32, #tpu.memory_space<vmem>>, vector<8x72xf32>
    tpu.vector_store %arg5[%c0_12, %c0_13], %30 {strides = array<i32>} : memref<8x72xf32, #tpu.memory_space<vmem>>, vector<8x72xf32>,
    return
  }
  func.func @transform_0(%arg0: i32) -> (i32, i32) {
    %c0_i32 = arith.constant 0 : i32
    %c0_i32_0 = arith.constant 0 : i32
    return %arg0, %c0_i32 : i32, i32
  }
  func.func @transform_1(%arg0: i32) -> (i32, i32) {
    %c0_i32 = arith.constant 0 : i32
    %c0_i32_0 = arith.constant 0 : i32
    return %arg0, %c0_i32 : i32, i32
  }
  func.func @transform_2(%arg0: i32) -> (i32, i32) {
    %c0_i32 = arith.constant 0 : i32
    %c0_i32_0 = arith.constant 0 : i32
    return %arg0, %c0_i32 : i32, i32
  }
  func.func @transform_3(%arg0: i32) -> (i32, i32) {
    %c0_i32 = arith.constant 0 : i32
    %c0_i32_0 = arith.constant 0 : i32
    return %arg0, %c0_i32 : i32, i32
  }
  func.func @transform_4(%arg0: i32) -> (i32, i32) {
    %c0_i32 = arith.constant 0 : i32
    %c0_i32_0 = arith.constant 0 : i32
    return %arg0, %c0_i32 : i32, i32
  }
}

module attributes {stable_mosaic.version = 11 : i64} {
  func.func @_conv_shift_mm_kernel(%arg0: i32, %arg1: i32, %arg2: memref<1x32x256xf32, #tpu.memory_space<vmem>>, %arg3: memref<6x16x32xf32, #tpu.memory_space<vmem>>, %arg4: memref<16x1xf32, #tpu.memory_space<vmem>>, %arg5: memref<1x16x128xf32, #tpu.memory_space<vmem>>) attributes {dimension_semantics = [#tpu.dimension_semantics<parallel>, #tpu.dimension_semantics<parallel>], iteration_bounds = array<i64: 2, 1>, scalar_prefetch = 0 : i64, scratch_operands = 0 : i64, tpu.core_type = #tpu.core_type<tc>, window_params = [{transform_indices = @transform_0, window_bounds = array<i64: 1, 32, 256>}, {pipeline_mode = #tpu.pipeline_mode<synchronous>, transform_indices = @transform_1, window_bounds = array<i64: 6, 16, 32>}, {pipeline_mode = #tpu.pipeline_mode<synchronous>, transform_indices = @transform_2, window_bounds = array<i64: 16, 1>}, {transform_indices = @transform_3, window_bounds = array<i64: 1, 16, 128>}]} {
    %c128_i32 = arith.constant 128 : i32
    %0 = arith.muli %arg1, %c128_i32 : i32
    %1 = tpu.assume_multiple %0, 128 : i32
    %c0 = arith.constant 0 : index
    %c0_0 = arith.constant 0 : index
    %2 = arith.index_cast %1 : i32 to index
    %3 = vector.load %arg2[%c0, %c0_0, %2] : memref<1x32x256xf32, #tpu.memory_space<vmem>>, vector<1x32x152xf32>
    %4 = vector.shape_cast %3 : vector<1x32x152xf32> to vector<32x152xf32>
    %cst = arith.constant 0.000000e+00 : f32
    %5 = vector.broadcast %cst : f32 to vector<16x128xf32>
    %6 = vector.extract_strided_slice %4 {offsets = [0, 0], sizes = [32, 128], strides = [1, 1]} : vector<32x152xf32> to vector<32x128xf32>
    %c0_1 = arith.constant 0 : index
    %c0_2 = arith.constant 0 : index
    %c0_3 = arith.constant 0 : index
    %7 = vector.load %arg3[%c0_1, %c0_2, %c0_3] : memref<6x16x32xf32, #tpu.memory_space<vmem>>, vector<1x16x32xf32>
    %8 = vector.shape_cast %7 : vector<1x16x32xf32> to vector<16x32xf32>
    %cst_4 = arith.constant dense<0.000000e+00> : vector<16x128xf32>
    %9 = tpu.matmul %8, %6, %cst_4 {dimension_numbers = #tpu.dot_dimension_numbers<[1], [0], [0], [1], [0, 0, 1, 1], [], []>} : vector<16x32xf32>, vector<32x128xf32>, vector<16x128xf32> -> vector<16x128xf32>
    %10 = arith.addf %5, %9 : vector<16x128xf32>
    %11 = vector.extract_strided_slice %4 {offsets = [0, 1], sizes = [32, 128], strides = [1, 1]} : vector<32x152xf32> to vector<32x128xf32>
    %c1 = arith.constant 1 : index
    %c0_5 = arith.constant 0 : index
    %c0_6 = arith.constant 0 : index
    %12 = vector.load %arg3[%c1, %c0_5, %c0_6] : memref<6x16x32xf32, #tpu.memory_space<vmem>>, vector<1x16x32xf32>
    %13 = vector.shape_cast %12 : vector<1x16x32xf32> to vector<16x32xf32>
    %cst_7 = arith.constant dense<0.000000e+00> : vector<16x128xf32>
    %14 = tpu.matmul %13, %11, %cst_7 {dimension_numbers = #tpu.dot_dimension_numbers<[1], [0], [0], [1], [0, 0, 1, 1], [], []>} : vector<16x32xf32>, vector<32x128xf32>, vector<16x128xf32> -> vector<16x128xf32>
    %15 = arith.addf %10, %14 : vector<16x128xf32>
    %16 = vector.extract_strided_slice %4 {offsets = [0, 2], sizes = [32, 128], strides = [1, 1]} : vector<32x152xf32> to vector<32x128xf32>
    %c2 = arith.constant 2 : index
    %c0_8 = arith.constant 0 : index
    %c0_9 = arith.constant 0 : index
    %17 = vector.load %arg3[%c2, %c0_8, %c0_9] : memref<6x16x32xf32, #tpu.memory_space<vmem>>, vector<1x16x32xf32>
    %18 = vector.shape_cast %17 : vector<1x16x32xf32> to vector<16x32xf32>
    %cst_10 = arith.constant dense<0.000000e+00> : vector<16x128xf32>
    %19 = tpu.matmul %18, %16, %cst_10 {dimension_numbers = #tpu.dot_dimension_numbers<[1], [0], [0], [1], [0, 0, 1, 1], [], []>} : vector<16x32xf32>, vector<32x128xf32>, vector<16x128xf32> -> vector<16x128xf32>
    %20 = arith.addf %15, %19 : vector<16x128xf32>
    %21 = vector.extract_strided_slice %4 {offsets = [0, 22], sizes = [32, 128], strides = [1, 1]} : vector<32x152xf32> to vector<32x128xf32>
    %c3 = arith.constant 3 : index
    %c0_11 = arith.constant 0 : index
    %c0_12 = arith.constant 0 : index
    %22 = vector.load %arg3[%c3, %c0_11, %c0_12] : memref<6x16x32xf32, #tpu.memory_space<vmem>>, vector<1x16x32xf32>
    %23 = vector.shape_cast %22 : vector<1x16x32xf32> to vector<16x32xf32>
    %cst_13 = arith.constant dense<0.000000e+00> : vector<16x128xf32>
    %24 = tpu.matmul %23, %21, %cst_13 {dimension_numbers = #tpu.dot_dimension_numbers<[1], [0], [0], [1], [0, 0, 1, 1], [], []>} : vector<16x32xf32>, vector<32x128xf32>, vector<16x128xf32> -> vector<16x128xf32>
    %25 = arith.addf %20, %24 : vector<16x128xf32>
    %26 = vector.extract_strided_slice %4 {offsets = [0, 23], sizes = [32, 128], strides = [1, 1]} : vector<32x152xf32> to vector<32x128xf32>
    %c4 = arith.constant 4 : index
    %c0_14 = arith.constant 0 : index
    %c0_15 = arith.constant 0 : index
    %27 = vector.load %arg3[%c4, %c0_14, %c0_15] : memref<6x16x32xf32, #tpu.memory_space<vmem>>, vector<1x16x32xf32>
    %28 = vector.shape_cast %27 : vector<1x16x32xf32> to vector<16x32xf32>
    %cst_16 = arith.constant dense<0.000000e+00> : vector<16x128xf32>
    %29 = tpu.matmul %28, %26, %cst_16 {dimension_numbers = #tpu.dot_dimension_numbers<[1], [0], [0], [1], [0, 0, 1, 1], [], []>} : vector<16x32xf32>, vector<32x128xf32>, vector<16x128xf32> -> vector<16x128xf32>
    %30 = arith.addf %25, %29 : vector<16x128xf32>
    %31 = vector.extract_strided_slice %4 {offsets = [0, 24], sizes = [32, 128], strides = [1, 1]} : vector<32x152xf32> to vector<32x128xf32>
    %c5 = arith.constant 5 : index
    %c0_17 = arith.constant 0 : index
    %c0_18 = arith.constant 0 : index
    %32 = vector.load %arg3[%c5, %c0_17, %c0_18] : memref<6x16x32xf32, #tpu.memory_space<vmem>>, vector<1x16x32xf32>
    %33 = vector.shape_cast %32 : vector<1x16x32xf32> to vector<16x32xf32>
    %cst_19 = arith.constant dense<0.000000e+00> : vector<16x128xf32>
    %34 = tpu.matmul %33, %31, %cst_19 {dimension_numbers = #tpu.dot_dimension_numbers<[1], [0], [0], [1], [0, 0, 1, 1], [], []>} : vector<16x32xf32>, vector<32x128xf32>, vector<16x128xf32> -> vector<16x128xf32>
    %35 = arith.addf %30, %34 : vector<16x128xf32>
    %c0_20 = arith.constant 0 : index
    %c0_21 = arith.constant 0 : index
    %36 = vector.load %arg4[%c0_20, %c0_21] : memref<16x1xf32, #tpu.memory_space<vmem>>, vector<16x1xf32>
    %37 = vector.broadcast %36 : vector<16x1xf32> to vector<16x128xf32>
    %38 = arith.addf %35, %37 : vector<16x128xf32>
    %c0_22 = arith.constant 0 : index
    %c0_23 = arith.constant 0 : index
    %c0_24 = arith.constant 0 : index
    %39 = vector.load %arg5[%c0_22, %c0_23, %c0_24] : memref<1x16x128xf32, #tpu.memory_space<vmem>>, vector<1x16x128xf32>
    %40 = vector.shape_cast %39 : vector<1x16x128xf32> to vector<16x128xf32>
    %41 = vector.shape_cast %38 : vector<16x128xf32> to vector<1x16x128xf32>
    tpu.vector_store %arg5[%c0_22, %c0_23, %c0_24], %41 {strides = array<i32>} : memref<1x16x128xf32, #tpu.memory_space<vmem>>, vector<1x16x128xf32>,
    return
  }
  func.func @transform_0(%arg0: i32, %arg1: i32) -> (i32, i32, i32) {
    %c0_i32 = arith.constant 0 : i32
    %c0_i32_0 = arith.constant 0 : i32
    %c0_i32_1 = arith.constant 0 : i32
    return %arg0, %c0_i32, %c0_i32_0 : i32, i32, i32
  }
  func.func @transform_1(%arg0: i32, %arg1: i32) -> (i32, i32, i32) {
    %c0_i32 = arith.constant 0 : i32
    %c0_i32_0 = arith.constant 0 : i32
    %c0_i32_1 = arith.constant 0 : i32
    %c0_i32_2 = arith.constant 0 : i32
    return %c0_i32, %c0_i32_0, %c0_i32_1 : i32, i32, i32
  }
  func.func @transform_2(%arg0: i32, %arg1: i32) -> (i32, i32) {
    %c0_i32 = arith.constant 0 : i32
    %c0_i32_0 = arith.constant 0 : i32
    %c0_i32_1 = arith.constant 0 : i32
    return %c0_i32, %c0_i32_0 : i32, i32
  }
  func.func @transform_3(%arg0: i32, %arg1: i32) -> (i32, i32, i32) {
    %c0_i32 = arith.constant 0 : i32
    %c0_i32_0 = arith.constant 0 : i32
    return %arg0, %c0_i32, %arg1 : i32, i32, i32
  }
}

module attributes {stable_mosaic.version = 11 : i64} {
  func.func @_conv_shift_mm_kernel(%arg0: i32, %arg1: i32, %arg2: memref<1x48x256xf32, #tpu.memory_space<vmem>>, %arg3: memref<6x16x48xf32, #tpu.memory_space<vmem>>, %arg4: memref<16x1xf32, #tpu.memory_space<vmem>>, %arg5: memref<1x16x128xf32, #tpu.memory_space<vmem>>) attributes {dimension_semantics = [#tpu.dimension_semantics<parallel>, #tpu.dimension_semantics<parallel>], iteration_bounds = array<i64: 2, 1>, scalar_prefetch = 0 : i64, scratch_operands = 0 : i64, tpu.core_type = #tpu.core_type<tc>, window_params = [{transform_indices = @transform_0, window_bounds = array<i64: 1, 48, 256>}, {pipeline_mode = #tpu.pipeline_mode<synchronous>, transform_indices = @transform_1, window_bounds = array<i64: 6, 16, 48>}, {pipeline_mode = #tpu.pipeline_mode<synchronous>, transform_indices = @transform_2, window_bounds = array<i64: 16, 1>}, {transform_indices = @transform_3, window_bounds = array<i64: 1, 16, 128>}]} {
    %c128_i32 = arith.constant 128 : i32
    %0 = arith.muli %arg1, %c128_i32 : i32
    %1 = tpu.assume_multiple %0, 128 : i32
    %c0 = arith.constant 0 : index
    %c0_0 = arith.constant 0 : index
    %2 = arith.index_cast %1 : i32 to index
    %3 = vector.load %arg2[%c0, %c0_0, %2] : memref<1x48x256xf32, #tpu.memory_space<vmem>>, vector<1x48x174xf32>
    %4 = vector.shape_cast %3 : vector<1x48x174xf32> to vector<48x174xf32>
    %cst = arith.constant 0.000000e+00 : f32
    %5 = vector.broadcast %cst : f32 to vector<16x128xf32>
    %6 = vector.extract_strided_slice %4 {offsets = [0, 0], sizes = [48, 128], strides = [1, 1]} : vector<48x174xf32> to vector<48x128xf32>
    %c0_1 = arith.constant 0 : index
    %c0_2 = arith.constant 0 : index
    %c0_3 = arith.constant 0 : index
    %7 = vector.load %arg3[%c0_1, %c0_2, %c0_3] : memref<6x16x48xf32, #tpu.memory_space<vmem>>, vector<1x16x48xf32>
    %8 = vector.shape_cast %7 : vector<1x16x48xf32> to vector<16x48xf32>
    %cst_4 = arith.constant dense<0.000000e+00> : vector<16x128xf32>
    %9 = tpu.matmul %8, %6, %cst_4 {dimension_numbers = #tpu.dot_dimension_numbers<[1], [0], [0], [1], [0, 0, 1, 1], [], []>} : vector<16x48xf32>, vector<48x128xf32>, vector<16x128xf32> -> vector<16x128xf32>
    %10 = arith.addf %5, %9 : vector<16x128xf32>
    %11 = vector.extract_strided_slice %4 {offsets = [0, 1], sizes = [48, 128], strides = [1, 1]} : vector<48x174xf32> to vector<48x128xf32>
    %c1 = arith.constant 1 : index
    %c0_5 = arith.constant 0 : index
    %c0_6 = arith.constant 0 : index
    %12 = vector.load %arg3[%c1, %c0_5, %c0_6] : memref<6x16x48xf32, #tpu.memory_space<vmem>>, vector<1x16x48xf32>
    %13 = vector.shape_cast %12 : vector<1x16x48xf32> to vector<16x48xf32>
    %cst_7 = arith.constant dense<0.000000e+00> : vector<16x128xf32>
    %14 = tpu.matmul %13, %11, %cst_7 {dimension_numbers = #tpu.dot_dimension_numbers<[1], [0], [0], [1], [0, 0, 1, 1], [], []>} : vector<16x48xf32>, vector<48x128xf32>, vector<16x128xf32> -> vector<16x128xf32>
    %15 = arith.addf %10, %14 : vector<16x128xf32>
    %16 = vector.extract_strided_slice %4 {offsets = [0, 2], sizes = [48, 128], strides = [1, 1]} : vector<48x174xf32> to vector<48x128xf32>
    %c2 = arith.constant 2 : index
    %c0_8 = arith.constant 0 : index
    %c0_9 = arith.constant 0 : index
    %17 = vector.load %arg3[%c2, %c0_8, %c0_9] : memref<6x16x48xf32, #tpu.memory_space<vmem>>, vector<1x16x48xf32>
    %18 = vector.shape_cast %17 : vector<1x16x48xf32> to vector<16x48xf32>
    %cst_10 = arith.constant dense<0.000000e+00> : vector<16x128xf32>
    %19 = tpu.matmul %18, %16, %cst_10 {dimension_numbers = #tpu.dot_dimension_numbers<[1], [0], [0], [1], [0, 0, 1, 1], [], []>} : vector<16x48xf32>, vector<48x128xf32>, vector<16x128xf32> -> vector<16x128xf32>
    %20 = arith.addf %15, %19 : vector<16x128xf32>
    %21 = vector.extract_strided_slice %4 {offsets = [0, 44], sizes = [48, 128], strides = [1, 1]} : vector<48x174xf32> to vector<48x128xf32>
    %c3 = arith.constant 3 : index
    %c0_11 = arith.constant 0 : index
    %c0_12 = arith.constant 0 : index
    %22 = vector.load %arg3[%c3, %c0_11, %c0_12] : memref<6x16x48xf32, #tpu.memory_space<vmem>>, vector<1x16x48xf32>
    %23 = vector.shape_cast %22 : vector<1x16x48xf32> to vector<16x48xf32>
    %cst_13 = arith.constant dense<0.000000e+00> : vector<16x128xf32>
    %24 = tpu.matmul %23, %21, %cst_13 {dimension_numbers = #tpu.dot_dimension_numbers<[1], [0], [0], [1], [0, 0, 1, 1], [], []>} : vector<16x48xf32>, vector<48x128xf32>, vector<16x128xf32> -> vector<16x128xf32>
    %25 = arith.addf %20, %24 : vector<16x128xf32>
    %26 = vector.extract_strided_slice %4 {offsets = [0, 45], sizes = [48, 128], strides = [1, 1]} : vector<48x174xf32> to vector<48x128xf32>
    %c4 = arith.constant 4 : index
    %c0_14 = arith.constant 0 : index
    %c0_15 = arith.constant 0 : index
    %27 = vector.load %arg3[%c4, %c0_14, %c0_15] : memref<6x16x48xf32, #tpu.memory_space<vmem>>, vector<1x16x48xf32>
    %28 = vector.shape_cast %27 : vector<1x16x48xf32> to vector<16x48xf32>
    %cst_16 = arith.constant dense<0.000000e+00> : vector<16x128xf32>
    %29 = tpu.matmul %28, %26, %cst_16 {dimension_numbers = #tpu.dot_dimension_numbers<[1], [0], [0], [1], [0, 0, 1, 1], [], []>} : vector<16x48xf32>, vector<48x128xf32>, vector<16x128xf32> -> vector<16x128xf32>
    %30 = arith.addf %25, %29 : vector<16x128xf32>
    %31 = vector.extract_strided_slice %4 {offsets = [0, 46], sizes = [48, 128], strides = [1, 1]} : vector<48x174xf32> to vector<48x128xf32>
    %c5 = arith.constant 5 : index
    %c0_17 = arith.constant 0 : index
    %c0_18 = arith.constant 0 : index
    %32 = vector.load %arg3[%c5, %c0_17, %c0_18] : memref<6x16x48xf32, #tpu.memory_space<vmem>>, vector<1x16x48xf32>
    %33 = vector.shape_cast %32 : vector<1x16x48xf32> to vector<16x48xf32>
    %cst_19 = arith.constant dense<0.000000e+00> : vector<16x128xf32>
    %34 = tpu.matmul %33, %31, %cst_19 {dimension_numbers = #tpu.dot_dimension_numbers<[1], [0], [0], [1], [0, 0, 1, 1], [], []>} : vector<16x48xf32>, vector<48x128xf32>, vector<16x128xf32> -> vector<16x128xf32>
    %35 = arith.addf %30, %34 : vector<16x128xf32>
    %c0_20 = arith.constant 0 : index
    %c0_21 = arith.constant 0 : index
    %36 = vector.load %arg4[%c0_20, %c0_21] : memref<16x1xf32, #tpu.memory_space<vmem>>, vector<16x1xf32>
    %37 = vector.broadcast %36 : vector<16x1xf32> to vector<16x128xf32>
    %38 = arith.addf %35, %37 : vector<16x128xf32>
    %c0_22 = arith.constant 0 : index
    %c0_23 = arith.constant 0 : index
    %c0_24 = arith.constant 0 : index
    %39 = vector.load %arg5[%c0_22, %c0_23, %c0_24] : memref<1x16x128xf32, #tpu.memory_space<vmem>>, vector<1x16x128xf32>
    %40 = vector.shape_cast %39 : vector<1x16x128xf32> to vector<16x128xf32>
    %41 = vector.shape_cast %38 : vector<16x128xf32> to vector<1x16x128xf32>
    tpu.vector_store %arg5[%c0_22, %c0_23, %c0_24], %41 {strides = array<i32>} : memref<1x16x128xf32, #tpu.memory_space<vmem>>, vector<1x16x128xf32>,
    return
  }
  func.func @transform_0(%arg0: i32, %arg1: i32) -> (i32, i32, i32) {
    %c0_i32 = arith.constant 0 : i32
    %c0_i32_0 = arith.constant 0 : i32
    %c0_i32_1 = arith.constant 0 : i32
    return %arg0, %c0_i32, %c0_i32_0 : i32, i32, i32
  }
  func.func @transform_1(%arg0: i32, %arg1: i32) -> (i32, i32, i32) {
    %c0_i32 = arith.constant 0 : i32
    %c0_i32_0 = arith.constant 0 : i32
    %c0_i32_1 = arith.constant 0 : i32
    %c0_i32_2 = arith.constant 0 : i32
    return %c0_i32, %c0_i32_0, %c0_i32_1 : i32, i32, i32
  }
  func.func @transform_2(%arg0: i32, %arg1: i32) -> (i32, i32) {
    %c0_i32 = arith.constant 0 : i32
    %c0_i32_0 = arith.constant 0 : i32
    %c0_i32_1 = arith.constant 0 : i32
    return %c0_i32, %c0_i32_0 : i32, i32
  }
  func.func @transform_3(%arg0: i32, %arg1: i32) -> (i32, i32, i32) {
    %c0_i32 = arith.constant 0 : i32
    %c0_i32_0 = arith.constant 0 : i32
    return %arg0, %c0_i32, %arg1 : i32, i32, i32
  }
}

module attributes {stable_mosaic.version = 11 : i64} {
  func.func @_conv_shift_mm_kernel(%arg0: i32, %arg1: i32, %arg2: memref<1x64x256xf32, #tpu.memory_space<vmem>>, %arg3: memref<6x16x64xf32, #tpu.memory_space<vmem>>, %arg4: memref<16x1xf32, #tpu.memory_space<vmem>>, %arg5: memref<1x16x128xf32, #tpu.memory_space<vmem>>) attributes {dimension_semantics = [#tpu.dimension_semantics<parallel>, #tpu.dimension_semantics<parallel>], iteration_bounds = array<i64: 2, 1>, scalar_prefetch = 0 : i64, scratch_operands = 0 : i64, tpu.core_type = #tpu.core_type<tc>, window_params = [{transform_indices = @transform_0, window_bounds = array<i64: 1, 64, 256>}, {pipeline_mode = #tpu.pipeline_mode<synchronous>, transform_indices = @transform_1, window_bounds = array<i64: 6, 16, 64>}, {pipeline_mode = #tpu.pipeline_mode<synchronous>, transform_indices = @transform_2, window_bounds = array<i64: 16, 1>}, {transform_indices = @transform_3, window_bounds = array<i64: 1, 16, 128>}]} {
    %c128_i32 = arith.constant 128 : i32
    %0 = arith.muli %arg1, %c128_i32 : i32
    %1 = tpu.assume_multiple %0, 128 : i32
    %c0 = arith.constant 0 : index
    %c0_0 = arith.constant 0 : index
    %2 = arith.index_cast %1 : i32 to index
    %3 = vector.load %arg2[%c0, %c0_0, %2] : memref<1x64x256xf32, #tpu.memory_space<vmem>>, vector<1x64x218xf32>
    %4 = vector.shape_cast %3 : vector<1x64x218xf32> to vector<64x218xf32>
    %cst = arith.constant 0.000000e+00 : f32
    %5 = vector.broadcast %cst : f32 to vector<16x128xf32>
    %6 = vector.extract_strided_slice %4 {offsets = [0, 0], sizes = [64, 128], strides = [1, 1]} : vector<64x218xf32> to vector<64x128xf32>
    %c0_1 = arith.constant 0 : index
    %c0_2 = arith.constant 0 : index
    %c0_3 = arith.constant 0 : index
    %7 = vector.load %arg3[%c0_1, %c0_2, %c0_3] : memref<6x16x64xf32, #tpu.memory_space<vmem>>, vector<1x16x64xf32>
    %8 = vector.shape_cast %7 : vector<1x16x64xf32> to vector<16x64xf32>
    %cst_4 = arith.constant dense<0.000000e+00> : vector<16x128xf32>
    %9 = tpu.matmul %8, %6, %cst_4 {dimension_numbers = #tpu.dot_dimension_numbers<[1], [0], [0], [1], [0, 0, 1, 1], [], []>} : vector<16x64xf32>, vector<64x128xf32>, vector<16x128xf32> -> vector<16x128xf32>
    %10 = arith.addf %5, %9 : vector<16x128xf32>
    %11 = vector.extract_strided_slice %4 {offsets = [0, 1], sizes = [64, 128], strides = [1, 1]} : vector<64x218xf32> to vector<64x128xf32>
    %c1 = arith.constant 1 : index
    %c0_5 = arith.constant 0 : index
    %c0_6 = arith.constant 0 : index
    %12 = vector.load %arg3[%c1, %c0_5, %c0_6] : memref<6x16x64xf32, #tpu.memory_space<vmem>>, vector<1x16x64xf32>
    %13 = vector.shape_cast %12 : vector<1x16x64xf32> to vector<16x64xf32>
    %cst_7 = arith.constant dense<0.000000e+00> : vector<16x128xf32>
    %14 = tpu.matmul %13, %11, %cst_7 {dimension_numbers = #tpu.dot_dimension_numbers<[1], [0], [0], [1], [0, 0, 1, 1], [], []>} : vector<16x64xf32>, vector<64x128xf32>, vector<16x128xf32> -> vector<16x128xf32>
    %15 = arith.addf %10, %14 : vector<16x128xf32>
    %16 = vector.extract_strided_slice %4 {offsets = [0, 2], sizes = [64, 128], strides = [1, 1]} : vector<64x218xf32> to vector<64x128xf32>
    %c2 = arith.constant 2 : index
    %c0_8 = arith.constant 0 : index
    %c0_9 = arith.constant 0 : index
    %17 = vector.load %arg3[%c2, %c0_8, %c0_9] : memref<6x16x64xf32, #tpu.memory_space<vmem>>, vector<1x16x64xf32>
    %18 = vector.shape_cast %17 : vector<1x16x64xf32> to vector<16x64xf32>
    %cst_10 = arith.constant dense<0.000000e+00> : vector<16x128xf32>
    %19 = tpu.matmul %18, %16, %cst_10 {dimension_numbers = #tpu.dot_dimension_numbers<[1], [0], [0], [1], [0, 0, 1, 1], [], []>} : vector<16x64xf32>, vector<64x128xf32>, vector<16x128xf32> -> vector<16x128xf32>
    %20 = arith.addf %15, %19 : vector<16x128xf32>
    %21 = vector.extract_strided_slice %4 {offsets = [0, 88], sizes = [64, 128], strides = [1, 1]} : vector<64x218xf32> to vector<64x128xf32>
    %c3 = arith.constant 3 : index
    %c0_11 = arith.constant 0 : index
    %c0_12 = arith.constant 0 : index
    %22 = vector.load %arg3[%c3, %c0_11, %c0_12] : memref<6x16x64xf32, #tpu.memory_space<vmem>>, vector<1x16x64xf32>
    %23 = vector.shape_cast %22 : vector<1x16x64xf32> to vector<16x64xf32>
    %cst_13 = arith.constant dense<0.000000e+00> : vector<16x128xf32>
    %24 = tpu.matmul %23, %21, %cst_13 {dimension_numbers = #tpu.dot_dimension_numbers<[1], [0], [0], [1], [0, 0, 1, 1], [], []>} : vector<16x64xf32>, vector<64x128xf32>, vector<16x128xf32> -> vector<16x128xf32>
    %25 = arith.addf %20, %24 : vector<16x128xf32>
    %26 = vector.extract_strided_slice %4 {offsets = [0, 89], sizes = [64, 128], strides = [1, 1]} : vector<64x218xf32> to vector<64x128xf32>
    %c4 = arith.constant 4 : index
    %c0_14 = arith.constant 0 : index
    %c0_15 = arith.constant 0 : index
    %27 = vector.load %arg3[%c4, %c0_14, %c0_15] : memref<6x16x64xf32, #tpu.memory_space<vmem>>, vector<1x16x64xf32>
    %28 = vector.shape_cast %27 : vector<1x16x64xf32> to vector<16x64xf32>
    %cst_16 = arith.constant dense<0.000000e+00> : vector<16x128xf32>
    %29 = tpu.matmul %28, %26, %cst_16 {dimension_numbers = #tpu.dot_dimension_numbers<[1], [0], [0], [1], [0, 0, 1, 1], [], []>} : vector<16x64xf32>, vector<64x128xf32>, vector<16x128xf32> -> vector<16x128xf32>
    %30 = arith.addf %25, %29 : vector<16x128xf32>
    %31 = vector.extract_strided_slice %4 {offsets = [0, 90], sizes = [64, 128], strides = [1, 1]} : vector<64x218xf32> to vector<64x128xf32>
    %c5 = arith.constant 5 : index
    %c0_17 = arith.constant 0 : index
    %c0_18 = arith.constant 0 : index
    %32 = vector.load %arg3[%c5, %c0_17, %c0_18] : memref<6x16x64xf32, #tpu.memory_space<vmem>>, vector<1x16x64xf32>
    %33 = vector.shape_cast %32 : vector<1x16x64xf32> to vector<16x64xf32>
    %cst_19 = arith.constant dense<0.000000e+00> : vector<16x128xf32>
    %34 = tpu.matmul %33, %31, %cst_19 {dimension_numbers = #tpu.dot_dimension_numbers<[1], [0], [0], [1], [0, 0, 1, 1], [], []>} : vector<16x64xf32>, vector<64x128xf32>, vector<16x128xf32> -> vector<16x128xf32>
    %35 = arith.addf %30, %34 : vector<16x128xf32>
    %c0_20 = arith.constant 0 : index
    %c0_21 = arith.constant 0 : index
    %36 = vector.load %arg4[%c0_20, %c0_21] : memref<16x1xf32, #tpu.memory_space<vmem>>, vector<16x1xf32>
    %37 = vector.broadcast %36 : vector<16x1xf32> to vector<16x128xf32>
    %38 = arith.addf %35, %37 : vector<16x128xf32>
    %c0_22 = arith.constant 0 : index
    %c0_23 = arith.constant 0 : index
    %c0_24 = arith.constant 0 : index
    %39 = vector.load %arg5[%c0_22, %c0_23, %c0_24] : memref<1x16x128xf32, #tpu.memory_space<vmem>>, vector<1x16x128xf32>
    %40 = vector.shape_cast %39 : vector<1x16x128xf32> to vector<16x128xf32>
    %41 = vector.shape_cast %38 : vector<16x128xf32> to vector<1x16x128xf32>
    tpu.vector_store %arg5[%c0_22, %c0_23, %c0_24], %41 {strides = array<i32>} : memref<1x16x128xf32, #tpu.memory_space<vmem>>, vector<1x16x128xf32>,
    return
  }
  func.func @transform_0(%arg0: i32, %arg1: i32) -> (i32, i32, i32) {
    %c0_i32 = arith.constant 0 : i32
    %c0_i32_0 = arith.constant 0 : i32
    %c0_i32_1 = arith.constant 0 : i32
    return %arg0, %c0_i32, %c0_i32_0 : i32, i32, i32
  }
  func.func @transform_1(%arg0: i32, %arg1: i32) -> (i32, i32, i32) {
    %c0_i32 = arith.constant 0 : i32
    %c0_i32_0 = arith.constant 0 : i32
    %c0_i32_1 = arith.constant 0 : i32
    %c0_i32_2 = arith.constant 0 : i32
    return %c0_i32, %c0_i32_0, %c0_i32_1 : i32, i32, i32
  }
  func.func @transform_2(%arg0: i32, %arg1: i32) -> (i32, i32) {
    %c0_i32 = arith.constant 0 : i32
    %c0_i32_0 = arith.constant 0 : i32
    %c0_i32_1 = arith.constant 0 : i32
    return %c0_i32, %c0_i32_0 : i32, i32
  }
  func.func @transform_3(%arg0: i32, %arg1: i32) -> (i32, i32, i32) {
    %c0_i32 = arith.constant 0 : i32
    %c0_i32_0 = arith.constant 0 : i32
    return %arg0, %c0_i32, %arg1 : i32, i32, i32
  }
}

module attributes {stable_mosaic.version = 11 : i64} {
  func.func @_conv_shift_mm_kernel(%arg0: i32, %arg1: i32, %arg2: memref<1x16x256xf32, #tpu.memory_space<vmem>>, %arg3: memref<3x32x16xf32, #tpu.memory_space<vmem>>, %arg4: memref<32x1xf32, #tpu.memory_space<vmem>>, %arg5: memref<1x32x128xf32, #tpu.memory_space<vmem>>) attributes {dimension_semantics = [#tpu.dimension_semantics<parallel>, #tpu.dimension_semantics<parallel>], iteration_bounds = array<i64: 2, 1>, scalar_prefetch = 0 : i64, scratch_operands = 0 : i64, tpu.core_type = #tpu.core_type<tc>, window_params = [{transform_indices = @transform_0, window_bounds = array<i64: 1, 16, 256>}, {pipeline_mode = #tpu.pipeline_mode<synchronous>, transform_indices = @transform_1, window_bounds = array<i64: 3, 32, 16>}, {pipeline_mode = #tpu.pipeline_mode<synchronous>, transform_indices = @transform_2, window_bounds = array<i64: 32, 1>}, {transform_indices = @transform_3, window_bounds = array<i64: 1, 32, 128>}]} {
    %c128_i32 = arith.constant 128 : i32
    %0 = arith.muli %arg1, %c128_i32 : i32
    %1 = tpu.assume_multiple %0, 128 : i32
    %c0 = arith.constant 0 : index
    %c0_0 = arith.constant 0 : index
    %2 = arith.index_cast %1 : i32 to index
    %3 = vector.load %arg2[%c0, %c0_0, %2] : memref<1x16x256xf32, #tpu.memory_space<vmem>>, vector<1x16x130xf32>
    %4 = vector.shape_cast %3 : vector<1x16x130xf32> to vector<16x130xf32>
    %cst = arith.constant 0.000000e+00 : f32
    %5 = vector.broadcast %cst : f32 to vector<32x128xf32>
    %6 = vector.extract_strided_slice %4 {offsets = [0, 0], sizes = [16, 128], strides = [1, 1]} : vector<16x130xf32> to vector<16x128xf32>
    %c0_1 = arith.constant 0 : index
    %c0_2 = arith.constant 0 : index
    %c0_3 = arith.constant 0 : index
    %7 = vector.load %arg3[%c0_1, %c0_2, %c0_3] : memref<3x32x16xf32, #tpu.memory_space<vmem>>, vector<1x32x16xf32>
    %8 = vector.shape_cast %7 : vector<1x32x16xf32> to vector<32x16xf32>
    %cst_4 = arith.constant dense<0.000000e+00> : vector<32x128xf32>
    %9 = tpu.matmul %8, %6, %cst_4 {dimension_numbers = #tpu.dot_dimension_numbers<[1], [0], [0], [1], [0, 0, 1, 1], [], []>} : vector<32x16xf32>, vector<16x128xf32>, vector<32x128xf32> -> vector<32x128xf32>
    %10 = arith.addf %5, %9 : vector<32x128xf32>
    %11 = vector.extract_strided_slice %4 {offsets = [0, 1], sizes = [16, 128], strides = [1, 1]} : vector<16x130xf32> to vector<16x128xf32>
    %c1 = arith.constant 1 : index
    %c0_5 = arith.constant 0 : index
    %c0_6 = arith.constant 0 : index
    %12 = vector.load %arg3[%c1, %c0_5, %c0_6] : memref<3x32x16xf32, #tpu.memory_space<vmem>>, vector<1x32x16xf32>
    %13 = vector.shape_cast %12 : vector<1x32x16xf32> to vector<32x16xf32>
    %cst_7 = arith.constant dense<0.000000e+00> : vector<32x128xf32>
    %14 = tpu.matmul %13, %11, %cst_7 {dimension_numbers = #tpu.dot_dimension_numbers<[1], [0], [0], [1], [0, 0, 1, 1], [], []>} : vector<32x16xf32>, vector<16x128xf32>, vector<32x128xf32> -> vector<32x128xf32>
    %15 = arith.addf %10, %14 : vector<32x128xf32>
    %16 = vector.extract_strided_slice %4 {offsets = [0, 2], sizes = [16, 128], strides = [1, 1]} : vector<16x130xf32> to vector<16x128xf32>
    %c2 = arith.constant 2 : index
    %c0_8 = arith.constant 0 : index
    %c0_9 = arith.constant 0 : index
    %17 = vector.load %arg3[%c2, %c0_8, %c0_9] : memref<3x32x16xf32, #tpu.memory_space<vmem>>, vector<1x32x16xf32>
    %18 = vector.shape_cast %17 : vector<1x32x16xf32> to vector<32x16xf32>
    %cst_10 = arith.constant dense<0.000000e+00> : vector<32x128xf32>
    %19 = tpu.matmul %18, %16, %cst_10 {dimension_numbers = #tpu.dot_dimension_numbers<[1], [0], [0], [1], [0, 0, 1, 1], [], []>} : vector<32x16xf32>, vector<16x128xf32>, vector<32x128xf32> -> vector<32x128xf32>
    %20 = arith.addf %15, %19 : vector<32x128xf32>
    %c0_11 = arith.constant 0 : index
    %c0_12 = arith.constant 0 : index
    %21 = vector.load %arg4[%c0_11, %c0_12] : memref<32x1xf32, #tpu.memory_space<vmem>>, vector<32x1xf32>
    %22 = vector.broadcast %21 : vector<32x1xf32> to vector<32x128xf32>
    %23 = arith.addf %20, %22 : vector<32x128xf32>
    %c0_13 = arith.constant 0 : index
    %c0_14 = arith.constant 0 : index
    %c0_15 = arith.constant 0 : index
    %24 = vector.load %arg5[%c0_13, %c0_14, %c0_15] : memref<1x32x128xf32, #tpu.memory_space<vmem>>, vector<1x32x128xf32>
    %25 = vector.shape_cast %24 : vector<1x32x128xf32> to vector<32x128xf32>
    %26 = vector.shape_cast %23 : vector<32x128xf32> to vector<1x32x128xf32>
    tpu.vector_store %arg5[%c0_13, %c0_14, %c0_15], %26 {strides = array<i32>} : memref<1x32x128xf32, #tpu.memory_space<vmem>>, vector<1x32x128xf32>,
    return
  }
  func.func @transform_0(%arg0: i32, %arg1: i32) -> (i32, i32, i32) {
    %c0_i32 = arith.constant 0 : i32
    %c0_i32_0 = arith.constant 0 : i32
    %c0_i32_1 = arith.constant 0 : i32
    return %arg0, %c0_i32, %c0_i32_0 : i32, i32, i32
  }
  func.func @transform_1(%arg0: i32, %arg1: i32) -> (i32, i32, i32) {
    %c0_i32 = arith.constant 0 : i32
    %c0_i32_0 = arith.constant 0 : i32
    %c0_i32_1 = arith.constant 0 : i32
    %c0_i32_2 = arith.constant 0 : i32
    return %c0_i32, %c0_i32_0, %c0_i32_1 : i32, i32, i32
  }
  func.func @transform_2(%arg0: i32, %arg1: i32) -> (i32, i32) {
    %c0_i32 = arith.constant 0 : i32
    %c0_i32_0 = arith.constant 0 : i32
    %c0_i32_1 = arith.constant 0 : i32
    return %c0_i32, %c0_i32_0 : i32, i32
  }
  func.func @transform_3(%arg0: i32, %arg1: i32) -> (i32, i32, i32) {
    %c0_i32 = arith.constant 0 : i32
    %c0_i32_0 = arith.constant 0 : i32
    return %arg0, %c0_i32, %arg1 : i32, i32, i32
  }
}

module attributes {stable_mosaic.version = 11 : i64} {
  func.func @_in_prelu_kernel(%arg0: i32, %arg1: memref<8x144xf32, #tpu.memory_space<vmem>>, %arg2: memref<8x1xf32, #tpu.memory_space<vmem>>, %arg3: memref<8x1xf32, #tpu.memory_space<vmem>>, %arg4: memref<8x1xf32, #tpu.memory_space<vmem>>, %arg5: memref<8x144xf32, #tpu.memory_space<vmem>>) attributes {dimension_semantics = [#tpu.dimension_semantics<parallel>], iteration_bounds = array<i64: 4>, scalar_prefetch = 0 : i64, scratch_operands = 0 : i64, tpu.core_type = #tpu.core_type<tc>, window_params = [{transform_indices = @transform_0, window_bounds = array<i64: 8, 144>}, {transform_indices = @transform_1, window_bounds = array<i64: 8, 1>}, {transform_indices = @transform_2, window_bounds = array<i64: 8, 1>}, {transform_indices = @transform_3, window_bounds = array<i64: 8, 1>}, {transform_indices = @transform_4, window_bounds = array<i64: 8, 144>}]} {
    %c0 = arith.constant 0 : index
    %c0_0 = arith.constant 0 : index
    %0 = vector.load %arg1[%c0, %c0_0] : memref<8x144xf32, #tpu.memory_space<vmem>>, vector<8x144xf32>
    %cst = arith.constant dense<0.000000e+00> : vector<8xf32>
    %1 = vector.multi_reduction <add>, %0, %cst [1] : vector<8x144xf32> to vector<8xf32>
    %2 = vector.shape_cast %1 : vector<8xf32> to vector<8x1xf32>
    %cst_1 = arith.constant 1.440000e+02 : f32
    %3 = vector.broadcast %cst_1 : f32 to vector<8x1xf32>
    %4 = arith.divf %2, %3 : vector<8x1xf32>
    %5 = vector.broadcast %4 : vector<8x1xf32> to vector<8x144xf32>
    %6 = arith.subf %0, %5 : vector<8x144xf32>
    %7 = arith.mulf %6, %6 : vector<8x144xf32>
    %cst_2 = arith.constant dense<0.000000e+00> : vector<8xf32>
    %8 = vector.multi_reduction <add>, %7, %cst_2 [1] : vector<8x144xf32> to vector<8xf32>
    %9 = vector.shape_cast %8 : vector<8xf32> to vector<8x1xf32>
    %cst_3 = arith.constant 1.440000e+02 : f32
    %10 = vector.broadcast %cst_3 : f32 to vector<8x1xf32>
    %11 = arith.divf %9, %10 : vector<8x1xf32>
    %12 = vector.broadcast %4 : vector<8x1xf32> to vector<8x144xf32>
    %13 = arith.subf %0, %12 : vector<8x144xf32>
    %cst_4 = arith.constant 9.99999974E-6 : f32
    %14 = vector.broadcast %cst_4 : f32 to vector<8x1xf32>
    %15 = arith.addf %11, %14 : vector<8x1xf32>
    %16 = math.rsqrt %15 : vector<8x1xf32>
    %17 = vector.broadcast %16 : vector<8x1xf32> to vector<8x144xf32>
    %18 = arith.mulf %13, %17 : vector<8x144xf32>
    %c0_5 = arith.constant 0 : index
    %c0_6 = arith.constant 0 : index
    %19 = vector.load %arg2[%c0_5, %c0_6] : memref<8x1xf32, #tpu.memory_space<vmem>>, vector<8x1xf32>
    %20 = vector.broadcast %19 : vector<8x1xf32> to vector<8x144xf32>
    %21 = arith.mulf %18, %20 : vector<8x144xf32>
    %c0_7 = arith.constant 0 : index
    %c0_8 = arith.constant 0 : index
    %22 = vector.load %arg3[%c0_7, %c0_8] : memref<8x1xf32, #tpu.memory_space<vmem>>, vector<8x1xf32>
    %23 = vector.broadcast %22 : vector<8x1xf32> to vector<8x144xf32>
    %24 = arith.addf %21, %23 : vector<8x144xf32>
    %cst_9 = arith.constant 0.000000e+00 : f32
    %25 = vector.broadcast %cst_9 : f32 to vector<8x144xf32>
    %26 = arith.cmpf ogt, %24, %25 : vector<8x144xf32>
    %c0_10 = arith.constant 0 : index
    %c0_11 = arith.constant 0 : index
    %27 = vector.load %arg4[%c0_10, %c0_11] : memref<8x1xf32, #tpu.memory_space<vmem>>, vector<8x1xf32>
    %28 = vector.broadcast %27 : vector<8x1xf32> to vector<8x144xf32>
    %29 = arith.mulf %28, %24 : vector<8x144xf32>
    %30 = arith.select %26, %24, %29 : vector<8x144xi1>, vector<8x144xf32>
    %c0_12 = arith.constant 0 : index
    %c0_13 = arith.constant 0 : index
    %31 = vector.load %arg5[%c0_12, %c0_13] : memref<8x144xf32, #tpu.memory_space<vmem>>, vector<8x144xf32>
    tpu.vector_store %arg5[%c0_12, %c0_13], %30 {strides = array<i32>} : memref<8x144xf32, #tpu.memory_space<vmem>>, vector<8x144xf32>,
    return
  }
  func.func @transform_0(%arg0: i32) -> (i32, i32) {
    %c0_i32 = arith.constant 0 : i32
    %c0_i32_0 = arith.constant 0 : i32
    return %arg0, %c0_i32 : i32, i32
  }
  func.func @transform_1(%arg0: i32) -> (i32, i32) {
    %c0_i32 = arith.constant 0 : i32
    %c0_i32_0 = arith.constant 0 : i32
    return %arg0, %c0_i32 : i32, i32
  }
  func.func @transform_2(%arg0: i32) -> (i32, i32) {
    %c0_i32 = arith.constant 0 : i32
    %c0_i32_0 = arith.constant 0 : i32
    return %arg0, %c0_i32 : i32, i32
  }
  func.func @transform_3(%arg0: i32) -> (i32, i32) {
    %c0_i32 = arith.constant 0 : i32
    %c0_i32_0 = arith.constant 0 : i32
    return %arg0, %c0_i32 : i32, i32
  }
  func.func @transform_4(%arg0: i32) -> (i32, i32) {
    %c0_i32 = arith.constant 0 : i32
    %c0_i32_0 = arith.constant 0 : i32
    return %arg0, %c0_i32 : i32, i32
  }
}

module attributes {stable_mosaic.version = 11 : i64} {
  func.func @_conv_shift_mm_kernel(%arg0: i32, %arg1: i32, %arg2: memref<1x16x384xf32, #tpu.memory_space<vmem>>, %arg3: memref<2x2x16xf32, #tpu.memory_space<vmem>>, %arg4: memref<2x1xf32, #tpu.memory_space<vmem>>, %arg5: memref<1x2x256xf32, #tpu.memory_space<vmem>>) attributes {dimension_semantics = [#tpu.dimension_semantics<parallel>, #tpu.dimension_semantics<parallel>], iteration_bounds = array<i64: 2, 1>, scalar_prefetch = 0 : i64, scratch_operands = 0 : i64, tpu.core_type = #tpu.core_type<tc>, window_params = [{transform_indices = @transform_0, window_bounds = array<i64: 1, 16, 384>}, {pipeline_mode = #tpu.pipeline_mode<synchronous>, transform_indices = @transform_1, window_bounds = array<i64: 2, 2, 16>}, {pipeline_mode = #tpu.pipeline_mode<synchronous>, transform_indices = @transform_2, window_bounds = array<i64: 2, 1>}, {transform_indices = @transform_3, window_bounds = array<i64: 1, 2, 256>}]} {
    %c256_i32 = arith.constant 256 : i32
    %0 = arith.muli %arg1, %c256_i32 : i32
    %1 = tpu.assume_multiple %0, 256 : i32
    %c0 = arith.constant 0 : index
    %c0_0 = arith.constant 0 : index
    %2 = arith.index_cast %1 : i32 to index
    %3 = vector.load %arg2[%c0, %c0_0, %2] : memref<1x16x384xf32, #tpu.memory_space<vmem>>, vector<1x16x257xf32>
    %4 = vector.shape_cast %3 : vector<1x16x257xf32> to vector<16x257xf32>
    %cst = arith.constant 0.000000e+00 : f32
    %5 = vector.broadcast %cst : f32 to vector<2x256xf32>
    %6 = vector.extract_strided_slice %4 {offsets = [0, 0], sizes = [16, 256], strides = [1, 1]} : vector<16x257xf32> to vector<16x256xf32>
    %c0_1 = arith.constant 0 : index
    %c0_2 = arith.constant 0 : index
    %c0_3 = arith.constant 0 : index
    %7 = vector.load %arg3[%c0_1, %c0_2, %c0_3] : memref<2x2x16xf32, #tpu.memory_space<vmem>>, vector<1x2x16xf32>
    %8 = vector.shape_cast %7 : vector<1x2x16xf32> to vector<2x16xf32>
    %cst_4 = arith.constant dense<0.000000e+00> : vector<2x256xf32>
    %9 = tpu.matmul %8, %6, %cst_4 {dimension_numbers = #tpu.dot_dimension_numbers<[1], [0], [0], [1], [0, 0, 1, 1], [], []>} : vector<2x16xf32>, vector<16x256xf32>, vector<2x256xf32> -> vector<2x256xf32>
    %10 = arith.addf %5, %9 : vector<2x256xf32>
    %11 = vector.extract_strided_slice %4 {offsets = [0, 1], sizes = [16, 256], strides = [1, 1]} : vector<16x257xf32> to vector<16x256xf32>
    %c1 = arith.constant 1 : index
    %c0_5 = arith.constant 0 : index
    %c0_6 = arith.constant 0 : index
    %12 = vector.load %arg3[%c1, %c0_5, %c0_6] : memref<2x2x16xf32, #tpu.memory_space<vmem>>, vector<1x2x16xf32>
    %13 = vector.shape_cast %12 : vector<1x2x16xf32> to vector<2x16xf32>
    %cst_7 = arith.constant dense<0.000000e+00> : vector<2x256xf32>
    %14 = tpu.matmul %13, %11, %cst_7 {dimension_numbers = #tpu.dot_dimension_numbers<[1], [0], [0], [1], [0, 0, 1, 1], [], []>} : vector<2x16xf32>, vector<16x256xf32>, vector<2x256xf32> -> vector<2x256xf32>
    %15 = arith.addf %10, %14 : vector<2x256xf32>
    %c0_8 = arith.constant 0 : index
    %c0_9 = arith.constant 0 : index
    %16 = vector.load %arg4[%c0_8, %c0_9] : memref<2x1xf32, #tpu.memory_space<vmem>>, vector<2x1xf32>
    %17 = vector.broadcast %16 : vector<2x1xf32> to vector<2x256xf32>
    %18 = arith.addf %15, %17 : vector<2x256xf32>
    %c0_10 = arith.constant 0 : index
    %c0_11 = arith.constant 0 : index
    %c0_12 = arith.constant 0 : index
    %19 = vector.load %arg5[%c0_10, %c0_11, %c0_12] : memref<1x2x256xf32, #tpu.memory_space<vmem>>, vector<1x2x256xf32>
    %20 = vector.shape_cast %19 : vector<1x2x256xf32> to vector<2x256xf32>
    %21 = vector.shape_cast %18 : vector<2x256xf32> to vector<1x2x256xf32>
    tpu.vector_store %arg5[%c0_10, %c0_11, %c0_12], %21 {strides = array<i32>} : memref<1x2x256xf32, #tpu.memory_space<vmem>>, vector<1x2x256xf32>,
    return
  }
  func.func @transform_0(%arg0: i32, %arg1: i32) -> (i32, i32, i32) {
    %c0_i32 = arith.constant 0 : i32
    %c0_i32_0 = arith.constant 0 : i32
    %c0_i32_1 = arith.constant 0 : i32
    return %arg0, %c0_i32, %c0_i32_0 : i32, i32, i32
  }
  func.func @transform_1(%arg0: i32, %arg1: i32) -> (i32, i32, i32) {
    %c0_i32 = arith.constant 0 : i32
    %c0_i32_0 = arith.constant 0 : i32
    %c0_i32_1 = arith.constant 0 : i32
    %c0_i32_2 = arith.constant 0 : i32
    return %c0_i32, %c0_i32_0, %c0_i32_1 : i32, i32, i32
  }
  func.func @transform_2(%arg0: i32, %arg1: i32) -> (i32, i32) {
    %c0_i32 = arith.constant 0 : i32
    %c0_i32_0 = arith.constant 0 : i32
    %c0_i32_1 = arith.constant 0 : i32
    return %c0_i32, %c0_i32_0 : i32, i32
  }
  func.func @transform_3(%arg0: i32, %arg1: i32) -> (i32, i32, i32) {
    %c0_i32 = arith.constant 0 : i32
    %c0_i32_0 = arith.constant 0 : i32
    return %arg0, %c0_i32, %arg1 : i32, i32, i32
  }
}

</mosaic_0001>

<llo_original>
// kernel: tile.78
$region0: #{tile.78}
  #allocation0 [shape = 's32[1]{0}', space=sflag, size = 0x4, scoped, tag = 'scoped memory for tile.78']
  %s0 = inlined_call_operand.vmem [shape: f32[16], index: 0, kind: input, shape index: {}]
  %s1 = inlined_call_operand.vmem [shape: f32[2,16], index: 1, kind: output, shape index: {}]
  // Predicated region
  $region2: #{tile.78} parent=0 // pred_check
    _
  $region3: #{tile.78} parent=0 // pred_check_branch
    %3 = sbr.rel (0) target = $region5
  $region4: #{tile.78} parent=0 // pred_region
    _
  $region5: #{tile.78} parent=0 // pred_fallthru
    _
  %v4 = vld [vmem:[%s0] ss:$0 sm:$0xff]
  %5 = vst [vmem:[%s1] sm:$0x3] %v4

// kernel: tile.0
$region0: #{tile.0}
  %s0 = inlined_call_operand.vmem [shape: f32[2,16], index: 0, kind: input, shape index: {}]
  %s1 = inlined_call_operand.vmem [shape: f32[32,1], index: 1, kind: output, shape index: {}]
  $region1: #{tile.0} parent=0
    #allocation0 [shape = 'u8[4096]{0}', space=vmem, size = 0x1000, scoped, tag = 'scoped mem for input reshape']
    %s3 = sshllo.u32 0, 2
    %v4 = vld [vmem:[%s0] sm:%s3]
    %5 = vst [vmem:[#allocation0] sm:%s3] %v4
    %v6 = vld [vmem:[#allocation0] sm:$0x3]
    %vm7 = vcmask 7168
    %8 = vst.msk [vmem:[%s1] ss:$16 sm:$0x3] %vm7, %v6
    %v9 = vld [vmem:[#allocation0] sm:$0x3]
    %10 = vrot.lane.b32.xlu0 %v9, 127
    %v11 = vpop.permute.xlu0 %10
    %vm12 = vcmask 7168
    %s13 = scalar_lea.vmem %s1, 1
    %14 = vst.msk [vmem:[%s13] ss:$16 sm:$0x3] %vm12, %v11
    %v15 = vld [vmem:[#allocation0] sm:$0x3]
    %16 = vrot.lane.b32.xlu0 %v15, 126
    %v17 = vpop.permute.xlu0 %16
    %vm18 = vcmask 7168
    %s19 = scalar_lea.vmem %s1, 2
    %20 = vst.msk [vmem:[%s19] ss:$16 sm:$0x3] %vm18, %v17
    %v21 = vld [vmem:[#allocation0] sm:$0x3]
    %22 = vrot.lane.b32.xlu0 %v21, 125
    %v23 = vpop.permute.xlu0 %22
    %vm24 = vcmask 7168
    %s25 = scalar_lea.vmem %s1, 3
    %26 = vst.msk [vmem:[%s25] ss:$16 sm:$0x3] %vm24, %v23
    %v27 = vld [vmem:[#allocation0] sm:$0x3]
    %28 = vrot.lane.b32.xlu0 %v27, 124
    %v29 = vpop.permute.xlu0 %28
    %vm30 = vcmask 7168
    %s31 = scalar_lea.vmem %s1, 4
    %32 = vst.msk [vmem:[%s31] ss:$16 sm:$0x3] %vm30, %v29
    %v33 = vld [vmem:[#allocation0] sm:$0x3]
    %34 = vrot.lane.b32.xlu0 %v33, 123
    %v35 = vpop.permute.xlu0 %34
    %vm36 = vcmask 7168
    %s37 = scalar_lea.vmem %s1, 5
    %38 = vst.msk [vmem:[%s37] ss:$16 sm:$0x3] %vm36, %v35
    %v39 = vld [vmem:[#allocation0] sm:$0x3]
    %40 = vrot.lane.b32.xlu0 %v39, 122
    %v41 = vpop.permute.xlu0 %40
    %vm42 = vcmask 7168
    %s43 = scalar_lea.vmem %s1, 6
    %44 = vst.msk [vmem:[%s43] ss:$16 sm:$0x3] %vm42, %v41
    %v45 = vld [vmem:[#allocation0] sm:$0x3]
    %46 = vrot.lane.b32.xlu0 %v45, 121
    %v47 = vpop.permute.xlu0 %46
    %vm48 = vcmask 7168
    %s49 = scalar_lea.vmem %s1, 7
    %50 = vst.msk [vmem:[%s49] ss:$16 sm:$0x3] %vm48, %v47
    %v51 = vld [vmem:[#allocation0] sm:$0x3]
    %52 = vrot.lane.b32.xlu0 %v51, 120
    %v53 = vpop.permute.xlu0 %52
    %vm54 = vcmask 7168
    %s55 = scalar_lea.vmem %s1, 8
    %56 = vst.msk [vmem:[%s55] ss:$16 sm:$0x3] %vm54, %v53
    %v57 = vld [vmem:[#allocation0] sm:$0x3]
    %58 = vrot.lane.b32.xlu0 %v57, 119
    %v59 = vpop.permute.xlu0 %58
    %vm60 = vcmask 7168
    %s61 = scalar_lea.vmem %s1, 9
    %62 = vst.msk [vmem:[%s61] ss:$16 sm:$0x3] %vm60, %v59
    %v63 = vld [vmem:[#allocation0] sm:$0x3]
    %64 = vrot.lane.b32.xlu0 %v63, 118
    %v65 = vpop.permute.xlu0 %64
    %vm66 = vcmask 7168
    %s67 = scalar_lea.vmem %s1, 10
    %68 = vst.msk [vmem:[%s67] ss:$16 sm:$0x3] %vm66, %v65
    %v69 = vld [vmem:[#allocation0] sm:$0x3]
    %70 = vrot.lane.b32.xlu0 %v69, 117
    %v71 = vpop.permute.xlu0 %70
    %vm72 = vcmask 7168
    %s73 = scalar_lea.vmem %s1, 11
    %74 = vst.msk [vmem:[%s73] ss:$16 sm:$0x3] %vm72, %v71
    %v75 = vld [vmem:[#allocation0] sm:$0x3]
    %76 = vrot.lane.b32.xlu0 %v75, 116
    %v77 = vpop.permute.xlu0 %76
    %vm78 = vcmask 7168
    %s79 = scalar_lea.vmem %s1, 12
    %80 = vst.msk [vmem:[%s79] ss:$16 sm:$0x3] %vm78, %v77
    %v81 = vld [vmem:[#allocation0] sm:$0x3]
    %82 = vrot.lane.b32.xlu0 %v81, 115
    %v83 = vpop.permute.xlu0 %82
    %vm84 = vcmask 7168
    %s85 = scalar_lea.vmem %s1, 13
    %86 = vst.msk [vmem:[%s85] ss:$16 sm:$0x3] %vm84, %v83
    %v87 = vld [vmem:[#allocation0] sm:$0x3]
    %88 = vrot.lane.b32.xlu0 %v87, 114
    %v89 = vpop.permute.xlu0 %88
    %vm90 = vcmask 7168
    %s91 = scalar_lea.vmem %s1, 14
    %92 = vst.msk [vmem:[%s91] ss:$16 sm:$0x3] %vm90, %v89
    %v93 = vld [vmem:[#allocation0] sm:$0x3]
    %94 = vrot.lane.b32.xlu0 %v93, 113
    %v95 = vpop.permute.xlu0 %94
    %vm96 = vcmask 7168
    %s97 = scalar_lea.vmem %s1, 15
    %98 = vst.msk [vmem:[%s97] ss:$16 sm:$0x3] %vm96, %v95

// kernel: _phase_decoder_impl.11
$region0: #{_phase_decoder_impl.11}
  #allocation0 [shape = 'u32[]', space=smem, size = 0x4, offset = 0x4, fixed_abs, tag = 'smem constant byte address 0x4 - core index']
  #allocation1 [shape = 'u32[144,128]{1,0:T(1,128)}', space=vmem, size = 0x12000, scoped, tag = 'internal scratch']
  %s0 = inlined_call_operand.vmem [shape: f32[2,16,256], index: 0, kind: input, shape index: {}]
  %s1 = inlined_call_operand.vmem [shape: f32[6,16,16], index: 1, kind: input, shape index: {}]
  %s2 = inlined_call_operand.vmem [shape: f32[16,1], index: 2, kind: input, shape index: {}]
  %s3 = inlined_call_operand.vmem [shape: f32[2,16,128], index: 3, kind: output, shape index: {}]
  %s4 = sld [smem:[#allocation0]]
  $region45: #{_phase_decoder_impl.11} parent=0
    _
  %s6 = ssub.s32 1, %s4
  %s7 = scalar_select 0, %s6, %s4
  loop: start=0, step=1, limit=4
  $region2: #{_phase_decoder_impl.11} parent=0 // loop_pre_header
    _
  $region3: #{_phase_decoder_impl.11} parent=0 // loop_header
    %s9 = sphi 0, %s13
    %p10 = scmp.ge.s32.totalorder %s9, 4
    %s16 = sphi 0, %s28
    %s17 = sphi 0, %s24
    %s18 = sphi 0, %s16
    %s19 = sphi 0, %s17
    %s20 = sphi 0, %s18
    %s21 = sphi 0, %s19
    %s31 = sphi 0, %s33
    %s34 = sphi 0, %s31
    %s35 = sphi 0, %s34
    %s51 = sphi 0, %s35
    %s55 = sphi 0, %s55
    %s57 = sphi 0, %s55
    %s58 = sphi 0, %s57
    %s72 = sphi 0, %s58
    %s76 = sphi 0, %s76
    %s78 = sphi 0, %s76
    %s79 = sphi 0, %s78
    %s93 = sphi 0, %s79
    %s101 = sphi 0, %s103
    %s104 = sphi 0, %s101
    %s105 = sphi 0, %s104
    %s121 = sphi 0, %s105
  $region4: #{_phase_decoder_impl.11} parent=0 // loop_header_branch
    %12 = sbr.rel (%p10) target = $region8
  $region5: #{_phase_decoder_impl.11} parent=0 // loop_body
    %s14 = ssub.s32 %s9, 1
    %s15 = ssub.s32 %s9, 2
    %s22 = sadd.s32 1, %s17
    %p23 = scmp.ge.s32.totalorder %s22, 1
    %s24 = scalar_select %p23, 0, %s22
    %s25 = sadd.s32 1, %s16
    %s26 = scalar_select %p23, %s25, %s16
    %p27 = scmp.ge.s32.totalorder %s26, 2
    %s28 = scalar_select %p27, 0, %s26
    %s29 = ssub.s32 %s16, %s28
    %p30 = scmp.eq.s32.totalorder %s29, 0
    %s32 = sadd.s32 %s31, 1
    %s33 = scalar_select %p30, %s31, %s32
    %p36 = pneg %p30
    %p37 = scmp.eq.s32.totalorder %s9, 1
    %p38 = por %p36, %p37
    %p39 = scmp.ne.s32.totalorder %s31, %s34
    %p40 = scmp.eq.s32.totalorder %s9, 0
    %p41 = por %p39, %p40
    %p42 = scmp.ne.s32.totalorder %s31, %s34
    %p43 = scmp.eq.s32.totalorder %s14, 1
    %p44 = por %p42, %p43
    %p45 = scmp.ne.s32.totalorder %s34, %s35
    %p46 = scmp.eq.s32.totalorder %s14, 0
    %p47 = por %p45, %p46
    %p48 = scmp.ne.s32.totalorder %s34, %s35
    %p49 = scmp.eq.s32.totalorder %s15, 1
    %p50 = por %p48, %p49
    %p52 = scmp.ne.s32.totalorder %s35, %s51
    %p53 = scmp.eq.s32.totalorder %s15, 0
    %p54 = por %p52, %p53
    %s56 = sadd.s32 %s55, 1
    %p59 = scmp.eq.s32.totalorder %s9, 1
    %p60 = scmp.ne.s32.totalorder %s55, %s57
    %p61 = scmp.eq.s32.totalorder %s9, 0
    %p62 = por %p60, %p61
    %p63 = scmp.ne.s32.totalorder %s55, %s57
    %p64 = scmp.eq.s32.totalorder %s14, 1
    %p65 = por %p63, %p64
    %p66 = scmp.ne.s32.totalorder %s57, %s58
    %p67 = scmp.eq.s32.totalorder %s14, 0
    %p68 = por %p66, %p67
    %p69 = scmp.ne.s32.totalorder %s57, %s58
    %p70 = scmp.eq.s32.totalorder %s15, 1
    %p71 = por %p69, %p70
    %p73 = scmp.ne.s32.totalorder %s58, %s72
    %p74 = scmp.eq.s32.totalorder %s15, 0
    %p75 = por %p73, %p74
    %s77 = sadd.s32 %s76, 1
    %p80 = scmp.eq.s32.totalorder %s9, 1
    %p81 = scmp.ne.s32.totalorder %s76, %s78
    %p82 = scmp.eq.s32.totalorder %s9, 0
    %p83 = por %p81, %p82
    %p84 = scmp.ne.s32.totalorder %s76, %s78
    %p85 = scmp.eq.s32.totalorder %s14, 1
    %p86 = por %p84, %p85
    %p87 = scmp.ne.s32.totalorder %s78, %s79
    %p88 = scmp.eq.s32.totalorder %s14, 0
    %p89 = por %p87, %p88
    %p90 = scmp.ne.s32.totalorder %s78, %s79
    %p91 = scmp.eq.s32.totalorder %s15, 1
    %p92 = por %p90, %p91
    %p94 = scmp.ne.s32.totalorder %s79, %s93
    %p95 = scmp.eq.s32.totalorder %s15, 0
    %p96 = por %p94, %p95
    %s97 = ssub.s32 %s16, %s28
    %s98 = ssub.s32 %s17, %s24
    %s99 = sor.u32 %s97, %s98
    %p100 = scmp.eq.s32.totalorder %s99, 0
    %s102 = sadd.s32 %s101, 1
    %s103 = scalar_select %p100, %s101, %s102
    %p106 = pneg %p100
    %p107 = scmp.eq.s32.totalorder %s9, 1
    %p108 = por %p106, %p107
    %p109 = scmp.ne.s32.totalorder %s101, %s104
    %p110 = scmp.eq.s32.totalorder %s9, 0
    %p111 = por %p109, %p110
    %p112 = scmp.ne.s32.totalorder %s101, %s104
    %p113 = scmp.eq.s32.totalorder %s14, 1
    %p114 = por %p112, %p113
    %p115 = scmp.ne.s32.totalorder %s104, %s105
    %p116 = scmp.eq.s32.totalorder %s14, 0
    %p117 = por %p115, %p116
    %p118 = scmp.ne.s32.totalorder %s104, %s105
    %p119 = scmp.eq.s32.totalorder %s15, 1
    %p120 = por %p118, %p119
    %p122 = scmp.ne.s32.totalorder %s105, %s121
    %p123 = scmp.eq.s32.totalorder %s15, 0
    %p124 = por %p122, %p123
    %p125 = scmp.le.s32.totalorder 1, %s9
    %p126 = scmp.lt.s32.totalorder %s9, 3
    %p127 = pnand %p125, %p126
    %p128 = pneg %p127
    // Predicated region
    $region9: #{_phase_decoder_impl.11} parent=5 // pred_check
      _
    $region10: #{_phase_decoder_impl.11} parent=5 // pred_check_branch
      %130 = sbr.rel (%p127) target = $region12
    $region11: #{_phase_decoder_impl.11} parent=5 // pred_region
      %s131 = ssub.s32 %s9, 1
      // Predicated region
      $region13: #{_phase_decoder_impl.11} parent=11 // pred_check
        %p132 = pneg %p68
      $region14: #{_phase_decoder_impl.11} parent=11 // pred_check_branch
        %134 = sbr.rel (%p132) target = $region16
      $region15: #{_phase_decoder_impl.11} parent=11 // pred_region
        _
      $region16: #{_phase_decoder_impl.11} parent=11 // pred_fallthru
        _
      // Predicated region
      $region17: #{_phase_decoder_impl.11} parent=11 // pred_check
        %p135 = pneg %p89
      $region18: #{_phase_decoder_impl.11} parent=11 // pred_check_branch
        %137 = sbr.rel (%p135) target = $region20
      $region19: #{_phase_decoder_impl.11} parent=11 // pred_region
        _
      $region20: #{_phase_decoder_impl.11} parent=11 // pred_fallthru
        _
    $region12: #{_phase_decoder_impl.11} parent=5 // pred_fallthru
      _
    %p138 = scmp.lt.s32.totalorder %s9, 2
    // Predicated region
    $region21: #{_phase_decoder_impl.11} parent=5 // pred_check
      %p139 = pneg %p138
    $region22: #{_phase_decoder_impl.11} parent=5 // pred_check_branch
      %141 = sbr.rel (%p139) target = $region24
    $region23: #{_phase_decoder_impl.11} parent=5 // pred_region
      // Predicated region
      $region25: #{_phase_decoder_impl.11} parent=23 // pred_check
        %p142 = pneg %p41
      $region26: #{_phase_decoder_impl.11} parent=23 // pred_check_branch
        %144 = sbr.rel (%p142) target = $region28
      $region27: #{_phase_decoder_impl.11} parent=23 // pred_region
        %p145 = scmp.lt.s32.totalorder %s16, 1
        %s146 = scalar_select %p145, %s16, 1
        %s147 = smul.addr %s146, 4
        %s148 = smul.addr %s147, 8
        %s149 = scalar_lea.vmem %s0, %s148
      $region28: #{_phase_decoder_impl.11} parent=23 // pred_fallthru
        _
    $region24: #{_phase_decoder_impl.11} parent=5 // pred_fallthru
      _
    %p150 = scmp.le.s32.totalorder 1, %s9
    %p151 = scmp.lt.s32.totalorder %s9, 3
    %p152 = pnand %p150, %p151
    %p153 = pneg %p152
    // Predicated region
    $region29: #{_phase_decoder_impl.11} parent=5 // pred_check
      _
    $region30: #{_phase_decoder_impl.11} parent=5 // pred_check_branch
      %155 = sbr.rel (%p152) target = $region32
    $region31: #{_phase_decoder_impl.11} parent=5 // pred_region
      %s156 = ssub.s32 %s9, 1
      %p157 = scmp.lt.s32.totalorder %s18, 1
      %s158 = scalar_select %p157, %s18, 1
      %s159 = smul.addr %s158, 4
      %s160 = smul.addr %s159, 8
      %s161 = scalar_lea.vmem %s0, %s160
      %p162 = pneg %p47
      %p163 = pneg %p44
      %p164 = pneg %p68
      %p165 = pneg %p65
      %p166 = pneg %p89
      %p167 = pneg %p86
      %p168 = pneg %p117
      %p169 = pneg %p114
      %p170 = scmp.lt.s32.totalorder %s18, 1
      %s171 = scalar_select %p170, %s18, 1
      %p172 = scmp.lt.s32.totalorder %s19, 0
      %s173 = scalar_select %p172, %s19, 0
      %s174 = smul.addr %s171, 2
      %s175 = sadd.s32 %s173, %s174
      %s176 = smul.addr %s175, 8
      %s177 = scalar_lea.vmem %s3, %s176
      %p178 = scmp.lt.s32.totalorder %s18, 1
      %s179 = scalar_select %p178, %s18, 1
      %s180 = smul.addr %s179, 4
      %s181 = smul.addr %s180, 8
      %s182 = scalar_lea.vmem %s0, %s181
      %p183 = scmp.lt.s32.totalorder %s18, 1
      %s184 = scalar_select %p183, %s18, 1
      %p185 = scmp.lt.s32.totalorder %s19, 0
      %s186 = scalar_select %p185, %s19, 0
      %s187 = smul.addr %s184, 2
      %s188 = sadd.s32 %s186, %s187
      %s189 = smul.addr %s188, 8
      %s190 = scalar_lea.vmem %s3, %s189
      %s191 = smul.u32 %s19, 128
      %s192 = sshra.s32 %s191, 7
      %s193 = sand.u32 %s191, 127
      %s194 = smul.addr %s192, 8
      %s195 = scalar_lea.vmem %s182, %s194
      %v196 = vld [vmem:[%s195] sm:$0xff]
      %v197 = vld [vmem:[%s195 + $0x8] sm:$0xff]
      %v198 = vld [vmem:[%s195 + $0x10] sm:$0xff]
      %v199 = vld [vmem:[%s195 + $0x18] sm:$0xff]
      %v200 = vld [vmem:[%s1] sm:$0xff]
      %v201 = vld [vmem:[%s1 + $0x8] sm:$0xff]
      %s202 = scalar_lea.vmem %s1, 16
      %v203 = vld [vmem:[%s202] sm:$0xff]
      %v204 = vld [vmem:[%s202 + $0x8] sm:$0xff]
      %209 = vrot.lane.b32.xlu0 %v196, 127
      %v210 = vpop.permute.xlu0 %209
      %211 = vrot.lane.b32.xlu0 %v197, 127
      %v212 = vpop.permute.xlu0 %211
      %213 = vrot.lane.b32.xlu0 %v198, 127
      %v214 = vpop.permute.xlu0 %213
      %215 = vrot.lane.b32.xlu0 %v199, 127
      %v216 = vpop.permute.xlu0 %215
      %vm217 = vcmask 1039360
      %v218 = vsel %vm217, %v210, %v212
      %v219 = vsel %vm217, %v214, %v216
      %vm222 = vcmask 130048
      %v224 = vsel %vm222, %v203, 0
      %v227 = vsel %vm222, %v204, 0
      %229 = vmatprep.subr.mxu0 0.0
      %230 = vmatpush1.msra.mxu0 %v218
      %231 = vmatprep.subr.mxu0 0.0
      %232 = vmatpush1.msra.mxu0 %v219
      %233 = vmatprep.subr.mxu0 0.0
      %234 = vmatpush1.msra.mxu0 0.0
      %235 = vmatprep.subr.mxu0 0.0
      %236 = vmatpush1.msra.mxu0 0.0
      %237 = vmatprep.subr.mxu0 0.0
      %238 = vmatpush1.msra.mxu0 0.0
      %239 = vmatprep.subr.mxu0 0.0
      %240 = vmatpush1.msra.mxu0 0.0
      %241 = vmatprep.subr.mxu0 0.0
      %242 = vmatpush1.msra.mxu0 0.0
      %243 = vmatprep.subr.mxu0 0.0
      %244 = vmatpush1.msra.mxu0 0.0
      %245 = vmatprep.subr.mxu0 0.0
      %246 = vmatpush1.msra.mxu0 0.0
      %247 = vmatprep.subr.mxu0 0.0
      %248 = vmatpush1.msra.mxu0 0.0
      %249 = vmatprep.subr.mxu0 0.0
      %250 = vmatpush1.msra.mxu0 0.0
      %251 = vmatprep.subr.mxu0 0.0
      %252 = vmatpush1.msra.mxu0 0.0
      %253 = vmatprep.subr.mxu0 0.0
      %254 = vmatpush1.msra.mxu0 0.0
      %255 = vmatprep.subr.mxu0 0.0
      %256 = vmatpush1.msra.mxu0 0.0
      %257 = vmatprep.subr.mxu0 0.0
      %258 = vmatpush1.msra.mxu0 0.0
      %259 = vmatprep.subr.mxu0 0.0
      %260 = vmatpush1.msra.mxu0 0.0
      %261 = vmatprep.subr.mxu0 0.0
      %262 = vmatpush1.msra.mxu0 0.0
      %263 = vmatprep.subr.mxu0 0.0
      %264 = vmatpush1.msra.mxu0 0.0
      %265 = vmatprep.subr.mxu0 0.0
      %266 = vmatpush1.msra.mxu0 0.0
      %267 = vmatprep.subr.mxu0 0.0
      %268 = vmatpush1.msra.mxu0 0.0
      %269 = vmatprep.subr.mxu0 0.0
      %270 = vmatpush1.msra.mxu0 0.0
      %271 = vmatprep.subr.mxu0 0.0
      %272 = vmatpush1.msra.mxu0 0.0
      %273 = vmatprep.subr.mxu0 0.0
      %274 = vmatpush1.msra.mxu0 0.0
      %275 = vmatprep.subr.mxu0 0.0
      %276 = vmatpush1.msra.mxu0 0.0
      %277 = vmatprep.subr.mxu0 0.0
      %278 = vmatpush1.msra.mxu0 0.0
      %279 = vmatprep.subr.mxu0 0.0
      %280 = vmatpush1.msra.mxu0 0.0
      %281 = vmatprep.subr.mxu0 0.0
      %282 = vmatpush1.msra.mxu0 0.0
      %283 = vmatprep.subr.mxu0 0.0
      %284 = vmatpush1.msra.mxu0 0.0
      %285 = vmatprep.subr.mxu0 0.0
      %286 = vmatpush1.msra.mxu0 0.0
      %287 = vmatprep.subr.mxu0 0.0
      %288 = vmatpush1.msra.mxu0 0.0
      %289 = vmatprep.subr.mxu0 0.0
      %290 = vmatpush1.msra.mxu0 0.0
      %291 = vmatprep.subr.mxu0 0.0
      %292 = vmatpush1.msra.mxu0 0.0
      %293 = vmatprep.mubr.f32.mxu0 0.0
      %294 = vmatmul.mubr.f32.gmra.mrb[0].mxu0 %v224
      %v295 = vpop.f32.mrb[0].mxu0
      %v296 = vadd.f32 0.0, %v295
      %v297 = vpop.f32.mrb[0].mxu0
      %298 = vmatprep.mubr.f32.mxu0 0.0
      %299 = vmatmul.mubr.f32.gmra.mrb[0].mxu0 %v227
      %v300 = vpop.f32.mrb[0].mxu0
      %v301 = vadd.f32 0.0, %v300
      %v302 = vpop.f32.mrb[0].mxu0
      %303 = vdwg.mxu0
      %v305 = vsel %vm222, %v200, 0
      %v308 = vsel %vm222, %v201, 0
      %310 = vmatprep.subr.mxu0 0.0
      %311 = vmatpush1.msra.mxu0 %v196
      %312 = vmatprep.subr.mxu0 0.0
      %313 = vmatpush1.msra.mxu0 %v198
      %314 = vmatprep.subr.mxu0 0.0
      %315 = vmatpush1.msra.mxu0 0.0
      %316 = vmatprep.subr.mxu0 0.0
      %317 = vmatpush1.msra.mxu0 0.0
      %318 = vmatprep.subr.mxu0 0.0
      %319 = vmatpush1.msra.mxu0 0.0
      %320 = vmatprep.subr.mxu0 0.0
      %321 = vmatpush1.msra.mxu0 0.0
      %322 = vmatprep.subr.mxu0 0.0
      %323 = vmatpush1.msra.mxu0 0.0
      %324 = vmatprep.subr.mxu0 0.0
      %325 = vmatpush1.msra.mxu0 0.0
      %326 = vmatprep.subr.mxu0 0.0
      %327 = vmatpush1.msra.mxu0 0.0
      %328 = vmatprep.subr.mxu0 0.0
      %329 = vmatpush1.msra.mxu0 0.0
      %330 = vmatprep.subr.mxu0 0.0
      %331 = vmatpush1.msra.mxu0 0.0
      %332 = vmatprep.subr.mxu0 0.0
      %333 = vmatpush1.msra.mxu0 0.0
      %334 = vmatprep.subr.mxu0 0.0
      %335 = vmatpush1.msra.mxu0 0.0
      %336 = vmatprep.subr.mxu0 0.0
      %337 = vmatpush1.msra.mxu0 0.0
      %338 = vmatprep.subr.mxu0 0.0
      %339 = vmatpush1.msra.mxu0 0.0
      %340 = vmatprep.subr.mxu0 0.0
      %341 = vmatpush1.msra.mxu0 0.0
      %342 = vmatprep.subr.mxu0 0.0
      %343 = vmatpush1.msra.mxu0 0.0
      %344 = vmatprep.subr.mxu0 0.0
      %345 = vmatpush1.msra.mxu0 0.0
      %346 = vmatprep.subr.mxu0 0.0
      %347 = vmatpush1.msra.mxu0 0.0
      %348 = vmatprep.subr.mxu0 0.0
      %349 = vmatpush1.msra.mxu0 0.0
      %350 = vmatprep.subr.mxu0 0.0
      %351 = vmatpush1.msra.mxu0 0.0
      %352 = vmatprep.subr.mxu0 0.0
      %353 = vmatpush1.msra.mxu0 0.0
      %354 = vmatprep.subr.mxu0 0.0
      %355 = vmatpush1.msra.mxu0 0.0
      %356 = vmatprep.subr.mxu0 0.0
      %357 = vmatpush1.msra.mxu0 0.0
      %358 = vmatprep.subr.mxu0 0.0
      %359 = vmatpush1.msra.mxu0 0.0
      %360 = vmatprep.subr.mxu0 0.0
      %361 = vmatpush1.msra.mxu0 0.0
      %362 = vmatprep.subr.mxu0 0.0
      %363 = vmatpush1.msra.mxu0 0.0
      %364 = vmatprep.subr.mxu0 0.0
      %365 = vmatpush1.msra.mxu0 0.0
      %366 = vmatprep.subr.mxu0 0.0
      %367 = vmatpush1.msra.mxu0 0.0
      %368 = vmatprep.subr.mxu0 0.0
      %369 = vmatpush1.msra.mxu0 0.0
      %370 = vmatprep.subr.mxu0 0.0
      %371 = vmatpush1.msra.mxu0 0.0
      %372 = vmatprep.subr.mxu0 0.0
      %373 = vmatpush1.msra.mxu0 0.0
      %374 = vmatprep.mubr.f32.mxu0 0.0
      %375 = vmatmul.mubr.f32.gmra.mrb[0].mxu0 %v305
      %v376 = vpop.f32.mrb[0].mxu0
      %v377 = vadd.f32 %v296, %v376
      %v378 = vpop.f32.mrb[0].mxu0
      %379 = vmatprep.mubr.f32.mxu0 0.0
      %380 = vmatmul.mubr.f32.gmra.mrb[0].mxu0 %v308
      %v381 = vpop.f32.mrb[0].mxu0
      %v382 = vadd.f32 %v301, %v381
      %v383 = vpop.f32.mrb[0].mxu0
      %384 = vdwg.mxu0
      %s385 = scalar_lea.vmem %s1, 32
      %v386 = vld [vmem:[%s385] sm:$0xff]
      %v387 = vld [vmem:[%s385 + $0x8] sm:$0xff]
      %388 = vrot.lane.b32.xlu0 %v196, 126
      %v389 = vpop.permute.xlu0 %388
      %390 = vrot.lane.b32.xlu0 %v197, 126
      %v391 = vpop.permute.xlu0 %390
      %392 = vrot.lane.b32.xlu0 %v198, 126
      %v393 = vpop.permute.xlu0 %392
      %394 = vrot.lane.b32.xlu0 %v199, 126
      %v395 = vpop.permute.xlu0 %394
      %vm396 = vcmask 1031168
      %v397 = vsel %vm396, %v389, %v391
      %v398 = vsel %vm396, %v393, %v395
      %v402 = vsel %vm222, %v386, 0
      %v405 = vsel %vm222, %v387, 0
      %407 = vmatprep.subr.mxu0 0.0
      %408 = vmatpush1.msra.mxu0 %v397
      %409 = vmatprep.subr.mxu0 0.0
      %410 = vmatpush1.msra.mxu0 %v398
      %411 = vmatprep.subr.mxu0 0.0
      %412 = vmatpush1.msra.mxu0 0.0
      %413 = vmatprep.subr.mxu0 0.0
      %414 = vmatpush1.msra.mxu0 0.0
      %415 = vmatprep.subr.mxu0 0.0
      %416 = vmatpush1.msra.mxu0 0.0
      %417 = vmatprep.subr.mxu0 0.0
      %418 = vmatpush1.msra.mxu0 0.0
      %419 = vmatprep.subr.mxu0 0.0
      %420 = vmatpush1.msra.mxu0 0.0
      %421 = vmatprep.subr.mxu0 0.0
      %422 = vmatpush1.msra.mxu0 0.0
      %423 = vmatprep.subr.mxu0 0.0
      %424 = vmatpush1.msra.mxu0 0.0
      %425 = vmatprep.subr.mxu0 0.0
      %426 = vmatpush1.msra.mxu0 0.0
      %427 = vmatprep.subr.mxu0 0.0
      %428 = vmatpush1.msra.mxu0 0.0
      %429 = vmatprep.subr.mxu0 0.0
      %430 = vmatpush1.msra.mxu0 0.0
      %431 = vmatprep.subr.mxu0 0.0
      %432 = vmatpush1.msra.mxu0 0.0
      %433 = vmatprep.subr.mxu0 0.0
      %434 = vmatpush1.msra.mxu0 0.0
      %435 = vmatprep.subr.mxu0 0.0
      %436 = vmatpush1.msra.mxu0 0.0
      %437 = vmatprep.subr.mxu0 0.0
      %438 = vmatpush1.msra.mxu0 0.0
      %439 = vmatprep.subr.mxu0 0.0
      %440 = vmatpush1.msra.mxu0 0.0
      %441 = vmatprep.subr.mxu0 0.0
      %442 = vmatpush1.msra.mxu0 0.0
      %443 = vmatprep.subr.mxu0 0.0
      %444 = vmatpush1.msra.mxu0 0.0
      %445 = vmatprep.subr.mxu0 0.0
      %446 = vmatpush1.msra.mxu0 0.0
      %447 = vmatprep.subr.mxu0 0.0
      %448 = vmatpush1.msra.mxu0 0.0
      %449 = vmatprep.subr.mxu0 0.0
      %450 = vmatpush1.msra.mxu0 0.0
      %451 = vmatprep.subr.mxu0 0.0
      %452 = vmatpush1.msra.mxu0 0.0
      %453 = vmatprep.subr.mxu0 0.0
      %454 = vmatpush1.msra.mxu0 0.0
      %455 = vmatprep.subr.mxu0 0.0
      %456 = vmatpush1.msra.mxu0 0.0
      %457 = vmatprep.subr.mxu0 0.0
      %458 = vmatpush1.msra.mxu0 0.0
      %459 = vmatprep.subr.mxu0 0.0
      %460 = vmatpush1.msra.mxu0 0.0
      %461 = vmatprep.subr.mxu0 0.0
      %462 = vmatpush1.msra.mxu0 0.0
      %463 = vmatprep.subr.mxu0 0.0
      %464 = vmatpush1.msra.mxu0 0.0
      %465 = vmatprep.subr.mxu0 0.0
      %466 = vmatpush1.msra.mxu0 0.0
      %467 = vmatprep.subr.mxu0 0.0
      %468 = vmatpush1.msra.mxu0 0.0
      %469 = vmatprep.subr.mxu0 0.0
      %470 = vmatpush1.msra.mxu0 0.0
      %471 = vmatprep.mubr.f32.mxu0 0.0
      %472 = vmatmul.mubr.f32.gmra.mrb[0].mxu0 %v402
      %v473 = vpop.f32.mrb[0].mxu0
      %v474 = vadd.f32 0.0, %v473
      %v475 = vpop.f32.mrb[0].mxu0
      %476 = vmatprep.mubr.f32.mxu0 0.0
      %477 = vmatmul.mubr.f32.gmra.mrb[0].mxu0 %v405
      %v478 = vpop.f32.mrb[0].mxu0
      %v479 = vadd.f32 0.0, %v478
      %v480 = vpop.f32.mrb[0].mxu0
      %481 = vdwg.mxu0
      %v482 = vadd.f32 %v377, %v474
      %v483 = vadd.f32 %v382, %v479
      %s484 = scalar_lea.vmem %s1, 48
      %v485 = vld [vmem:[%s484] sm:$0xff]
      %v486 = vld [vmem:[%s484 + $0x8] sm:$0xff]
      %487 = vrot.lane.b32.xlu0 %v196, 117
      %v488 = vpop.permute.xlu0 %487
      %489 = vrot.lane.b32.xlu0 %v197, 117
      %v490 = vpop.permute.xlu0 %489
      %491 = vrot.lane.b32.xlu0 %v198, 117
      %v492 = vpop.permute.xlu0 %491
      %493 = vrot.lane.b32.xlu0 %v199, 117
      %v494 = vpop.permute.xlu0 %493
      %vm495 = vcmask 957440
      %v496 = vsel %vm495, %v488, %v490
      %v497 = vsel %vm495, %v492, %v494
      %v501 = vsel %vm222, %v485, 0
      %v504 = vsel %vm222, %v486, 0
      %506 = vmatprep.subr.mxu0 0.0
      %507 = vmatpush1.msra.mxu0 %v496
      %508 = vmatprep.subr.mxu0 0.0
      %509 = vmatpush1.msra.mxu0 %v497
      %510 = vmatprep.subr.mxu0 0.0
      %511 = vmatpush1.msra.mxu0 0.0
      %512 = vmatprep.subr.mxu0 0.0
      %513 = vmatpush1.msra.mxu0 0.0
      %514 = vmatprep.subr.mxu0 0.0
      %515 = vmatpush1.msra.mxu0 0.0
      %516 = vmatprep.subr.mxu0 0.0
      %517 = vmatpush1.msra.mxu0 0.0
      %518 = vmatprep.subr.mxu0 0.0
      %519 = vmatpush1.msra.mxu0 0.0
      %520 = vmatprep.subr.mxu0 0.0
      %521 = vmatpush1.msra.mxu0 0.0
      %522 = vmatprep.subr.mxu0 0.0
      %523 = vmatpush1.msra.mxu0 0.0
      %524 = vmatprep.subr.mxu0 0.0
      %525 = vmatpush1.msra.mxu0 0.0
      %526 = vmatprep.subr.mxu0 0.0
      %527 = vmatpush1.msra.mxu0 0.0
      %528 = vmatprep.subr.mxu0 0.0
      %529 = vmatpush1.msra.mxu0 0.0
      %530 = vmatprep.subr.mxu0 0.0
      %531 = vmatpush1.msra.mxu0 0.0
      %532 = vmatprep.subr.mxu0 0.0
      %533 = vmatpush1.msra.mxu0 0.0
      %534 = vmatprep.subr.mxu0 0.0
      %535 = vmatpush1.msra.mxu0 0.0
      %536 = vmatprep.subr.mxu0 0.0
      %537 = vmatpush1.msra.mxu0 0.0
      %538 = vmatprep.subr.mxu0 0.0
      %539 = vmatpush1.msra.mxu0 0.0
      %540 = vmatprep.subr.mxu0 0.0
      %541 = vmatpush1.msra.mxu0 0.0
      %542 = vmatprep.subr.mxu0 0.0
      %543 = vmatpush1.msra.mxu0 0.0
      %544 = vmatprep.subr.mxu0 0.0
      %545 = vmatpush1.msra.mxu0 0.0
      %546 = vmatprep.subr.mxu0 0.0
      %547 = vmatpush1.msra.mxu0 0.0
      %548 = vmatprep.subr.mxu0 0.0
      %549 = vmatpush1.msra.mxu0 0.0
      %550 = vmatprep.subr.mxu0 0.0
      %551 = vmatpush1.msra.mxu0 0.0
      %552 = vmatprep.subr.mxu0 0.0
      %553 = vmatpush1.msra.mxu0 0.0
      %554 = vmatprep.subr.mxu0 0.0
      %555 = vmatpush1.msra.mxu0 0.0
      %556 = vmatprep.subr.mxu0 0.0
      %557 = vmatpush1.msra.mxu0 0.0
      %558 = vmatprep.subr.mxu0 0.0
      %559 = vmatpush1.msra.mxu0 0.0
      %560 = vmatprep.subr.mxu0 0.0
      %561 = vmatpush1.msra.mxu0 0.0
      %562 = vmatprep.subr.mxu0 0.0
      %563 = vmatpush1.msra.mxu0 0.0
      %564 = vmatprep.subr.mxu0 0.0
      %565 = vmatpush1.msra.mxu0 0.0
      %566 = vmatprep.subr.mxu0 0.0
      %567 = vmatpush1.msra.mxu0 0.0
      %568 = vmatprep.subr.mxu0 0.0
      %569 = vmatpush1.msra.mxu0 0.0
      %570 = vmatprep.mubr.f32.mxu0 0.0
      %571 = vmatmul.mubr.f32.gmra.mrb[0].mxu0 %v501
      %v572 = vpop.f32.mrb[0].mxu0
      %v573 = vadd.f32 0.0, %v572
      %v574 = vpop.f32.mrb[0].mxu0
      %575 = vmatprep.mubr.f32.mxu0 0.0
      %576 = vmatmul.mubr.f32.gmra.mrb[0].mxu0 %v504
      %v577 = vpop.f32.mrb[0].mxu0
      %v578 = vadd.f32 0.0, %v577
      %v579 = vpop.f32.mrb[0].mxu0
      %580 = vdwg.mxu0
      %v581 = vadd.f32 %v482, %v573
      %v582 = vadd.f32 %v483, %v578
      %s583 = scalar_lea.vmem %s1, 64
      %v584 = vld [vmem:[%s583] sm:$0xff]
      %v585 = vld [vmem:[%s583 + $0x8] sm:$0xff]
      %586 = vrot.lane.b32.xlu0 %v196, 116
      %v587 = vpop.permute.xlu0 %586
      %588 = vrot.lane.b32.xlu0 %v197, 116
      %v589 = vpop.permute.xlu0 %588
      %590 = vrot.lane.b32.xlu0 %v198, 116
      %v591 = vpop.permute.xlu0 %590
      %592 = vrot.lane.b32.xlu0 %v199, 116
      %v593 = vpop.permute.xlu0 %592
      %vm594 = vcmask 949248
      %v595 = vsel %vm594, %v587, %v589
      %v596 = vsel %vm594, %v591, %v593
      %v600 = vsel %vm222, %v584, 0
      %v603 = vsel %vm222, %v585, 0
      %605 = vmatprep.subr.mxu0 0.0
      %606 = vmatpush1.msra.mxu0 %v595
      %607 = vmatprep.subr.mxu0 0.0
      %608 = vmatpush1.msra.mxu0 %v596
      %609 = vmatprep.subr.mxu0 0.0
      %610 = vmatpush1.msra.mxu0 0.0
      %611 = vmatprep.subr.mxu0 0.0
      %612 = vmatpush1.msra.mxu0 0.0
      %613 = vmatprep.subr.mxu0 0.0
      %614 = vmatpush1.msra.mxu0 0.0
      %615 = vmatprep.subr.mxu0 0.0
      %616 = vmatpush1.msra.mxu0 0.0
      %617 = vmatprep.subr.mxu0 0.0
      %618 = vmatpush1.msra.mxu0 0.0
      %619 = vmatprep.subr.mxu0 0.0
      %620 = vmatpush1.msra.mxu0 0.0
      %621 = vmatprep.subr.mxu0 0.0
      %622 = vmatpush1.msra.mxu0 0.0
      %623 = vmatprep.subr.mxu0 0.0
      %624 = vmatpush1.msra.mxu0 0.0
      %625 = vmatprep.subr.mxu0 0.0
      %626 = vmatpush1.msra.mxu0 0.0
      %627 = vmatprep.subr.mxu0 0.0
      %628 = vmatpush1.msra.mxu0 0.0
      %629 = vmatprep.subr.mxu0 0.0
      %630 = vmatpush1.msra.mxu0 0.0
      %631 = vmatprep.subr.mxu0 0.0
      %632 = vmatpush1.msra.mxu0 0.0
      %633 = vmatprep.subr.mxu0 0.0
      %634 = vmatpush1.msra.mxu0 0.0
      %635 = vmatprep.subr.mxu0 0.0
      %636 = vmatpush1.msra.mxu0 0.0
      %637 = vmatprep.subr.mxu0 0.0
      %638 = vmatpush1.msra.mxu0 0.0
      %639 = vmatprep.subr.mxu0 0.0
      %640 = vmatpush1.msra.mxu0 0.0
      %641 = vmatprep.subr.mxu0 0.0
      %642 = vmatpush1.msra.mxu0 0.0
      %643 = vmatprep.subr.mxu0 0.0
      %644 = vmatpush1.msra.mxu0 0.0
      %645 = vmatprep.subr.mxu0 0.0
      %646 = vmatpush1.msra.mxu0 0.0
      %647 = vmatprep.subr.mxu0 0.0
      %648 = vmatpush1.msra.mxu0 0.0
      %649 = vmatprep.subr.mxu0 0.0
      %650 = vmatpush1.msra.mxu0 0.0
      %651 = vmatprep.subr.mxu0 0.0
      %652 = vmatpush1.msra.mxu0 0.0
      %653 = vmatprep.subr.mxu0 0.0
      %654 = vmatpush1.msra.mxu0 0.0
      %655 = vmatprep.subr.mxu0 0.0
      %656 = vmatpush1.msra.mxu0 0.0
      %657 = vmatprep.subr.mxu0 0.0
      %658 = vmatpush1.msra.mxu0 0.0
      %659 = vmatprep.subr.mxu0 0.0
      %660 = vmatpush1.msra.mxu0 0.0
      %661 = vmatprep.subr.mxu0 0.0
      %662 = vmatpush1.msra.mxu0 0.0
      %663 = vmatprep.subr.mxu0 0.0
      %664 = vmatpush1.msra.mxu0 0.0
      %665 = vmatprep.subr.mxu0 0.0
      %666 = vmatpush1.msra.mxu0 0.0
      %667 = vmatprep.subr.mxu0 0.0
      %668 = vmatpush1.msra.mxu0 0.0
      %669 = vmatprep.mubr.f32.mxu0 0.0
      %670 = vmatmul.mubr.f32.gmra.mrb[0].mxu0 %v600
      %v671 = vpop.f32.mrb[0].mxu0
      %v672 = vadd.f32 0.0, %v671
      %v673 = vpop.f32.mrb[0].mxu0
      %674 = vmatprep.mubr.f32.mxu0 0.0
      %675 = vmatmul.mubr.f32.gmra.mrb[0].mxu0 %v603
      %v676 = vpop.f32.mrb[0].mxu0
      %v677 = vadd.f32 0.0, %v676
      %v678 = vpop.f32.mrb[0].mxu0
      %679 = vdwg.mxu0
      %v680 = vadd.f32 %v581, %v672
      %v681 = vadd.f32 %v582, %v677
      %s682 = scalar_lea.vmem %s1, 80
      %v683 = vld [vmem:[%s682] sm:$0xff]
      %v684 = vld [vmem:[%s682 + $0x8] sm:$0xff]
      %685 = vrot.lane.b32.xlu0 %v196, 115
      %v686 = vpop.permute.xlu0 %685
      %687 = vrot.lane.b32.xlu0 %v197, 115
      %v688 = vpop.permute.xlu0 %687
      %689 = vrot.lane.b32.xlu0 %v198, 115
      %v690 = vpop.permute.xlu0 %689
      %691 = vrot.lane.b32.xlu0 %v199, 115
      %v692 = vpop.permute.xlu0 %691
      %vm693 = vcmask 941056
      %v694 = vsel %vm693, %v686, %v688
      %v695 = vsel %vm693, %v690, %v692
      %v699 = vsel %vm222, %v683, 0
      %v702 = vsel %vm222, %v684, 0
      %704 = vmatprep.subr.mxu0 0.0
      %705 = vmatpush1.msra.mxu0 %v694
      %706 = vmatprep.subr.mxu0 0.0
      %707 = vmatpush1.msra.mxu0 %v695
      %708 = vmatprep.subr.mxu0 0.0
      %709 = vmatpush1.msra.mxu0 0.0
      %710 = vmatprep.subr.mxu0 0.0
      %711 = vmatpush1.msra.mxu0 0.0
      %712 = vmatprep.subr.mxu0 0.0
      %713 = vmatpush1.msra.mxu0 0.0
      %714 = vmatprep.subr.mxu0 0.0
      %715 = vmatpush1.msra.mxu0 0.0
      %716 = vmatprep.subr.mxu0 0.0
      %717 = vmatpush1.msra.mxu0 0.0
      %718 = vmatprep.subr.mxu0 0.0
      %719 = vmatpush1.msra.mxu0 0.0
      %720 = vmatprep.subr.mxu0 0.0
      %721 = vmatpush1.msra.mxu0 0.0
      %722 = vmatprep.subr.mxu0 0.0
      %723 = vmatpush1.msra.mxu0 0.0
      %724 = vmatprep.subr.mxu0 0.0
      %725 = vmatpush1.msra.mxu0 0.0
      %726 = vmatprep.subr.mxu0 0.0
      %727 = vmatpush1.msra.mxu0 0.0
      %728 = vmatprep.subr.mxu0 0.0
      %729 = vmatpush1.msra.mxu0 0.0
      %730 = vmatprep.subr.mxu0 0.0
      %731 = vmatpush1.msra.mxu0 0.0
      %732 = vmatprep.subr.mxu0 0.0
      %733 = vmatpush1.msra.mxu0 0.0
      %734 = vmatprep.subr.mxu0 0.0
      %735 = vmatpush1.msra.mxu0 0.0
      %736 = vmatprep.subr.mxu0 0.0
      %737 = vmatpush1.msra.mxu0 0.0
      %738 = vmatprep.subr.mxu0 0.0
      %739 = vmatpush1.msra.mxu0 0.0
      %740 = vmatprep.subr.mxu0 0.0
      %741 = vmatpush1.msra.mxu0 0.0
      %742 = vmatprep.subr.mxu0 0.0
      %743 = vmatpush1.msra.mxu0 0.0
      %744 = vmatprep.subr.mxu0 0.0
      %745 = vmatpush1.msra.mxu0 0.0
      %746 = vmatprep.subr.mxu0 0.0
      %747 = vmatpush1.msra.mxu0 0.0
      %748 = vmatprep.subr.mxu0 0.0
      %749 = vmatpush1.msra.mxu0 0.0
      %750 = vmatprep.subr.mxu0 0.0
      %751 = vmatpush1.msra.mxu0 0.0
      %752 = vmatprep.subr.mxu0 0.0
      %753 = vmatpush1.msra.mxu0 0.0
      %754 = vmatprep.subr.mxu0 0.0
      %755 = vmatpush1.msra.mxu0 0.0
      %756 = vmatprep.subr.mxu0 0.0
      %757 = vmatpush1.msra.mxu0 0.0
      %758 = vmatprep.subr.mxu0 0.0
      %759 = vmatpush1.msra.mxu0 0.0
      %760 = vmatprep.subr.mxu0 0.0
      %761 = vmatpush1.msra.mxu0 0.0
      %762 = vmatprep.subr.mxu0 0.0
      %763 = vmatpush1.msra.mxu0 0.0
      %764 = vmatprep.subr.mxu0 0.0
      %765 = vmatpush1.msra.mxu0 0.0
      %766 = vmatprep.subr.mxu0 0.0
      %767 = vmatpush1.msra.mxu0 0.0
      %768 = vmatprep.mubr.f32.mxu0 0.0
      %769 = vmatmul.mubr.f32.gmra.mrb[0].mxu0 %v699
      %v770 = vpop.f32.mrb[0].mxu0
      %v771 = vadd.f32 0.0, %v770
      %v772 = vpop.f32.mrb[0].mxu0
      %773 = vmatprep.mubr.f32.mxu0 0.0
      %774 = vmatmul.mubr.f32.gmra.mrb[0].mxu0 %v702
      %v775 = vpop.f32.mrb[0].mxu0
      %v776 = vadd.f32 0.0, %v775
      %v777 = vpop.f32.mrb[0].mxu0
      %778 = vdwg.mxu0
      %v779 = vadd.f32 %v680, %v771
      %v780 = vadd.f32 %v681, %v776
      %v781 = vld [vmem:[%s2] sm:$0xff]
      %v782 = vld [vmem:[%s2 + $0x8] sm:$0xff]
      %784 = vset.pattern.permute.xlu0 0
      %785 = vperm.xlu0 %784, %v781
      %v786 = vpop.permute.xlu0 %785
      %789 = vset.pattern.permute.xlu0 0
      %790 = vperm.xlu0 %789, %v782
      %v791 = vpop.permute.xlu0 %790
      %v793 = vadd.f32 %v779, %v786
      %v794 = vadd.f32 %v780, %v791
      %795 = vst [vmem:[%s190] sm:$0xff] %v793
      %796 = vst [vmem:[%s190 + $0x8] sm:$0xff] %v794
      %p797 = scmp.lt.s32.totalorder %s18, 1
      %s798 = scalar_select %p797, %s18, 1
      %p799 = scmp.lt.s32.totalorder %s19, 0
      %s800 = scalar_select %p799, %s19, 0
      %s801 = smul.addr %s798, 2
      %s802 = sadd.s32 %s800, %s801
      %s803 = smul.addr %s802, 8
      %s804 = scalar_lea.vmem %s3, %s803
      // Predicated region
      $region33: #{_phase_decoder_impl.11} parent=31 // pred_check
        %p805 = pneg %p114
      $region34: #{_phase_decoder_impl.11} parent=31 // pred_check_branch
        %807 = sbr.rel (%p805) target = $region36
      $region35: #{_phase_decoder_impl.11} parent=31 // pred_region
        _
      $region36: #{_phase_decoder_impl.11} parent=31 // pred_fallthru
        _
    $region32: #{_phase_decoder_impl.11} parent=5 // pred_fallthru
      _
    %p808 = scmp.le.s32.totalorder 2, %s9
    // Predicated region
    $region37: #{_phase_decoder_impl.11} parent=5 // pred_check
      %p809 = pneg %p808
    $region38: #{_phase_decoder_impl.11} parent=5 // pred_check_branch
      %811 = sbr.rel (%p809) target = $region40
    $region39: #{_phase_decoder_impl.11} parent=5 // pred_region
      %s812 = ssub.s32 %s9, 2
      // Predicated region
      $region41: #{_phase_decoder_impl.11} parent=39 // pred_check
        %p813 = pneg %p120
      $region42: #{_phase_decoder_impl.11} parent=39 // pred_check_branch
        %815 = sbr.rel (%p813) target = $region44
      $region43: #{_phase_decoder_impl.11} parent=39 // pred_region
        %p816 = scmp.lt.s32.totalorder %s20, 1
        %s817 = scalar_select %p816, %s20, 1
        %p818 = scmp.lt.s32.totalorder %s21, 0
        %s819 = scalar_select %p818, %s21, 0
        %s820 = smul.addr %s817, 2
        %s821 = sadd.s32 %s819, %s820
        %s822 = smul.addr %s821, 8
        %s823 = scalar_lea.vmem %s3, %s822
      $region44: #{_phase_decoder_impl.11} parent=39 // pred_fallthru
        _
    $region40: #{_phase_decoder_impl.11} parent=5 // pred_fallthru
      _
  $region6: #{_phase_decoder_impl.11} parent=0 // loop_footer
    %s13 = sadd.s32 1, %s9
  $region7: #{_phase_decoder_impl.11} parent=0 // loop_footer_branch
    %8 = sbr.rel target = $region3
  $region8: #{_phase_decoder_impl.11} parent=0 // loop_exit
    _

// kernel: _phase_decoder_impl.12
$region0: #{_phase_decoder_impl.12}
  #allocation0 [shape = 'u32[]', space=smem, size = 0x4, offset = 0x4, fixed_abs, tag = 'smem constant byte address 0x4 - core index']
  #allocation1 [shape = 'u32[144,128]{1,0:T(1,128)}', space=vmem, size = 0x12000, scoped, tag = 'internal scratch']
  %s0 = inlined_call_operand.vmem [shape: f32[32,72], index: 0, kind: input, shape index: {}]
  %s1 = inlined_call_operand.vmem [shape: f32[32,1], index: 1, kind: input, shape index: {}]
  %s2 = inlined_call_operand.vmem [shape: f32[32,1], index: 2, kind: input, shape index: {}]
  %s3 = inlined_call_operand.vmem [shape: f32[32,1], index: 3, kind: input, shape index: {}]
  %s4 = inlined_call_operand.vmem [shape: f32[32,72], index: 4, kind: output, shape index: {}]
  %s5 = sld [smem:[#allocation0]]
  $region49: #{_phase_decoder_impl.12} parent=0
    _
  %s7 = ssub.s32 1, %s5
  %s8 = scalar_select 0, %s7, %s5
  loop: start=0, step=1, limit=6
  $region2: #{_phase_decoder_impl.12} parent=0 // loop_pre_header
    _
  $region3: #{_phase_decoder_impl.12} parent=0 // loop_header
    %s10 = sphi 0, %s14
    %p11 = scmp.ge.s32.totalorder %s10, 6
    %s20 = sphi 0, %s22
    %s23 = sphi 0, %s20
    %s24 = sphi 0, %s23
    %s40 = sphi 0, %s24
    %s46 = sphi 0, %s48
    %s49 = sphi 0, %s46
    %s50 = sphi 0, %s49
    %s66 = sphi 0, %s50
    %s72 = sphi 0, %s74
    %s75 = sphi 0, %s72
    %s76 = sphi 0, %s75
    %s92 = sphi 0, %s76
    %s98 = sphi 0, %s100
    %s101 = sphi 0, %s98
    %s102 = sphi 0, %s101
    %s118 = sphi 0, %s102
    %s124 = sphi 0, %s126
    %s127 = sphi 0, %s124
    %s128 = sphi 0, %s127
    %s144 = sphi 0, %s128
  $region4: #{_phase_decoder_impl.12} parent=0 // loop_header_branch
    %13 = sbr.rel (%p11) target = $region8
  $region5: #{_phase_decoder_impl.12} parent=0 // loop_body
    %s15 = ssub.s32 %s10, 1
    %s16 = ssub.s32 %s10, 2
    %s17 = sadd.s32 %s10, 1
    %s18 = ssub.s32 %s10, %s17
    %p19 = scmp.eq.s32.totalorder %s18, 0
    %s21 = sadd.s32 %s20, 1
    %s22 = scalar_select %p19, %s20, %s21
    %p25 = pneg %p19
    %p26 = scmp.eq.s32.totalorder %s10, 3
    %p27 = por %p25, %p26
    %p28 = scmp.ne.s32.totalorder %s20, %s23
    %p29 = scmp.eq.s32.totalorder %s10, 0
    %p30 = por %p28, %p29
    %p31 = scmp.ne.s32.totalorder %s20, %s23
    %p32 = scmp.eq.s32.totalorder %s15, 3
    %p33 = por %p31, %p32
    %p34 = scmp.ne.s32.totalorder %s23, %s24
    %p35 = scmp.eq.s32.totalorder %s15, 0
    %p36 = por %p34, %p35
    %p37 = scmp.ne.s32.totalorder %s23, %s24
    %p38 = scmp.eq.s32.totalorder %s16, 3
    %p39 = por %p37, %p38
    %p41 = scmp.ne.s32.totalorder %s24, %s40
    %p42 = scmp.eq.s32.totalorder %s16, 0
    %p43 = por %p41, %p42
    %s44 = ssub.s32 %s10, %s17
    %p45 = scmp.eq.s32.totalorder %s44, 0
    %s47 = sadd.s32 %s46, 1
    %s48 = scalar_select %p45, %s46, %s47
    %p51 = pneg %p45
    %p52 = scmp.eq.s32.totalorder %s10, 3
    %p53 = por %p51, %p52
    %p54 = scmp.ne.s32.totalorder %s46, %s49
    %p55 = scmp.eq.s32.totalorder %s10, 0
    %p56 = por %p54, %p55
    %p57 = scmp.ne.s32.totalorder %s46, %s49
    %p58 = scmp.eq.s32.totalorder %s15, 3
    %p59 = por %p57, %p58
    %p60 = scmp.ne.s32.totalorder %s49, %s50
    %p61 = scmp.eq.s32.totalorder %s15, 0
    %p62 = por %p60, %p61
    %p63 = scmp.ne.s32.totalorder %s49, %s50
    %p64 = scmp.eq.s32.totalorder %s16, 3
    %p65 = por %p63, %p64
    %p67 = scmp.ne.s32.totalorder %s50, %s66
    %p68 = scmp.eq.s32.totalorder %s16, 0
    %p69 = por %p67, %p68
    %s70 = ssub.s32 %s10, %s17
    %p71 = scmp.eq.s32.totalorder %s70, 0
    %s73 = sadd.s32 %s72, 1
    %s74 = scalar_select %p71, %s72, %s73
    %p77 = pneg %p71
    %p78 = scmp.eq.s32.totalorder %s10, 3
    %p79 = por %p77, %p78
    %p80 = scmp.ne.s32.totalorder %s72, %s75
    %p81 = scmp.eq.s32.totalorder %s10, 0
    %p82 = por %p80, %p81
    %p83 = scmp.ne.s32.totalorder %s72, %s75
    %p84 = scmp.eq.s32.totalorder %s15, 3
    %p85 = por %p83, %p84
    %p86 = scmp.ne.s32.totalorder %s75, %s76
    %p87 = scmp.eq.s32.totalorder %s15, 0
    %p88 = por %p86, %p87
    %p89 = scmp.ne.s32.totalorder %s75, %s76
    %p90 = scmp.eq.s32.totalorder %s16, 3
    %p91 = por %p89, %p90
    %p93 = scmp.ne.s32.totalorder %s76, %s92
    %p94 = scmp.eq.s32.totalorder %s16, 0
    %p95 = por %p93, %p94
    %s96 = ssub.s32 %s10, %s17
    %p97 = scmp.eq.s32.totalorder %s96, 0
    %s99 = sadd.s32 %s98, 1
    %s100 = scalar_select %p97, %s98, %s99
    %p103 = pneg %p97
    %p104 = scmp.eq.s32.totalorder %s10, 3
    %p105 = por %p103, %p104
    %p106 = scmp.ne.s32.totalorder %s98, %s101
    %p107 = scmp.eq.s32.totalorder %s10, 0
    %p108 = por %p106, %p107
    %p109 = scmp.ne.s32.totalorder %s98, %s101
    %p110 = scmp.eq.s32.totalorder %s15, 3
    %p111 = por %p109, %p110
    %p112 = scmp.ne.s32.totalorder %s101, %s102
    %p113 = scmp.eq.s32.totalorder %s15, 0
    %p114 = por %p112, %p113
    %p115 = scmp.ne.s32.totalorder %s101, %s102
    %p116 = scmp.eq.s32.totalorder %s16, 3
    %p117 = por %p115, %p116
    %p119 = scmp.ne.s32.totalorder %s102, %s118
    %p120 = scmp.eq.s32.totalorder %s16, 0
    %p121 = por %p119, %p120
    %s122 = ssub.s32 %s10, %s17
    %p123 = scmp.eq.s32.totalorder %s122, 0
    %s125 = sadd.s32 %s124, 1
    %s126 = scalar_select %p123, %s124, %s125
    %p129 = pneg %p123
    %p130 = scmp.eq.s32.totalorder %s10, 3
    %p131 = por %p129, %p130
    %p132 = scmp.ne.s32.totalorder %s124, %s127
    %p133 = scmp.eq.s32.totalorder %s10, 0
    %p134 = por %p132, %p133
    %p135 = scmp.ne.s32.totalorder %s124, %s127
    %p136 = scmp.eq.s32.totalorder %s15, 3
    %p137 = por %p135, %p136
    %p138 = scmp.ne.s32.totalorder %s127, %s128
    %p139 = scmp.eq.s32.totalorder %s15, 0
    %p140 = por %p138, %p139
    %p141 = scmp.ne.s32.totalorder %s127, %s128
    %p142 = scmp.eq.s32.totalorder %s16, 3
    %p143 = por %p141, %p142
    %p145 = scmp.ne.s32.totalorder %s128, %s144
    %p146 = scmp.eq.s32.totalorder %s16, 0
    %p147 = por %p145, %p146
    %p148 = scmp.le.s32.totalorder 1, %s10
    %p149 = scmp.lt.s32.totalorder %s10, 5
    %p150 = pnand %p148, %p149
    %p151 = pneg %p150
    // Predicated region
    $region9: #{_phase_decoder_impl.12} parent=5 // pred_check
      _
    $region10: #{_phase_decoder_impl.12} parent=5 // pred_check_branch
      %153 = sbr.rel (%p150) target = $region12
    $region11: #{_phase_decoder_impl.12} parent=5 // pred_region
      %s154 = ssub.s32 %s10, 1
    $region12: #{_phase_decoder_impl.12} parent=5 // pred_fallthru
      _
    %p155 = scmp.lt.s32.totalorder %s10, 4
    // Predicated region
    $region13: #{_phase_decoder_impl.12} parent=5 // pred_check
      %p156 = pneg %p155
    $region14: #{_phase_decoder_impl.12} parent=5 // pred_check_branch
      %158 = sbr.rel (%p156) target = $region16
    $region15: #{_phase_decoder_impl.12} parent=5 // pred_region
      // Predicated region
      $region17: #{_phase_decoder_impl.12} parent=15 // pred_check
        %p159 = pneg %p30
      $region18: #{_phase_decoder_impl.12} parent=15 // pred_check_branch
        %161 = sbr.rel (%p159) target = $region20
      $region19: #{_phase_decoder_impl.12} parent=15 // pred_region
        %p162 = scmp.lt.s32.totalorder %s10, 3
        %s163 = scalar_select %p162, %s10, 3
        %s164 = smul.addr %s163, 8
        %s165 = scalar_lea.vmem %s0, %s164
      $region20: #{_phase_decoder_impl.12} parent=15 // pred_fallthru
        _
      // Predicated region
      $region21: #{_phase_decoder_impl.12} parent=15 // pred_check
        %p166 = pneg %p56
      $region22: #{_phase_decoder_impl.12} parent=15 // pred_check_branch
        %168 = sbr.rel (%p166) target = $region24
      $region23: #{_phase_decoder_impl.12} parent=15 // pred_region
        %p169 = scmp.lt.s32.totalorder %s10, 3
        %s170 = scalar_select %p169, %s10, 3
        %s171 = smul.addr %s170, 8
        %s172 = scalar_lea.vmem %s1, %s171
      $region24: #{_phase_decoder_impl.12} parent=15 // pred_fallthru
        _
      // Predicated region
      $region25: #{_phase_decoder_impl.12} parent=15 // pred_check
        %p173 = pneg %p82
      $region26: #{_phase_decoder_impl.12} parent=15 // pred_check_branch
        %175 = sbr.rel (%p173) target = $region28
      $region27: #{_phase_decoder_impl.12} parent=15 // pred_region
        %p176 = scmp.lt.s32.totalorder %s10, 3
        %s177 = scalar_select %p176, %s10, 3
        %s178 = smul.addr %s177, 8
        %s179 = scalar_lea.vmem %s2, %s178
      $region28: #{_phase_decoder_impl.12} parent=15 // pred_fallthru
        _
      // Predicated region
      $region29: #{_phase_decoder_impl.12} parent=15 // pred_check
        %p180 = pneg %p108
      $region30: #{_phase_decoder_impl.12} parent=15 // pred_check_branch
        %182 = sbr.rel (%p180) target = $region32
      $region31: #{_phase_decoder_impl.12} parent=15 // pred_region
        %p183 = scmp.lt.s32.totalorder %s10, 3
        %s184 = scalar_select %p183, %s10, 3
        %s185 = smul.addr %s184, 8
        %s186 = scalar_lea.vmem %s3, %s185
      $region32: #{_phase_decoder_impl.12} parent=15 // pred_fallthru
        _
    $region16: #{_phase_decoder_impl.12} parent=5 // pred_fallthru
      _
    %p187 = scmp.le.s32.totalorder 1, %s10
    %p188 = scmp.lt.s32.totalorder %s10, 5
    %p189 = pnand %p187, %p188
    %p190 = pneg %p189
    // Predicated region
    $region33: #{_phase_decoder_impl.12} parent=5 // pred_check
      _
    $region34: #{_phase_decoder_impl.12} parent=5 // pred_check_branch
      %192 = sbr.rel (%p189) target = $region36
    $region35: #{_phase_decoder_impl.12} parent=5 // pred_region
      %s193 = ssub.s32 %s10, 1
      %p194 = scmp.lt.s32.totalorder %s15, 3
      %s195 = scalar_select %p194, %s15, 3
      %s196 = smul.addr %s195, 8
      %s197 = scalar_lea.vmem %s0, %s196
      %p198 = pneg %p36
      %p199 = pneg %p33
      %p200 = scmp.lt.s32.totalorder %s15, 3
      %s201 = scalar_select %p200, %s15, 3
      %s202 = smul.addr %s201, 8
      %s203 = scalar_lea.vmem %s1, %s202
      %p204 = pneg %p62
      %p205 = pneg %p59
      %p206 = scmp.lt.s32.totalorder %s15, 3
      %s207 = scalar_select %p206, %s15, 3
      %s208 = smul.addr %s207, 8
      %s209 = scalar_lea.vmem %s2, %s208
      %p210 = pneg %p88
      %p211 = pneg %p85
      %p212 = scmp.lt.s32.totalorder %s15, 3
      %s213 = scalar_select %p212, %s15, 3
      %s214 = smul.addr %s213, 8
      %s215 = scalar_lea.vmem %s3, %s214
      %p216 = pneg %p114
      %p217 = pneg %p111
      %p218 = pneg %p140
      %p219 = pneg %p137
      %p220 = scmp.lt.s32.totalorder %s15, 3
      %s221 = scalar_select %p220, %s15, 3
      %s222 = smul.addr %s221, 8
      %s223 = scalar_lea.vmem %s4, %s222
      %p224 = scmp.lt.s32.totalorder %s15, 3
      %s225 = scalar_select %p224, %s15, 3
      %s226 = smul.addr %s225, 8
      %s227 = scalar_lea.vmem %s0, %s226
      %p228 = scmp.lt.s32.totalorder %s15, 3
      %s229 = scalar_select %p228, %s15, 3
      %s230 = smul.addr %s229, 8
      %s231 = scalar_lea.vmem %s1, %s230
      %p232 = scmp.lt.s32.totalorder %s15, 3
      %s233 = scalar_select %p232, %s15, 3
      %s234 = smul.addr %s233, 8
      %s235 = scalar_lea.vmem %s2, %s234
      %p236 = scmp.lt.s32.totalorder %s15, 3
      %s237 = scalar_select %p236, %s15, 3
      %s238 = smul.addr %s237, 8
      %s239 = scalar_lea.vmem %s3, %s238
      %p240 = scmp.lt.s32.totalorder %s15, 3
      %s241 = scalar_select %p240, %s15, 3
      %s242 = smul.addr %s241, 8
      %s243 = scalar_lea.vmem %s4, %s242
      %v244 = vld [vmem:[%s227] sm:$0xff]
      %vm245 = vcmask 588800
      %v246 = vsel %vm245, %v244, 0.0
      %247 = vadd.xlane.f32.xlu0 %v246
      %v248 = vpop.xlane.xlu0 %247
      %v249 = vrcp.pop 72.0
      %v250 = vmul.f32 %v248, %v249
      %v251 = vsub.f32 %v244, %v250
      %v252 = vmul.f32 %v251, %v251
      %v253 = vsel %vm245, %v252, 0.0
      %254 = vadd.xlane.f32.xlu0 %v253
      %v255 = vpop.xlane.xlu0 %254
      %v256 = vmul.f32 %v255, %v249
      %v257 = vadd.f32 %v256, 1e-05
      %v258 = vrsqrt.pop %v257
      %v259 = vmul.f32 %v251, %v258
      %v260 = vld [vmem:[%s231] sm:$0xff]
      %262 = vset.pattern.permute.xlu0 0
      %263 = vperm.xlu0 %262, %v260
      %v264 = vpop.permute.xlu0 %263
      %v266 = vmul.f32 %v259, %v264
      %v267 = vld [vmem:[%s235] sm:$0xff]
      %269 = vset.pattern.permute.xlu0 0
      %270 = vperm.xlu0 %269, %v267
      %v271 = vpop.permute.xlu0 %270
      %v273 = vadd.f32 %v266, %v271
      %vm274 = vcmp.gt.f32.partialorder %v273, 0.0
      %v275 = vld [vmem:[%s239] sm:$0xff]
      %277 = vset.pattern.permute.xlu0 0
      %278 = vperm.xlu0 %277, %v275
      %v279 = vpop.permute.xlu0 %278
      %v281 = vmul.f32 %v279, %v273
      %v282 = vsel %vm274, %v273, %v281
      %283 = vst.msk [vmem:[%s243] sm:$0xff] %vm245, %v282
      %p284 = scmp.lt.s32.totalorder %s15, 3
      %s285 = scalar_select %p284, %s15, 3
      %s286 = smul.addr %s285, 8
      %s287 = scalar_lea.vmem %s4, %s286
      // Predicated region
      $region37: #{_phase_decoder_impl.12} parent=35 // pred_check
        %p288 = pneg %p137
      $region38: #{_phase_decoder_impl.12} parent=35 // pred_check_branch
        %290 = sbr.rel (%p288) target = $region40
      $region39: #{_phase_decoder_impl.12} parent=35 // pred_region
        _
      $region40: #{_phase_decoder_impl.12} parent=35 // pred_fallthru
        _
    $region36: #{_phase_decoder_impl.12} parent=5 // pred_fallthru
      _
    %p291 = scmp.le.s32.totalorder 2, %s10
    // Predicated region
    $region41: #{_phase_decoder_impl.12} parent=5 // pred_check
      %p292 = pneg %p291
    $region42: #{_phase_decoder_impl.12} parent=5 // pred_check_branch
      %294 = sbr.rel (%p292) target = $region44
    $region43: #{_phase_decoder_impl.12} parent=5 // pred_region
      %s295 = ssub.s32 %s10, 2
      // Predicated region
      $region45: #{_phase_decoder_impl.12} parent=43 // pred_check
        %p296 = pneg %p143
      $region46: #{_phase_decoder_impl.12} parent=43 // pred_check_branch
        %298 = sbr.rel (%p296) target = $region48
      $region47: #{_phase_decoder_impl.12} parent=43 // pred_region
        %p299 = scmp.lt.s32.totalorder %s16, 3
        %s300 = scalar_select %p299, %s16, 3
        %s301 = smul.addr %s300, 8
        %s302 = scalar_lea.vmem %s4, %s301
      $region48: #{_phase_decoder_impl.12} parent=43 // pred_fallthru
        _
    $region44: #{_phase_decoder_impl.12} parent=5 // pred_fallthru
      _
  $region6: #{_phase_decoder_impl.12} parent=0 // loop_footer
    %s14 = sadd.s32 1, %s10
  $region7: #{_phase_decoder_impl.12} parent=0 // loop_footer_branch
    %9 = sbr.rel target = $region3
  $region8: #{_phase_decoder_impl.12} parent=0 // loop_exit
    _

// kernel: _phase_decoder_impl.13
$region0: #{_phase_decoder_impl.13}
  #allocation0 [shape = 'u32[]', space=smem, size = 0x4, offset = 0x4, fixed_abs, tag = 'smem constant byte address 0x4 - core index']
  #allocation1 [shape = 'u32[144,128]{1,0:T(1,128)}', space=vmem, size = 0x12000, scoped, tag = 'internal scratch']
  %s0 = inlined_call_operand.vmem [shape: f32[2,32,256], index: 0, kind: input, shape index: {}]
  %s1 = inlined_call_operand.vmem [shape: f32[6,16,32], index: 1, kind: input, shape index: {}]
  %s2 = inlined_call_operand.vmem [shape: f32[16,1], index: 2, kind: input, shape index: {}]
  %s3 = inlined_call_operand.vmem [shape: f32[2,16,128], index: 3, kind: output, shape index: {}]
  %s4 = sld [smem:[#allocation0]]
  $region45: #{_phase_decoder_impl.13} parent=0
    _
  %s6 = ssub.s32 1, %s4
  %s7 = scalar_select 0, %s6, %s4
  loop: start=0, step=1, limit=4
  $region2: #{_phase_decoder_impl.13} parent=0 // loop_pre_header
    _
  $region3: #{_phase_decoder_impl.13} parent=0 // loop_header
    %s9 = sphi 0, %s13
    %p10 = scmp.ge.s32.totalorder %s9, 4
    %s16 = sphi 0, %s28
    %s17 = sphi 0, %s24
    %s18 = sphi 0, %s16
    %s19 = sphi 0, %s17
    %s20 = sphi 0, %s18
    %s21 = sphi 0, %s19
    %s31 = sphi 0, %s33
    %s34 = sphi 0, %s31
    %s35 = sphi 0, %s34
    %s51 = sphi 0, %s35
    %s55 = sphi 0, %s55
    %s57 = sphi 0, %s55
    %s58 = sphi 0, %s57
    %s72 = sphi 0, %s58
    %s76 = sphi 0, %s76
    %s78 = sphi 0, %s76
    %s79 = sphi 0, %s78
    %s93 = sphi 0, %s79
    %s101 = sphi 0, %s103
    %s104 = sphi 0, %s101
    %s105 = sphi 0, %s104
    %s121 = sphi 0, %s105
  $region4: #{_phase_decoder_impl.13} parent=0 // loop_header_branch
    %12 = sbr.rel (%p10) target = $region8
  $region5: #{_phase_decoder_impl.13} parent=0 // loop_body
    %s14 = ssub.s32 %s9, 1
    %s15 = ssub.s32 %s9, 2
    %s22 = sadd.s32 1, %s17
    %p23 = scmp.ge.s32.totalorder %s22, 1
    %s24 = scalar_select %p23, 0, %s22
    %s25 = sadd.s32 1, %s16
    %s26 = scalar_select %p23, %s25, %s16
    %p27 = scmp.ge.s32.totalorder %s26, 2
    %s28 = scalar_select %p27, 0, %s26
    %s29 = ssub.s32 %s16, %s28
    %p30 = scmp.eq.s32.totalorder %s29, 0
    %s32 = sadd.s32 %s31, 1
    %s33 = scalar_select %p30, %s31, %s32
    %p36 = pneg %p30
    %p37 = scmp.eq.s32.totalorder %s9, 1
    %p38 = por %p36, %p37
    %p39 = scmp.ne.s32.totalorder %s31, %s34
    %p40 = scmp.eq.s32.totalorder %s9, 0
    %p41 = por %p39, %p40
    %p42 = scmp.ne.s32.totalorder %s31, %s34
    %p43 = scmp.eq.s32.totalorder %s14, 1
    %p44 = por %p42, %p43
    %p45 = scmp.ne.s32.totalorder %s34, %s35
    %p46 = scmp.eq.s32.totalorder %s14, 0
    %p47 = por %p45, %p46
    %p48 = scmp.ne.s32.totalorder %s34, %s35
    %p49 = scmp.eq.s32.totalorder %s15, 1
    %p50 = por %p48, %p49
    %p52 = scmp.ne.s32.totalorder %s35, %s51
    %p53 = scmp.eq.s32.totalorder %s15, 0
    %p54 = por %p52, %p53
    %s56 = sadd.s32 %s55, 1
    %p59 = scmp.eq.s32.totalorder %s9, 1
    %p60 = scmp.ne.s32.totalorder %s55, %s57
    %p61 = scmp.eq.s32.totalorder %s9, 0
    %p62 = por %p60, %p61
    %p63 = scmp.ne.s32.totalorder %s55, %s57
    %p64 = scmp.eq.s32.totalorder %s14, 1
    %p65 = por %p63, %p64
    %p66 = scmp.ne.s32.totalorder %s57, %s58
    %p67 = scmp.eq.s32.totalorder %s14, 0
    %p68 = por %p66, %p67
    %p69 = scmp.ne.s32.totalorder %s57, %s58
    %p70 = scmp.eq.s32.totalorder %s15, 1
    %p71 = por %p69, %p70
    %p73 = scmp.ne.s32.totalorder %s58, %s72
    %p74 = scmp.eq.s32.totalorder %s15, 0
    %p75 = por %p73, %p74
    %s77 = sadd.s32 %s76, 1
    %p80 = scmp.eq.s32.totalorder %s9, 1
    %p81 = scmp.ne.s32.totalorder %s76, %s78
    %p82 = scmp.eq.s32.totalorder %s9, 0
    %p83 = por %p81, %p82
    %p84 = scmp.ne.s32.totalorder %s76, %s78
    %p85 = scmp.eq.s32.totalorder %s14, 1
    %p86 = por %p84, %p85
    %p87 = scmp.ne.s32.totalorder %s78, %s79
    %p88 = scmp.eq.s32.totalorder %s14, 0
    %p89 = por %p87, %p88
    %p90 = scmp.ne.s32.totalorder %s78, %s79
    %p91 = scmp.eq.s32.totalorder %s15, 1
    %p92 = por %p90, %p91
    %p94 = scmp.ne.s32.totalorder %s79, %s93
    %p95 = scmp.eq.s32.totalorder %s15, 0
    %p96 = por %p94, %p95
    %s97 = ssub.s32 %s16, %s28
    %s98 = ssub.s32 %s17, %s24
    %s99 = sor.u32 %s97, %s98
    %p100 = scmp.eq.s32.totalorder %s99, 0
    %s102 = sadd.s32 %s101, 1
    %s103 = scalar_select %p100, %s101, %s102
    %p106 = pneg %p100
    %p107 = scmp.eq.s32.totalorder %s9, 1
    %p108 = por %p106, %p107
    %p109 = scmp.ne.s32.totalorder %s101, %s104
    %p110 = scmp.eq.s32.totalorder %s9, 0
    %p111 = por %p109, %p110
    %p112 = scmp.ne.s32.totalorder %s101, %s104
    %p113 = scmp.eq.s32.totalorder %s14, 1
    %p114 = por %p112, %p113
    %p115 = scmp.ne.s32.totalorder %s104, %s105
    %p116 = scmp.eq.s32.totalorder %s14, 0
    %p117 = por %p115, %p116
    %p118 = scmp.ne.s32.totalorder %s104, %s105
    %p119 = scmp.eq.s32.totalorder %s15, 1
    %p120 = por %p118, %p119
    %p122 = scmp.ne.s32.totalorder %s105, %s121
    %p123 = scmp.eq.s32.totalorder %s15, 0
    %p124 = por %p122, %p123
    %p125 = scmp.le.s32.totalorder 1, %s9
    %p126 = scmp.lt.s32.totalorder %s9, 3
    %p127 = pnand %p125, %p126
    %p128 = pneg %p127
    // Predicated region
    $region9: #{_phase_decoder_impl.13} parent=5 // pred_check
      _
    $region10: #{_phase_decoder_impl.13} parent=5 // pred_check_branch
      %130 = sbr.rel (%p127) target = $region12
    $region11: #{_phase_decoder_impl.13} parent=5 // pred_region
      %s131 = ssub.s32 %s9, 1
      // Predicated region
      $region13: #{_phase_decoder_impl.13} parent=11 // pred_check
        %p132 = pneg %p68
      $region14: #{_phase_decoder_impl.13} parent=11 // pred_check_branch
        %134 = sbr.rel (%p132) target = $region16
      $region15: #{_phase_decoder_impl.13} parent=11 // pred_region
        _
      $region16: #{_phase_decoder_impl.13} parent=11 // pred_fallthru
        _
      // Predicated region
      $region17: #{_phase_decoder_impl.13} parent=11 // pred_check
        %p135 = pneg %p89
      $region18: #{_phase_decoder_impl.13} parent=11 // pred_check_branch
        %137 = sbr.rel (%p135) target = $region20
      $region19: #{_phase_decoder_impl.13} parent=11 // pred_region
        _
      $region20: #{_phase_decoder_impl.13} parent=11 // pred_fallthru
        _
    $region12: #{_phase_decoder_impl.13} parent=5 // pred_fallthru
      _
    %p138 = scmp.lt.s32.totalorder %s9, 2
    // Predicated region
    $region21: #{_phase_decoder_impl.13} parent=5 // pred_check
      %p139 = pneg %p138
    $region22: #{_phase_decoder_impl.13} parent=5 // pred_check_branch
      %141 = sbr.rel (%p139) target = $region24
    $region23: #{_phase_decoder_impl.13} parent=5 // pred_region
      // Predicated region
      $region25: #{_phase_decoder_impl.13} parent=23 // pred_check
        %p142 = pneg %p41
      $region26: #{_phase_decoder_impl.13} parent=23 // pred_check_branch
        %144 = sbr.rel (%p142) target = $region28
      $region27: #{_phase_decoder_impl.13} parent=23 // pred_region
        %p145 = scmp.lt.s32.totalorder %s16, 1
        %s146 = scalar_select %p145, %s16, 1
        %s147 = smul.addr %s146, 8
        %s148 = smul.addr %s147, 8
        %s149 = scalar_lea.vmem %s0, %s148
      $region28: #{_phase_decoder_impl.13} parent=23 // pred_fallthru
        _
    $region24: #{_phase_decoder_impl.13} parent=5 // pred_fallthru
      _
    %p150 = scmp.le.s32.totalorder 1, %s9
    %p151 = scmp.lt.s32.totalorder %s9, 3
    %p152 = pnand %p150, %p151
    %p153 = pneg %p152
    // Predicated region
    $region29: #{_phase_decoder_impl.13} parent=5 // pred_check
      _
    $region30: #{_phase_decoder_impl.13} parent=5 // pred_check_branch
      %155 = sbr.rel (%p152) target = $region32
    $region31: #{_phase_decoder_impl.13} parent=5 // pred_region
      %s156 = ssub.s32 %s9, 1
      %p157 = scmp.lt.s32.totalorder %s18, 1
      %s158 = scalar_select %p157, %s18, 1
      %s159 = smul.addr %s158, 8
      %s160 = smul.addr %s159, 8
      %s161 = scalar_lea.vmem %s0, %s160
      %p162 = pneg %p47
      %p163 = pneg %p44
      %p164 = pneg %p68
      %p165 = pneg %p65
      %p166 = pneg %p89
      %p167 = pneg %p86
      %p168 = pneg %p117
      %p169 = pneg %p114
      %p170 = scmp.lt.s32.totalorder %s18, 1
      %s171 = scalar_select %p170, %s18, 1
      %p172 = scmp.lt.s32.totalorder %s19, 0
      %s173 = scalar_select %p172, %s19, 0
      %s174 = smul.addr %s171, 2
      %s175 = sadd.s32 %s173, %s174
      %s176 = smul.addr %s175, 8
      %s177 = scalar_lea.vmem %s3, %s176
      %p178 = scmp.lt.s32.totalorder %s18, 1
      %s179 = scalar_select %p178, %s18, 1
      %s180 = smul.addr %s179, 8
      %s181 = smul.addr %s180, 8
      %s182 = scalar_lea.vmem %s0, %s181
      %p183 = scmp.lt.s32.totalorder %s18, 1
      %s184 = scalar_select %p183, %s18, 1
      %p185 = scmp.lt.s32.totalorder %s19, 0
      %s186 = scalar_select %p185, %s19, 0
      %s187 = smul.addr %s184, 2
      %s188 = sadd.s32 %s186, %s187
      %s189 = smul.addr %s188, 8
      %s190 = scalar_lea.vmem %s3, %s189
      %s191 = smul.u32 %s19, 128
      %s192 = sshra.s32 %s191, 7
      %s193 = sand.u32 %s191, 127
      %s194 = smul.addr %s192, 8
      %s195 = scalar_lea.vmem %s182, %s194
      %v196 = vld [vmem:[%s195] sm:$0xff]
      %v197 = vld [vmem:[%s195 + $0x8] sm:$0xff]
      %v198 = vld [vmem:[%s195 + $0x10] sm:$0xff]
      %v199 = vld [vmem:[%s195 + $0x18] sm:$0xff]
      %v200 = vld [vmem:[%s195 + $0x20] sm:$0xff]
      %v201 = vld [vmem:[%s195 + $0x28] sm:$0xff]
      %v202 = vld [vmem:[%s195 + $0x30] sm:$0xff]
      %v203 = vld [vmem:[%s195 + $0x38] sm:$0xff]
      %v204 = vld [vmem:[%s1] sm:$0xff]
      %v205 = vld [vmem:[%s1 + $0x8] sm:$0xff]
      %s206 = scalar_lea.vmem %s1, 16
      %v207 = vld [vmem:[%s206] sm:$0xff]
      %v208 = vld [vmem:[%s206 + $0x8] sm:$0xff]
      %217 = vrot.lane.b32.xlu0 %v196, 127
      %v218 = vpop.permute.xlu0 %217
      %219 = vrot.lane.b32.xlu0 %v197, 127
      %v220 = vpop.permute.xlu0 %219
      %221 = vrot.lane.b32.xlu0 %v198, 127
      %v222 = vpop.permute.xlu0 %221
      %223 = vrot.lane.b32.xlu0 %v199, 127
      %v224 = vpop.permute.xlu0 %223
      %225 = vrot.lane.b32.xlu0 %v200, 127
      %v226 = vpop.permute.xlu0 %225
      %227 = vrot.lane.b32.xlu0 %v201, 127
      %v228 = vpop.permute.xlu0 %227
      %229 = vrot.lane.b32.xlu0 %v202, 127
      %v230 = vpop.permute.xlu0 %229
      %231 = vrot.lane.b32.xlu0 %v203, 127
      %v232 = vpop.permute.xlu0 %231
      %vm233 = vcmask 1039360
      %v234 = vsel %vm233, %v218, %v220
      %v235 = vsel %vm233, %v222, %v224
      %v236 = vsel %vm233, %v226, %v228
      %v237 = vsel %vm233, %v230, %v232
      %vm242 = vcmask 261120
      %v244 = vsel %vm242, %v207, 0
      %v247 = vsel %vm242, %v208, 0
      %249 = vmatprep.subr.mxu0 0.0
      %250 = vmatpush1.msra.mxu0 %v234
      %251 = vmatprep.subr.mxu0 0.0
      %252 = vmatpush1.msra.mxu0 %v235
      %253 = vmatprep.subr.mxu0 0.0
      %254 = vmatpush1.msra.mxu0 %v236
      %255 = vmatprep.subr.mxu0 0.0
      %256 = vmatpush1.msra.mxu0 %v237
      %257 = vmatprep.subr.mxu0 0.0
      %258 = vmatpush1.msra.mxu0 0.0
      %259 = vmatprep.subr.mxu0 0.0
      %260 = vmatpush1.msra.mxu0 0.0
      %261 = vmatprep.subr.mxu0 0.0
      %262 = vmatpush1.msra.mxu0 0.0
      %263 = vmatprep.subr.mxu0 0.0
      %264 = vmatpush1.msra.mxu0 0.0
      %265 = vmatprep.subr.mxu0 0.0
      %266 = vmatpush1.msra.mxu0 0.0
      %267 = vmatprep.subr.mxu0 0.0
      %268 = vmatpush1.msra.mxu0 0.0
      %269 = vmatprep.subr.mxu0 0.0
      %270 = vmatpush1.msra.mxu0 0.0
      %271 = vmatprep.subr.mxu0 0.0
      %272 = vmatpush1.msra.mxu0 0.0
      %273 = vmatprep.subr.mxu0 0.0
      %274 = vmatpush1.msra.mxu0 0.0
      %275 = vmatprep.subr.mxu0 0.0
      %276 = vmatpush1.msra.mxu0 0.0
      %277 = vmatprep.subr.mxu0 0.0
      %278 = vmatpush1.msra.mxu0 0.0
      %279 = vmatprep.subr.mxu0 0.0
      %280 = vmatpush1.msra.mxu0 0.0
      %281 = vmatprep.subr.mxu0 0.0
      %282 = vmatpush1.msra.mxu0 0.0
      %283 = vmatprep.subr.mxu0 0.0
      %284 = vmatpush1.msra.mxu0 0.0
      %285 = vmatprep.subr.mxu0 0.0
      %286 = vmatpush1.msra.mxu0 0.0
      %287 = vmatprep.subr.mxu0 0.0
      %288 = vmatpush1.msra.mxu0 0.0
      %289 = vmatprep.subr.mxu0 0.0
      %290 = vmatpush1.msra.mxu0 0.0
      %291 = vmatprep.subr.mxu0 0.0
      %292 = vmatpush1.msra.mxu0 0.0
      %293 = vmatprep.subr.mxu0 0.0
      %294 = vmatpush1.msra.mxu0 0.0
      %295 = vmatprep.subr.mxu0 0.0
      %296 = vmatpush1.msra.mxu0 0.0
      %297 = vmatprep.subr.mxu0 0.0
      %298 = vmatpush1.msra.mxu0 0.0
      %299 = vmatprep.subr.mxu0 0.0
      %300 = vmatpush1.msra.mxu0 0.0
      %301 = vmatprep.subr.mxu0 0.0
      %302 = vmatpush1.msra.mxu0 0.0
      %303 = vmatprep.subr.mxu0 0.0
      %304 = vmatpush1.msra.mxu0 0.0
      %305 = vmatprep.subr.mxu0 0.0
      %306 = vmatpush1.msra.mxu0 0.0
      %307 = vmatprep.subr.mxu0 0.0
      %308 = vmatpush1.msra.mxu0 0.0
      %309 = vmatprep.subr.mxu0 0.0
      %310 = vmatpush1.msra.mxu0 0.0
      %311 = vmatprep.subr.mxu0 0.0
      %312 = vmatpush1.msra.mxu0 0.0
      %313 = vmatprep.mubr.f32.mxu0 0.0
      %314 = vmatmul.mubr.f32.gmra.mrb[0].mxu0 %v244
      %v315 = vpop.f32.mrb[0].mxu0
      %v316 = vadd.f32 0.0, %v315
      %v317 = vpop.f32.mrb[0].mxu0
      %318 = vmatprep.mubr.f32.mxu0 0.0
      %319 = vmatmul.mubr.f32.gmra.mrb[0].mxu0 %v247
      %v320 = vpop.f32.mrb[0].mxu0
      %v321 = vadd.f32 0.0, %v320
      %v322 = vpop.f32.mrb[0].mxu0
      %323 = vdwg.mxu0
      %v325 = vsel %vm242, %v204, 0
      %v328 = vsel %vm242, %v205, 0
      %330 = vmatprep.subr.mxu0 0.0
      %331 = vmatpush1.msra.mxu0 %v196
      %332 = vmatprep.subr.mxu0 0.0
      %333 = vmatpush1.msra.mxu0 %v198
      %334 = vmatprep.subr.mxu0 0.0
      %335 = vmatpush1.msra.mxu0 %v200
      %336 = vmatprep.subr.mxu0 0.0
      %337 = vmatpush1.msra.mxu0 %v202
      %338 = vmatprep.subr.mxu0 0.0
      %339 = vmatpush1.msra.mxu0 0.0
      %340 = vmatprep.subr.mxu0 0.0
      %341 = vmatpush1.msra.mxu0 0.0
      %342 = vmatprep.subr.mxu0 0.0
      %343 = vmatpush1.msra.mxu0 0.0
      %344 = vmatprep.subr.mxu0 0.0
      %345 = vmatpush1.msra.mxu0 0.0
      %346 = vmatprep.subr.mxu0 0.0
      %347 = vmatpush1.msra.mxu0 0.0
      %348 = vmatprep.subr.mxu0 0.0
      %349 = vmatpush1.msra.mxu0 0.0
      %350 = vmatprep.subr.mxu0 0.0
      %351 = vmatpush1.msra.mxu0 0.0
      %352 = vmatprep.subr.mxu0 0.0
      %353 = vmatpush1.msra.mxu0 0.0
      %354 = vmatprep.subr.mxu0 0.0
      %355 = vmatpush1.msra.mxu0 0.0
      %356 = vmatprep.subr.mxu0 0.0
      %357 = vmatpush1.msra.mxu0 0.0
      %358 = vmatprep.subr.mxu0 0.0
      %359 = vmatpush1.msra.mxu0 0.0
      %360 = vmatprep.subr.mxu0 0.0
      %361 = vmatpush1.msra.mxu0 0.0
      %362 = vmatprep.subr.mxu0 0.0
      %363 = vmatpush1.msra.mxu0 0.0
      %364 = vmatprep.subr.mxu0 0.0
      %365 = vmatpush1.msra.mxu0 0.0
      %366 = vmatprep.subr.mxu0 0.0
      %367 = vmatpush1.msra.mxu0 0.0
      %368 = vmatprep.subr.mxu0 0.0
      %369 = vmatpush1.msra.mxu0 0.0
      %370 = vmatprep.subr.mxu0 0.0
      %371 = vmatpush1.msra.mxu0 0.0
      %372 = vmatprep.subr.mxu0 0.0
      %373 = vmatpush1.msra.mxu0 0.0
      %374 = vmatprep.subr.mxu0 0.0
      %375 = vmatpush1.msra.mxu0 0.0
      %376 = vmatprep.subr.mxu0 0.0
      %377 = vmatpush1.msra.mxu0 0.0
      %378 = vmatprep.subr.mxu0 0.0
      %379 = vmatpush1.msra.mxu0 0.0
      %380 = vmatprep.subr.mxu0 0.0
      %381 = vmatpush1.msra.mxu0 0.0
      %382 = vmatprep.subr.mxu0 0.0
      %383 = vmatpush1.msra.mxu0 0.0
      %384 = vmatprep.subr.mxu0 0.0
      %385 = vmatpush1.msra.mxu0 0.0
      %386 = vmatprep.subr.mxu0 0.0
      %387 = vmatpush1.msra.mxu0 0.0
      %388 = vmatprep.subr.mxu0 0.0
      %389 = vmatpush1.msra.mxu0 0.0
      %390 = vmatprep.subr.mxu0 0.0
      %391 = vmatpush1.msra.mxu0 0.0
      %392 = vmatprep.subr.mxu0 0.0
      %393 = vmatpush1.msra.mxu0 0.0
      %394 = vmatprep.mubr.f32.mxu0 0.0
      %395 = vmatmul.mubr.f32.gmra.mrb[0].mxu0 %v325
      %v396 = vpop.f32.mrb[0].mxu0
      %v397 = vadd.f32 %v316, %v396
      %v398 = vpop.f32.mrb[0].mxu0
      %399 = vmatprep.mubr.f32.mxu0 0.0
      %400 = vmatmul.mubr.f32.gmra.mrb[0].mxu0 %v328
      %v401 = vpop.f32.mrb[0].mxu0
      %v402 = vadd.f32 %v321, %v401
      %v403 = vpop.f32.mrb[0].mxu0
      %404 = vdwg.mxu0
      %s405 = scalar_lea.vmem %s1, 32
      %v406 = vld [vmem:[%s405] sm:$0xff]
      %v407 = vld [vmem:[%s405 + $0x8] sm:$0xff]
      %408 = vrot.lane.b32.xlu0 %v196, 126
      %v409 = vpop.permute.xlu0 %408
      %410 = vrot.lane.b32.xlu0 %v197, 126
      %v411 = vpop.permute.xlu0 %410
      %412 = vrot.lane.b32.xlu0 %v198, 126
      %v413 = vpop.permute.xlu0 %412
      %414 = vrot.lane.b32.xlu0 %v199, 126
      %v415 = vpop.permute.xlu0 %414
      %416 = vrot.lane.b32.xlu0 %v200, 126
      %v417 = vpop.permute.xlu0 %416
      %418 = vrot.lane.b32.xlu0 %v201, 126
      %v419 = vpop.permute.xlu0 %418
      %420 = vrot.lane.b32.xlu0 %v202, 126
      %v421 = vpop.permute.xlu0 %420
      %422 = vrot.lane.b32.xlu0 %v203, 126
      %v423 = vpop.permute.xlu0 %422
      %vm424 = vcmask 1031168
      %v425 = vsel %vm424, %v409, %v411
      %v426 = vsel %vm424, %v413, %v415
      %v427 = vsel %vm424, %v417, %v419
      %v428 = vsel %vm424, %v421, %v423
      %v434 = vsel %vm242, %v406, 0
      %v437 = vsel %vm242, %v407, 0
      %439 = vmatprep.subr.mxu0 0.0
      %440 = vmatpush1.msra.mxu0 %v425
      %441 = vmatprep.subr.mxu0 0.0
      %442 = vmatpush1.msra.mxu0 %v426
      %443 = vmatprep.subr.mxu0 0.0
      %444 = vmatpush1.msra.mxu0 %v427
      %445 = vmatprep.subr.mxu0 0.0
      %446 = vmatpush1.msra.mxu0 %v428
      %447 = vmatprep.subr.mxu0 0.0
      %448 = vmatpush1.msra.mxu0 0.0
      %449 = vmatprep.subr.mxu0 0.0
      %450 = vmatpush1.msra.mxu0 0.0
      %451 = vmatprep.subr.mxu0 0.0
      %452 = vmatpush1.msra.mxu0 0.0
      %453 = vmatprep.subr.mxu0 0.0
      %454 = vmatpush1.msra.mxu0 0.0
      %455 = vmatprep.subr.mxu0 0.0
      %456 = vmatpush1.msra.mxu0 0.0
      %457 = vmatprep.subr.mxu0 0.0
      %458 = vmatpush1.msra.mxu0 0.0
      %459 = vmatprep.subr.mxu0 0.0
      %460 = vmatpush1.msra.mxu0 0.0
      %461 = vmatprep.subr.mxu0 0.0
      %462 = vmatpush1.msra.mxu0 0.0
      %463 = vmatprep.subr.mxu0 0.0
      %464 = vmatpush1.msra.mxu0 0.0
      %465 = vmatprep.subr.mxu0 0.0
      %466 = vmatpush1.msra.mxu0 0.0
      %467 = vmatprep.subr.mxu0 0.0
      %468 = vmatpush1.msra.mxu0 0.0
      %469 = vmatprep.subr.mxu0 0.0
      %470 = vmatpush1.msra.mxu0 0.0
      %471 = vmatprep.subr.mxu0 0.0
      %472 = vmatpush1.msra.mxu0 0.0
      %473 = vmatprep.subr.mxu0 0.0
      %474 = vmatpush1.msra.mxu0 0.0
      %475 = vmatprep.subr.mxu0 0.0
      %476 = vmatpush1.msra.mxu0 0.0
      %477 = vmatprep.subr.mxu0 0.0
      %478 = vmatpush1.msra.mxu0 0.0
      %479 = vmatprep.subr.mxu0 0.0
      %480 = vmatpush1.msra.mxu0 0.0
      %481 = vmatprep.subr.mxu0 0.0
      %482 = vmatpush1.msra.mxu0 0.0
      %483 = vmatprep.subr.mxu0 0.0
      %484 = vmatpush1.msra.mxu0 0.0
      %485 = vmatprep.subr.mxu0 0.0
      %486 = vmatpush1.msra.mxu0 0.0
      %487 = vmatprep.subr.mxu0 0.0
      %488 = vmatpush1.msra.mxu0 0.0
      %489 = vmatprep.subr.mxu0 0.0
      %490 = vmatpush1.msra.mxu0 0.0
      %491 = vmatprep.subr.mxu0 0.0
      %492 = vmatpush1.msra.mxu0 0.0
      %493 = vmatprep.subr.mxu0 0.0
      %494 = vmatpush1.msra.mxu0 0.0
      %495 = vmatprep.subr.mxu0 0.0
      %496 = vmatpush1.msra.mxu0 0.0
      %497 = vmatprep.subr.mxu0 0.0
      %498 = vmatpush1.msra.mxu0 0.0
      %499 = vmatprep.subr.mxu0 0.0
      %500 = vmatpush1.msra.mxu0 0.0
      %501 = vmatprep.subr.mxu0 0.0
      %502 = vmatpush1.msra.mxu0 0.0
      %503 = vmatprep.mubr.f32.mxu0 0.0
      %504 = vmatmul.mubr.f32.gmra.mrb[0].mxu0 %v434
      %v505 = vpop.f32.mrb[0].mxu0
      %v506 = vadd.f32 0.0, %v505
      %v507 = vpop.f32.mrb[0].mxu0
      %508 = vmatprep.mubr.f32.mxu0 0.0
      %509 = vmatmul.mubr.f32.gmra.mrb[0].mxu0 %v437
      %v510 = vpop.f32.mrb[0].mxu0
      %v511 = vadd.f32 0.0, %v510
      %v512 = vpop.f32.mrb[0].mxu0
      %513 = vdwg.mxu0
      %v514 = vadd.f32 %v397, %v506
      %v515 = vadd.f32 %v402, %v511
      %s516 = scalar_lea.vmem %s1, 48
      %v517 = vld [vmem:[%s516] sm:$0xff]
      %v518 = vld [vmem:[%s516 + $0x8] sm:$0xff]
      %519 = vrot.lane.b32.xlu0 %v196, 106
      %v520 = vpop.permute.xlu0 %519
      %521 = vrot.lane.b32.xlu0 %v197, 106
      %v522 = vpop.permute.xlu0 %521
      %523 = vrot.lane.b32.xlu0 %v198, 106
      %v524 = vpop.permute.xlu0 %523
      %525 = vrot.lane.b32.xlu0 %v199, 106
      %v526 = vpop.permute.xlu0 %525
      %527 = vrot.lane.b32.xlu0 %v200, 106
      %v528 = vpop.permute.xlu0 %527
      %529 = vrot.lane.b32.xlu0 %v201, 106
      %v530 = vpop.permute.xlu0 %529
      %531 = vrot.lane.b32.xlu0 %v202, 106
      %v532 = vpop.permute.xlu0 %531
      %533 = vrot.lane.b32.xlu0 %v203, 106
      %v534 = vpop.permute.xlu0 %533
      %vm535 = vcmask 867328
      %v536 = vsel %vm535, %v520, %v522
      %v537 = vsel %vm535, %v524, %v526
      %v538 = vsel %vm535, %v528, %v530
      %v539 = vsel %vm535, %v532, %v534
      %v545 = vsel %vm242, %v517, 0
      %v548 = vsel %vm242, %v518, 0
      %550 = vmatprep.subr.mxu0 0.0
      %551 = vmatpush1.msra.mxu0 %v536
      %552 = vmatprep.subr.mxu0 0.0
      %553 = vmatpush1.msra.mxu0 %v537
      %554 = vmatprep.subr.mxu0 0.0
      %555 = vmatpush1.msra.mxu0 %v538
      %556 = vmatprep.subr.mxu0 0.0
      %557 = vmatpush1.msra.mxu0 %v539
      %558 = vmatprep.subr.mxu0 0.0
      %559 = vmatpush1.msra.mxu0 0.0
      %560 = vmatprep.subr.mxu0 0.0
      %561 = vmatpush1.msra.mxu0 0.0
      %562 = vmatprep.subr.mxu0 0.0
      %563 = vmatpush1.msra.mxu0 0.0
      %564 = vmatprep.subr.mxu0 0.0
      %565 = vmatpush1.msra.mxu0 0.0
      %566 = vmatprep.subr.mxu0 0.0
      %567 = vmatpush1.msra.mxu0 0.0
      %568 = vmatprep.subr.mxu0 0.0
      %569 = vmatpush1.msra.mxu0 0.0
      %570 = vmatprep.subr.mxu0 0.0
      %571 = vmatpush1.msra.mxu0 0.0
      %572 = vmatprep.subr.mxu0 0.0
      %573 = vmatpush1.msra.mxu0 0.0
      %574 = vmatprep.subr.mxu0 0.0
      %575 = vmatpush1.msra.mxu0 0.0
      %576 = vmatprep.subr.mxu0 0.0
      %577 = vmatpush1.msra.mxu0 0.0
      %578 = vmatprep.subr.mxu0 0.0
      %579 = vmatpush1.msra.mxu0 0.0
      %580 = vmatprep.subr.mxu0 0.0
      %581 = vmatpush1.msra.mxu0 0.0
      %582 = vmatprep.subr.mxu0 0.0
      %583 = vmatpush1.msra.mxu0 0.0
      %584 = vmatprep.subr.mxu0 0.0
      %585 = vmatpush1.msra.mxu0 0.0
      %586 = vmatprep.subr.mxu0 0.0
      %587 = vmatpush1.msra.mxu0 0.0
      %588 = vmatprep.subr.mxu0 0.0
      %589 = vmatpush1.msra.mxu0 0.0
      %590 = vmatprep.subr.mxu0 0.0
      %591 = vmatpush1.msra.mxu0 0.0
      %592 = vmatprep.subr.mxu0 0.0
      %593 = vmatpush1.msra.mxu0 0.0
      %594 = vmatprep.subr.mxu0 0.0
      %595 = vmatpush1.msra.mxu0 0.0
      %596 = vmatprep.subr.mxu0 0.0
      %597 = vmatpush1.msra.mxu0 0.0
      %598 = vmatprep.subr.mxu0 0.0
      %599 = vmatpush1.msra.mxu0 0.0
      %600 = vmatprep.subr.mxu0 0.0
      %601 = vmatpush1.msra.mxu0 0.0
      %602 = vmatprep.subr.mxu0 0.0
      %603 = vmatpush1.msra.mxu0 0.0
      %604 = vmatprep.subr.mxu0 0.0
      %605 = vmatpush1.msra.mxu0 0.0
      %606 = vmatprep.subr.mxu0 0.0
      %607 = vmatpush1.msra.mxu0 0.0
      %608 = vmatprep.subr.mxu0 0.0
      %609 = vmatpush1.msra.mxu0 0.0
      %610 = vmatprep.subr.mxu0 0.0
      %611 = vmatpush1.msra.mxu0 0.0
      %612 = vmatprep.subr.mxu0 0.0
      %613 = vmatpush1.msra.mxu0 0.0
      %614 = vmatprep.mubr.f32.mxu0 0.0
      %615 = vmatmul.mubr.f32.gmra.mrb[0].mxu0 %v545
      %v616 = vpop.f32.mrb[0].mxu0
      %v617 = vadd.f32 0.0, %v616
      %v618 = vpop.f32.mrb[0].mxu0
      %619 = vmatprep.mubr.f32.mxu0 0.0
      %620 = vmatmul.mubr.f32.gmra.mrb[0].mxu0 %v548
      %v621 = vpop.f32.mrb[0].mxu0
      %v622 = vadd.f32 0.0, %v621
      %v623 = vpop.f32.mrb[0].mxu0
      %624 = vdwg.mxu0
      %v625 = vadd.f32 %v514, %v617
      %v626 = vadd.f32 %v515, %v622
      %s627 = scalar_lea.vmem %s1, 64
      %v628 = vld [vmem:[%s627] sm:$0xff]
      %v629 = vld [vmem:[%s627 + $0x8] sm:$0xff]
      %630 = vrot.lane.b32.xlu0 %v196, 105
      %v631 = vpop.permute.xlu0 %630
      %632 = vrot.lane.b32.xlu0 %v197, 105
      %v633 = vpop.permute.xlu0 %632
      %634 = vrot.lane.b32.xlu0 %v198, 105
      %v635 = vpop.permute.xlu0 %634
      %636 = vrot.lane.b32.xlu0 %v199, 105
      %v637 = vpop.permute.xlu0 %636
      %638 = vrot.lane.b32.xlu0 %v200, 105
      %v639 = vpop.permute.xlu0 %638
      %640 = vrot.lane.b32.xlu0 %v201, 105
      %v641 = vpop.permute.xlu0 %640
      %642 = vrot.lane.b32.xlu0 %v202, 105
      %v643 = vpop.permute.xlu0 %642
      %644 = vrot.lane.b32.xlu0 %v203, 105
      %v645 = vpop.permute.xlu0 %644
      %vm646 = vcmask 859136
      %v647 = vsel %vm646, %v631, %v633
      %v648 = vsel %vm646, %v635, %v637
      %v649 = vsel %vm646, %v639, %v641
      %v650 = vsel %vm646, %v643, %v645
      %v656 = vsel %vm242, %v628, 0
      %v659 = vsel %vm242, %v629, 0
      %661 = vmatprep.subr.mxu0 0.0
      %662 = vmatpush1.msra.mxu0 %v647
      %663 = vmatprep.subr.mxu0 0.0
      %664 = vmatpush1.msra.mxu0 %v648
      %665 = vmatprep.subr.mxu0 0.0
      %666 = vmatpush1.msra.mxu0 %v649
      %667 = vmatprep.subr.mxu0 0.0
      %668 = vmatpush1.msra.mxu0 %v650
      %669 = vmatprep.subr.mxu0 0.0
      %670 = vmatpush1.msra.mxu0 0.0
      %671 = vmatprep.subr.mxu0 0.0
      %672 = vmatpush1.msra.mxu0 0.0
      %673 = vmatprep.subr.mxu0 0.0
      %674 = vmatpush1.msra.mxu0 0.0
      %675 = vmatprep.subr.mxu0 0.0
      %676 = vmatpush1.msra.mxu0 0.0
      %677 = vmatprep.subr.mxu0 0.0
      %678 = vmatpush1.msra.mxu0 0.0
      %679 = vmatprep.subr.mxu0 0.0
      %680 = vmatpush1.msra.mxu0 0.0
      %681 = vmatprep.subr.mxu0 0.0
      %682 = vmatpush1.msra.mxu0 0.0
      %683 = vmatprep.subr.mxu0 0.0
      %684 = vmatpush1.msra.mxu0 0.0
      %685 = vmatprep.subr.mxu0 0.0
      %686 = vmatpush1.msra.mxu0 0.0
      %687 = vmatprep.subr.mxu0 0.0
      %688 = vmatpush1.msra.mxu0 0.0
      %689 = vmatprep.subr.mxu0 0.0
      %690 = vmatpush1.msra.mxu0 0.0
      %691 = vmatprep.subr.mxu0 0.0
      %692 = vmatpush1.msra.mxu0 0.0
      %693 = vmatprep.subr.mxu0 0.0
      %694 = vmatpush1.msra.mxu0 0.0
      %695 = vmatprep.subr.mxu0 0.0
      %696 = vmatpush1.msra.mxu0 0.0
      %697 = vmatprep.subr.mxu0 0.0
      %698 = vmatpush1.msra.mxu0 0.0
      %699 = vmatprep.subr.mxu0 0.0
      %700 = vmatpush1.msra.mxu0 0.0
      %701 = vmatprep.subr.mxu0 0.0
      %702 = vmatpush1.msra.mxu0 0.0
      %703 = vmatprep.subr.mxu0 0.0
      %704 = vmatpush1.msra.mxu0 0.0
      %705 = vmatprep.subr.mxu0 0.0
      %706 = vmatpush1.msra.mxu0 0.0
      %707 = vmatprep.subr.mxu0 0.0
      %708 = vmatpush1.msra.mxu0 0.0
      %709 = vmatprep.subr.mxu0 0.0
      %710 = vmatpush1.msra.mxu0 0.0
      %711 = vmatprep.subr.mxu0 0.0
      %712 = vmatpush1.msra.mxu0 0.0
      %713 = vmatprep.subr.mxu0 0.0
      %714 = vmatpush1.msra.mxu0 0.0
      %715 = vmatprep.subr.mxu0 0.0
      %716 = vmatpush1.msra.mxu0 0.0
      %717 = vmatprep.subr.mxu0 0.0
      %718 = vmatpush1.msra.mxu0 0.0
      %719 = vmatprep.subr.mxu0 0.0
      %720 = vmatpush1.msra.mxu0 0.0
      %721 = vmatprep.subr.mxu0 0.0
      %722 = vmatpush1.msra.mxu0 0.0
      %723 = vmatprep.subr.mxu0 0.0
      %724 = vmatpush1.msra.mxu0 0.0
      %725 = vmatprep.mubr.f32.mxu0 0.0
      %726 = vmatmul.mubr.f32.gmra.mrb[0].mxu0 %v656
      %v727 = vpop.f32.mrb[0].mxu0
      %v728 = vadd.f32 0.0, %v727
      %v729 = vpop.f32.mrb[0].mxu0
      %730 = vmatprep.mubr.f32.mxu0 0.0
      %731 = vmatmul.mubr.f32.gmra.mrb[0].mxu0 %v659
      %v732 = vpop.f32.mrb[0].mxu0
      %v733 = vadd.f32 0.0, %v732
      %v734 = vpop.f32.mrb[0].mxu0
      %735 = vdwg.mxu0
      %v736 = vadd.f32 %v625, %v728
      %v737 = vadd.f32 %v626, %v733
      %s738 = scalar_lea.vmem %s1, 80
      %v739 = vld [vmem:[%s738] sm:$0xff]
      %v740 = vld [vmem:[%s738 + $0x8] sm:$0xff]
      %741 = vrot.lane.b32.xlu0 %v196, 104
      %v742 = vpop.permute.xlu0 %741
      %743 = vrot.lane.b32.xlu0 %v197, 104
      %v744 = vpop.permute.xlu0 %743
      %745 = vrot.lane.b32.xlu0 %v198, 104
      %v746 = vpop.permute.xlu0 %745
      %747 = vrot.lane.b32.xlu0 %v199, 104
      %v748 = vpop.permute.xlu0 %747
      %749 = vrot.lane.b32.xlu0 %v200, 104
      %v750 = vpop.permute.xlu0 %749
      %751 = vrot.lane.b32.xlu0 %v201, 104
      %v752 = vpop.permute.xlu0 %751
      %753 = vrot.lane.b32.xlu0 %v202, 104
      %v754 = vpop.permute.xlu0 %753
      %755 = vrot.lane.b32.xlu0 %v203, 104
      %v756 = vpop.permute.xlu0 %755
      %vm757 = vcmask 850944
      %v758 = vsel %vm757, %v742, %v744
      %v759 = vsel %vm757, %v746, %v748
      %v760 = vsel %vm757, %v750, %v752
      %v761 = vsel %vm757, %v754, %v756
      %v767 = vsel %vm242, %v739, 0
      %v770 = vsel %vm242, %v740, 0
      %772 = vmatprep.subr.mxu0 0.0
      %773 = vmatpush1.msra.mxu0 %v758
      %774 = vmatprep.subr.mxu0 0.0
      %775 = vmatpush1.msra.mxu0 %v759
      %776 = vmatprep.subr.mxu0 0.0
      %777 = vmatpush1.msra.mxu0 %v760
      %778 = vmatprep.subr.mxu0 0.0
      %779 = vmatpush1.msra.mxu0 %v761
      %780 = vmatprep.subr.mxu0 0.0
      %781 = vmatpush1.msra.mxu0 0.0
      %782 = vmatprep.subr.mxu0 0.0
      %783 = vmatpush1.msra.mxu0 0.0
      %784 = vmatprep.subr.mxu0 0.0
      %785 = vmatpush1.msra.mxu0 0.0
      %786 = vmatprep.subr.mxu0 0.0
      %787 = vmatpush1.msra.mxu0 0.0
      %788 = vmatprep.subr.mxu0 0.0
      %789 = vmatpush1.msra.mxu0 0.0
      %790 = vmatprep.subr.mxu0 0.0
      %791 = vmatpush1.msra.mxu0 0.0
      %792 = vmatprep.subr.mxu0 0.0
      %793 = vmatpush1.msra.mxu0 0.0
      %794 = vmatprep.subr.mxu0 0.0
      %795 = vmatpush1.msra.mxu0 0.0
      %796 = vmatprep.subr.mxu0 0.0
      %797 = vmatpush1.msra.mxu0 0.0
      %798 = vmatprep.subr.mxu0 0.0
      %799 = vmatpush1.msra.mxu0 0.0
      %800 = vmatprep.subr.mxu0 0.0
      %801 = vmatpush1.msra.mxu0 0.0
      %802 = vmatprep.subr.mxu0 0.0
      %803 = vmatpush1.msra.mxu0 0.0
      %804 = vmatprep.subr.mxu0 0.0
      %805 = vmatpush1.msra.mxu0 0.0
      %806 = vmatprep.subr.mxu0 0.0
      %807 = vmatpush1.msra.mxu0 0.0
      %808 = vmatprep.subr.mxu0 0.0
      %809 = vmatpush1.msra.mxu0 0.0
      %810 = vmatprep.subr.mxu0 0.0
      %811 = vmatpush1.msra.mxu0 0.0
      %812 = vmatprep.subr.mxu0 0.0
      %813 = vmatpush1.msra.mxu0 0.0
      %814 = vmatprep.subr.mxu0 0.0
      %815 = vmatpush1.msra.mxu0 0.0
      %816 = vmatprep.subr.mxu0 0.0
      %817 = vmatpush1.msra.mxu0 0.0
      %818 = vmatprep.subr.mxu0 0.0
      %819 = vmatpush1.msra.mxu0 0.0
      %820 = vmatprep.subr.mxu0 0.0
      %821 = vmatpush1.msra.mxu0 0.0
      %822 = vmatprep.subr.mxu0 0.0
      %823 = vmatpush1.msra.mxu0 0.0
      %824 = vmatprep.subr.mxu0 0.0
      %825 = vmatpush1.msra.mxu0 0.0
      %826 = vmatprep.subr.mxu0 0.0
      %827 = vmatpush1.msra.mxu0 0.0
      %828 = vmatprep.subr.mxu0 0.0
      %829 = vmatpush1.msra.mxu0 0.0
      %830 = vmatprep.subr.mxu0 0.0
      %831 = vmatpush1.msra.mxu0 0.0
      %832 = vmatprep.subr.mxu0 0.0
      %833 = vmatpush1.msra.mxu0 0.0
      %834 = vmatprep.subr.mxu0 0.0
      %835 = vmatpush1.msra.mxu0 0.0
      %836 = vmatprep.mubr.f32.mxu0 0.0
      %837 = vmatmul.mubr.f32.gmra.mrb[0].mxu0 %v767
      %v838 = vpop.f32.mrb[0].mxu0
      %v839 = vadd.f32 0.0, %v838
      %v840 = vpop.f32.mrb[0].mxu0
      %841 = vmatprep.mubr.f32.mxu0 0.0
      %842 = vmatmul.mubr.f32.gmra.mrb[0].mxu0 %v770
      %v843 = vpop.f32.mrb[0].mxu0
      %v844 = vadd.f32 0.0, %v843
      %v845 = vpop.f32.mrb[0].mxu0
      %846 = vdwg.mxu0
      %v847 = vadd.f32 %v736, %v839
      %v848 = vadd.f32 %v737, %v844
      %v849 = vld [vmem:[%s2] sm:$0xff]
      %v850 = vld [vmem:[%s2 + $0x8] sm:$0xff]
      %852 = vset.pattern.permute.xlu0 0
      %853 = vperm.xlu0 %852, %v849
      %v854 = vpop.permute.xlu0 %853
      %857 = vset.pattern.permute.xlu0 0
      %858 = vperm.xlu0 %857, %v850
      %v859 = vpop.permute.xlu0 %858
      %v861 = vadd.f32 %v847, %v854
      %v862 = vadd.f32 %v848, %v859
      %863 = vst [vmem:[%s190] sm:$0xff] %v861
      %864 = vst [vmem:[%s190 + $0x8] sm:$0xff] %v862
      %p865 = scmp.lt.s32.totalorder %s18, 1
      %s866 = scalar_select %p865, %s18, 1
      %p867 = scmp.lt.s32.totalorder %s19, 0
      %s868 = scalar_select %p867, %s19, 0
      %s869 = smul.addr %s866, 2
      %s870 = sadd.s32 %s868, %s869
      %s871 = smul.addr %s870, 8
      %s872 = scalar_lea.vmem %s3, %s871
      // Predicated region
      $region33: #{_phase_decoder_impl.13} parent=31 // pred_check
        %p873 = pneg %p114
      $region34: #{_phase_decoder_impl.13} parent=31 // pred_check_branch
        %875 = sbr.rel (%p873) target = $region36
      $region35: #{_phase_decoder_impl.13} parent=31 // pred_region
        _
      $region36: #{_phase_decoder_impl.13} parent=31 // pred_fallthru
        _
    $region32: #{_phase_decoder_impl.13} parent=5 // pred_fallthru
      _
    %p876 = scmp.le.s32.totalorder 2, %s9
    // Predicated region
    $region37: #{_phase_decoder_impl.13} parent=5 // pred_check
      %p877 = pneg %p876
    $region38: #{_phase_decoder_impl.13} parent=5 // pred_check_branch
      %879 = sbr.rel (%p877) target = $region40
    $region39: #{_phase_decoder_impl.13} parent=5 // pred_region
      %s880 = ssub.s32 %s9, 2
      // Predicated region
      $region41: #{_phase_decoder_impl.13} parent=39 // pred_check
        %p881 = pneg %p120
      $region42: #{_phase_decoder_impl.13} parent=39 // pred_check_branch
        %883 = sbr.rel (%p881) target = $region44
      $region43: #{_phase_decoder_impl.13} parent=39 // pred_region
        %p884 = scmp.lt.s32.totalorder %s20, 1
        %s885 = scalar_select %p884, %s20, 1
        %p886 = scmp.lt.s32.totalorder %s21, 0
        %s887 = scalar_select %p886, %s21, 0
        %s888 = smul.addr %s885, 2
        %s889 = sadd.s32 %s887, %s888
        %s890 = smul.addr %s889, 8
        %s891 = scalar_lea.vmem %s3, %s890
      $region44: #{_phase_decoder_impl.13} parent=39 // pred_fallthru
        _
    $region40: #{_phase_decoder_impl.13} parent=5 // pred_fallthru
      _
  $region6: #{_phase_decoder_impl.13} parent=0 // loop_footer
    %s13 = sadd.s32 1, %s9
  $region7: #{_phase_decoder_impl.13} parent=0 // loop_footer_branch
    %8 = sbr.rel target = $region3
  $region8: #{_phase_decoder_impl.13} parent=0 // loop_exit
    _

// kernel: _phase_decoder_impl.15
$region0: #{_phase_decoder_impl.15}
  #allocation0 [shape = 'u32[]', space=smem, size = 0x4, offset = 0x4, fixed_abs, tag = 'smem constant byte address 0x4 - core index']
  #allocation1 [shape = 'u32[144,128]{1,0:T(1,128)}', space=vmem, size = 0x12000, scoped, tag = 'internal scratch']
  %s0 = inlined_call_operand.vmem [shape: f32[2,48,256], index: 0, kind: input, shape index: {}]
  %s1 = inlined_call_operand.vmem [shape: f32[6,16,48], index: 1, kind: input, shape index: {}]
  %s2 = inlined_call_operand.vmem [shape: f32[16,1], index: 2, kind: input, shape index: {}]
  %s3 = inlined_call_operand.vmem [shape: f32[2,16,128], index: 3, kind: output, shape index: {}]
  %s4 = sld [smem:[#allocation0]]
  $region45: #{_phase_decoder_impl.15} parent=0
    _
  %s6 = ssub.s32 1, %s4
  %s7 = scalar_select 0, %s6, %s4
  loop: start=0, step=1, limit=4
  $region2: #{_phase_decoder_impl.15} parent=0 // loop_pre_header
    _
  $region3: #{_phase_decoder_impl.15} parent=0 // loop_header
    %s9 = sphi 0, %s13
    %p10 = scmp.ge.s32.totalorder %s9, 4
    %s16 = sphi 0, %s28
    %s17 = sphi 0, %s24
    %s18 = sphi 0, %s16
    %s19 = sphi 0, %s17
    %s20 = sphi 0, %s18
    %s21 = sphi 0, %s19
    %s31 = sphi 0, %s33
    %s34 = sphi 0, %s31
    %s35 = sphi 0, %s34
    %s51 = sphi 0, %s35
    %s55 = sphi 0, %s55
    %s57 = sphi 0, %s55
    %s58 = sphi 0, %s57
    %s72 = sphi 0, %s58
    %s76 = sphi 0, %s76
    %s78 = sphi 0, %s76
    %s79 = sphi 0, %s78
    %s93 = sphi 0, %s79
    %s101 = sphi 0, %s103
    %s104 = sphi 0, %s101
    %s105 = sphi 0, %s104
    %s121 = sphi 0, %s105
  $region4: #{_phase_decoder_impl.15} parent=0 // loop_header_branch
    %12 = sbr.rel (%p10) target = $region8
  $region5: #{_phase_decoder_impl.15} parent=0 // loop_body
    %s14 = ssub.s32 %s9, 1
    %s15 = ssub.s32 %s9, 2
    %s22 = sadd.s32 1, %s17
    %p23 = scmp.ge.s32.totalorder %s22, 1
    %s24 = scalar_select %p23, 0, %s22
    %s25 = sadd.s32 1, %s16
    %s26 = scalar_select %p23, %s25, %s16
    %p27 = scmp.ge.s32.totalorder %s26, 2
    %s28 = scalar_select %p27, 0, %s26
    %s29 = ssub.s32 %s16, %s28
    %p30 = scmp.eq.s32.totalorder %s29, 0
    %s32 = sadd.s32 %s31, 1
    %s33 = scalar_select %p30, %s31, %s32
    %p36 = pneg %p30
    %p37 = scmp.eq.s32.totalorder %s9, 1
    %p38 = por %p36, %p37
    %p39 = scmp.ne.s32.totalorder %s31, %s34
    %p40 = scmp.eq.s32.totalorder %s9, 0
    %p41 = por %p39, %p40
    %p42 = scmp.ne.s32.totalorder %s31, %s34
    %p43 = scmp.eq.s32.totalorder %s14, 1
    %p44 = por %p42, %p43
    %p45 = scmp.ne.s32.totalorder %s34, %s35
    %p46 = scmp.eq.s32.totalorder %s14, 0
    %p47 = por %p45, %p46
    %p48 = scmp.ne.s32.totalorder %s34, %s35
    %p49 = scmp.eq.s32.totalorder %s15, 1
    %p50 = por %p48, %p49
    %p52 = scmp.ne.s32.totalorder %s35, %s51
    %p53 = scmp.eq.s32.totalorder %s15, 0
    %p54 = por %p52, %p53
    %s56 = sadd.s32 %s55, 1
    %p59 = scmp.eq.s32.totalorder %s9, 1
    %p60 = scmp.ne.s32.totalorder %s55, %s57
    %p61 = scmp.eq.s32.totalorder %s9, 0
    %p62 = por %p60, %p61
    %p63 = scmp.ne.s32.totalorder %s55, %s57
    %p64 = scmp.eq.s32.totalorder %s14, 1
    %p65 = por %p63, %p64
    %p66 = scmp.ne.s32.totalorder %s57, %s58
    %p67 = scmp.eq.s32.totalorder %s14, 0
    %p68 = por %p66, %p67
    %p69 = scmp.ne.s32.totalorder %s57, %s58
    %p70 = scmp.eq.s32.totalorder %s15, 1
    %p71 = por %p69, %p70
    %p73 = scmp.ne.s32.totalorder %s58, %s72
    %p74 = scmp.eq.s32.totalorder %s15, 0
    %p75 = por %p73, %p74
    %s77 = sadd.s32 %s76, 1
    %p80 = scmp.eq.s32.totalorder %s9, 1
    %p81 = scmp.ne.s32.totalorder %s76, %s78
    %p82 = scmp.eq.s32.totalorder %s9, 0
    %p83 = por %p81, %p82
    %p84 = scmp.ne.s32.totalorder %s76, %s78
    %p85 = scmp.eq.s32.totalorder %s14, 1
    %p86 = por %p84, %p85
    %p87 = scmp.ne.s32.totalorder %s78, %s79
    %p88 = scmp.eq.s32.totalorder %s14, 0
    %p89 = por %p87, %p88
    %p90 = scmp.ne.s32.totalorder %s78, %s79
    %p91 = scmp.eq.s32.totalorder %s15, 1
    %p92 = por %p90, %p91
    %p94 = scmp.ne.s32.totalorder %s79, %s93
    %p95 = scmp.eq.s32.totalorder %s15, 0
    %p96 = por %p94, %p95
    %s97 = ssub.s32 %s16, %s28
    %s98 = ssub.s32 %s17, %s24
    %s99 = sor.u32 %s97, %s98
    %p100 = scmp.eq.s32.totalorder %s99, 0
    %s102 = sadd.s32 %s101, 1
    %s103 = scalar_select %p100, %s101, %s102
    %p106 = pneg %p100
    %p107 = scmp.eq.s32.totalorder %s9, 1
    %p108 = por %p106, %p107
    %p109 = scmp.ne.s32.totalorder %s101, %s104
    %p110 = scmp.eq.s32.totalorder %s9, 0
    %p111 = por %p109, %p110
    %p112 = scmp.ne.s32.totalorder %s101, %s104
    %p113 = scmp.eq.s32.totalorder %s14, 1
    %p114 = por %p112, %p113
    %p115 = scmp.ne.s32.totalorder %s104, %s105
    %p116 = scmp.eq.s32.totalorder %s14, 0
    %p117 = por %p115, %p116
    %p118 = scmp.ne.s32.totalorder %s104, %s105
    %p119 = scmp.eq.s32.totalorder %s15, 1
    %p120 = por %p118, %p119
    %p122 = scmp.ne.s32.totalorder %s105, %s121
    %p123 = scmp.eq.s32.totalorder %s15, 0
    %p124 = por %p122, %p123
    %p125 = scmp.le.s32.totalorder 1, %s9
    %p126 = scmp.lt.s32.totalorder %s9, 3
    %p127 = pnand %p125, %p126
    %p128 = pneg %p127
    // Predicated region
    $region9: #{_phase_decoder_impl.15} parent=5 // pred_check
      _
    $region10: #{_phase_decoder_impl.15} parent=5 // pred_check_branch
      %130 = sbr.rel (%p127) target = $region12
    $region11: #{_phase_decoder_impl.15} parent=5 // pred_region
      %s131 = ssub.s32 %s9, 1
      // Predicated region
      $region13: #{_phase_decoder_impl.15} parent=11 // pred_check
        %p132 = pneg %p68
      $region14: #{_phase_decoder_impl.15} parent=11 // pred_check_branch
        %134 = sbr.rel (%p132) target = $region16
      $region15: #{_phase_decoder_impl.15} parent=11 // pred_region
        _
      $region16: #{_phase_decoder_impl.15} parent=11 // pred_fallthru
        _
      // Predicated region
      $region17: #{_phase_decoder_impl.15} parent=11 // pred_check
        %p135 = pneg %p89
      $region18: #{_phase_decoder_impl.15} parent=11 // pred_check_branch
        %137 = sbr.rel (%p135) target = $region20
      $region19: #{_phase_decoder_impl.15} parent=11 // pred_region
        _
      $region20: #{_phase_decoder_impl.15} parent=11 // pred_fallthru
        _
    $region12: #{_phase_decoder_impl.15} parent=5 // pred_fallthru
      _
    %p138 = scmp.lt.s32.totalorder %s9, 2
    // Predicated region
    $region21: #{_phase_decoder_impl.15} parent=5 // pred_check
      %p139 = pneg %p138
    $region22: #{_phase_decoder_impl.15} parent=5 // pred_check_branch
      %141 = sbr.rel (%p139) target = $region24
    $region23: #{_phase_decoder_impl.15} parent=5 // pred_region
      // Predicated region
      $region25: #{_phase_decoder_impl.15} parent=23 // pred_check
        %p142 = pneg %p41
      $region26: #{_phase_decoder_impl.15} parent=23 // pred_check_branch
        %144 = sbr.rel (%p142) target = $region28
      $region27: #{_phase_decoder_impl.15} parent=23 // pred_region
        %p145 = scmp.lt.s32.totalorder %s16, 1
        %s146 = scalar_select %p145, %s16, 1
        %s147 = smul.addr %s146, 12
        %s148 = smul.addr %s147, 8
        %s149 = scalar_lea.vmem %s0, %s148
      $region28: #{_phase_decoder_impl.15} parent=23 // pred_fallthru
        _
    $region24: #{_phase_decoder_impl.15} parent=5 // pred_fallthru
      _
    %p150 = scmp.le.s32.totalorder 1, %s9
    %p151 = scmp.lt.s32.totalorder %s9, 3
    %p152 = pnand %p150, %p151
    %p153 = pneg %p152
    // Predicated region
    $region29: #{_phase_decoder_impl.15} parent=5 // pred_check
      _
    $region30: #{_phase_decoder_impl.15} parent=5 // pred_check_branch
      %155 = sbr.rel (%p152) target = $region32
    $region31: #{_phase_decoder_impl.15} parent=5 // pred_region
      %s156 = ssub.s32 %s9, 1
      %p157 = scmp.lt.s32.totalorder %s18, 1
      %s158 = scalar_select %p157, %s18, 1
      %s159 = smul.addr %s158, 12
      %s160 = smul.addr %s159, 8
      %s161 = scalar_lea.vmem %s0, %s160
      %p162 = pneg %p47
      %p163 = pneg %p44
      %p164 = pneg %p68
      %p165 = pneg %p65
      %p166 = pneg %p89
      %p167 = pneg %p86
      %p168 = pneg %p117
      %p169 = pneg %p114
      %p170 = scmp.lt.s32.totalorder %s18, 1
      %s171 = scalar_select %p170, %s18, 1
      %p172 = scmp.lt.s32.totalorder %s19, 0
      %s173 = scalar_select %p172, %s19, 0
      %s174 = smul.addr %s171, 2
      %s175 = sadd.s32 %s173, %s174
      %s176 = smul.addr %s175, 8
      %s177 = scalar_lea.vmem %s3, %s176
      %p178 = scmp.lt.s32.totalorder %s18, 1
      %s179 = scalar_select %p178, %s18, 1
      %s180 = smul.addr %s179, 12
      %s181 = smul.addr %s180, 8
      %s182 = scalar_lea.vmem %s0, %s181
      %p183 = scmp.lt.s32.totalorder %s18, 1
      %s184 = scalar_select %p183, %s18, 1
      %p185 = scmp.lt.s32.totalorder %s19, 0
      %s186 = scalar_select %p185, %s19, 0
      %s187 = smul.addr %s184, 2
      %s188 = sadd.s32 %s186, %s187
      %s189 = smul.addr %s188, 8
      %s190 = scalar_lea.vmem %s3, %s189
      %s191 = smul.u32 %s19, 128
      %s192 = sshra.s32 %s191, 7
      %s193 = sand.u32 %s191, 127
      %s194 = smul.addr %s192, 8
      %s195 = scalar_lea.vmem %s182, %s194
      %v196 = vld [vmem:[%s195] sm:$0xff]
      %v197 = vld [vmem:[%s195 + $0x8] sm:$0xff]
      %v198 = vld [vmem:[%s195 + $0x10] sm:$0xff]
      %v199 = vld [vmem:[%s195 + $0x18] sm:$0xff]
      %v200 = vld [vmem:[%s195 + $0x20] sm:$0xff]
      %v201 = vld [vmem:[%s195 + $0x28] sm:$0xff]
      %v202 = vld [vmem:[%s195 + $0x30] sm:$0xff]
      %v203 = vld [vmem:[%s195 + $0x38] sm:$0xff]
      %v204 = vld [vmem:[%s195 + $0x40] sm:$0xff]
      %v205 = vld [vmem:[%s195 + $0x48] sm:$0xff]
      %v206 = vld [vmem:[%s195 + $0x50] sm:$0xff]
      %v207 = vld [vmem:[%s195 + $0x58] sm:$0xff]
      %v208 = vld [vmem:[%s1] sm:$0xff]
      %v209 = vld [vmem:[%s1 + $0x8] sm:$0xff]
      %s210 = scalar_lea.vmem %s1, 16
      %v211 = vld [vmem:[%s210] sm:$0xff]
      %v212 = vld [vmem:[%s210 + $0x8] sm:$0xff]
      %225 = vrot.lane.b32.xlu0 %v196, 127
      %v226 = vpop.permute.xlu0 %225
      %227 = vrot.lane.b32.xlu0 %v197, 127
      %v228 = vpop.permute.xlu0 %227
      %229 = vrot.lane.b32.xlu0 %v198, 127
      %v230 = vpop.permute.xlu0 %229
      %231 = vrot.lane.b32.xlu0 %v199, 127
      %v232 = vpop.permute.xlu0 %231
      %233 = vrot.lane.b32.xlu0 %v200, 127
      %v234 = vpop.permute.xlu0 %233
      %235 = vrot.lane.b32.xlu0 %v201, 127
      %v236 = vpop.permute.xlu0 %235
      %237 = vrot.lane.b32.xlu0 %v202, 127
      %v238 = vpop.permute.xlu0 %237
      %239 = vrot.lane.b32.xlu0 %v203, 127
      %v240 = vpop.permute.xlu0 %239
      %241 = vrot.lane.b32.xlu0 %v204, 127
      %v242 = vpop.permute.xlu0 %241
      %243 = vrot.lane.b32.xlu0 %v205, 127
      %v244 = vpop.permute.xlu0 %243
      %245 = vrot.lane.b32.xlu0 %v206, 127
      %v246 = vpop.permute.xlu0 %245
      %247 = vrot.lane.b32.xlu0 %v207, 127
      %v248 = vpop.permute.xlu0 %247
      %vm249 = vcmask 1039360
      %v250 = vsel %vm249, %v226, %v228
      %v251 = vsel %vm249, %v230, %v232
      %v252 = vsel %vm249, %v234, %v236
      %v253 = vsel %vm249, %v238, %v240
      %v254 = vsel %vm249, %v242, %v244
      %v255 = vsel %vm249, %v246, %v248
      %vm262 = vcmask 392192
      %v264 = vsel %vm262, %v211, 0
      %v267 = vsel %vm262, %v212, 0
      %269 = vmatprep.subr.mxu0 0.0
      %270 = vmatpush1.msra.mxu0 %v250
      %271 = vmatprep.subr.mxu0 0.0
      %272 = vmatpush1.msra.mxu0 %v251
      %273 = vmatprep.subr.mxu0 0.0
      %274 = vmatpush1.msra.mxu0 %v252
      %275 = vmatprep.subr.mxu0 0.0
      %276 = vmatpush1.msra.mxu0 %v253
      %277 = vmatprep.subr.mxu0 0.0
      %278 = vmatpush1.msra.mxu0 %v254
      %279 = vmatprep.subr.mxu0 0.0
      %280 = vmatpush1.msra.mxu0 %v255
      %281 = vmatprep.subr.mxu0 0.0
      %282 = vmatpush1.msra.mxu0 0.0
      %283 = vmatprep.subr.mxu0 0.0
      %284 = vmatpush1.msra.mxu0 0.0
      %285 = vmatprep.subr.mxu0 0.0
      %286 = vmatpush1.msra.mxu0 0.0
      %287 = vmatprep.subr.mxu0 0.0
      %288 = vmatpush1.msra.mxu0 0.0
      %289 = vmatprep.subr.mxu0 0.0
      %290 = vmatpush1.msra.mxu0 0.0
      %291 = vmatprep.subr.mxu0 0.0
      %292 = vmatpush1.msra.mxu0 0.0
      %293 = vmatprep.subr.mxu0 0.0
      %294 = vmatpush1.msra.mxu0 0.0
      %295 = vmatprep.subr.mxu0 0.0
      %296 = vmatpush1.msra.mxu0 0.0
      %297 = vmatprep.subr.mxu0 0.0
      %298 = vmatpush1.msra.mxu0 0.0
      %299 = vmatprep.subr.mxu0 0.0
      %300 = vmatpush1.msra.mxu0 0.0
      %301 = vmatprep.subr.mxu0 0.0
      %302 = vmatpush1.msra.mxu0 0.0
      %303 = vmatprep.subr.mxu0 0.0
      %304 = vmatpush1.msra.mxu0 0.0
      %305 = vmatprep.subr.mxu0 0.0
      %306 = vmatpush1.msra.mxu0 0.0
      %307 = vmatprep.subr.mxu0 0.0
      %308 = vmatpush1.msra.mxu0 0.0
      %309 = vmatprep.subr.mxu0 0.0
      %310 = vmatpush1.msra.mxu0 0.0
      %311 = vmatprep.subr.mxu0 0.0
      %312 = vmatpush1.msra.mxu0 0.0
      %313 = vmatprep.subr.mxu0 0.0
      %314 = vmatpush1.msra.mxu0 0.0
      %315 = vmatprep.subr.mxu0 0.0
      %316 = vmatpush1.msra.mxu0 0.0
      %317 = vmatprep.subr.mxu0 0.0
      %318 = vmatpush1.msra.mxu0 0.0
      %319 = vmatprep.subr.mxu0 0.0
      %320 = vmatpush1.msra.mxu0 0.0
      %321 = vmatprep.subr.mxu0 0.0
      %322 = vmatpush1.msra.mxu0 0.0
      %323 = vmatprep.subr.mxu0 0.0
      %324 = vmatpush1.msra.mxu0 0.0
      %325 = vmatprep.subr.mxu0 0.0
      %326 = vmatpush1.msra.mxu0 0.0
      %327 = vmatprep.subr.mxu0 0.0
      %328 = vmatpush1.msra.mxu0 0.0
      %329 = vmatprep.subr.mxu0 0.0
      %330 = vmatpush1.msra.mxu0 0.0
      %331 = vmatprep.subr.mxu0 0.0
      %332 = vmatpush1.msra.mxu0 0.0
      %333 = vmatprep.mubr.f32.mxu0 0.0
      %334 = vmatmul.mubr.f32.gmra.mrb[0].mxu0 %v264
      %v335 = vpop.f32.mrb[0].mxu0
      %v336 = vadd.f32 0.0, %v335
      %v337 = vpop.f32.mrb[0].mxu0
      %338 = vmatprep.mubr.f32.mxu0 0.0
      %339 = vmatmul.mubr.f32.gmra.mrb[0].mxu0 %v267
      %v340 = vpop.f32.mrb[0].mxu0
      %v341 = vadd.f32 0.0, %v340
      %v342 = vpop.f32.mrb[0].mxu0
      %343 = vdwg.mxu0
      %v345 = vsel %vm262, %v208, 0
      %v348 = vsel %vm262, %v209, 0
      %350 = vmatprep.subr.mxu0 0.0
      %351 = vmatpush1.msra.mxu0 %v196
      %352 = vmatprep.subr.mxu0 0.0
      %353 = vmatpush1.msra.mxu0 %v198
      %354 = vmatprep.subr.mxu0 0.0
      %355 = vmatpush1.msra.mxu0 %v200
      %356 = vmatprep.subr.mxu0 0.0
      %357 = vmatpush1.msra.mxu0 %v202
      %358 = vmatprep.subr.mxu0 0.0
      %359 = vmatpush1.msra.mxu0 %v204
      %360 = vmatprep.subr.mxu0 0.0
      %361 = vmatpush1.msra.mxu0 %v206
      %362 = vmatprep.subr.mxu0 0.0
      %363 = vmatpush1.msra.mxu0 0.0
      %364 = vmatprep.subr.mxu0 0.0
      %365 = vmatpush1.msra.mxu0 0.0
      %366 = vmatprep.subr.mxu0 0.0
      %367 = vmatpush1.msra.mxu0 0.0
      %368 = vmatprep.subr.mxu0 0.0
      %369 = vmatpush1.msra.mxu0 0.0
      %370 = vmatprep.subr.mxu0 0.0
      %371 = vmatpush1.msra.mxu0 0.0
      %372 = vmatprep.subr.mxu0 0.0
      %373 = vmatpush1.msra.mxu0 0.0
      %374 = vmatprep.subr.mxu0 0.0
      %375 = vmatpush1.msra.mxu0 0.0
      %376 = vmatprep.subr.mxu0 0.0
      %377 = vmatpush1.msra.mxu0 0.0
      %378 = vmatprep.subr.mxu0 0.0
      %379 = vmatpush1.msra.mxu0 0.0
      %380 = vmatprep.subr.mxu0 0.0
      %381 = vmatpush1.msra.mxu0 0.0
      %382 = vmatprep.subr.mxu0 0.0
      %383 = vmatpush1.msra.mxu0 0.0
      %384 = vmatprep.subr.mxu0 0.0
      %385 = vmatpush1.msra.mxu0 0.0
      %386 = vmatprep.subr.mxu0 0.0
      %387 = vmatpush1.msra.mxu0 0.0
      %388 = vmatprep.subr.mxu0 0.0
      %389 = vmatpush1.msra.mxu0 0.0
      %390 = vmatprep.subr.mxu0 0.0
      %391 = vmatpush1.msra.mxu0 0.0
      %392 = vmatprep.subr.mxu0 0.0
      %393 = vmatpush1.msra.mxu0 0.0
      %394 = vmatprep.subr.mxu0 0.0
      %395 = vmatpush1.msra.mxu0 0.0
      %396 = vmatprep.subr.mxu0 0.0
      %397 = vmatpush1.msra.mxu0 0.0
      %398 = vmatprep.subr.mxu0 0.0
      %399 = vmatpush1.msra.mxu0 0.0
      %400 = vmatprep.subr.mxu0 0.0
      %401 = vmatpush1.msra.mxu0 0.0
      %402 = vmatprep.subr.mxu0 0.0
      %403 = vmatpush1.msra.mxu0 0.0
      %404 = vmatprep.subr.mxu0 0.0
      %405 = vmatpush1.msra.mxu0 0.0
      %406 = vmatprep.subr.mxu0 0.0
      %407 = vmatpush1.msra.mxu0 0.0
      %408 = vmatprep.subr.mxu0 0.0
      %409 = vmatpush1.msra.mxu0 0.0
      %410 = vmatprep.subr.mxu0 0.0
      %411 = vmatpush1.msra.mxu0 0.0
      %412 = vmatprep.subr.mxu0 0.0
      %413 = vmatpush1.msra.mxu0 0.0
      %414 = vmatprep.mubr.f32.mxu0 0.0
      %415 = vmatmul.mubr.f32.gmra.mrb[0].mxu0 %v345
      %v416 = vpop.f32.mrb[0].mxu0
      %v417 = vadd.f32 %v336, %v416
      %v418 = vpop.f32.mrb[0].mxu0
      %419 = vmatprep.mubr.f32.mxu0 0.0
      %420 = vmatmul.mubr.f32.gmra.mrb[0].mxu0 %v348
      %v421 = vpop.f32.mrb[0].mxu0
      %v422 = vadd.f32 %v341, %v421
      %v423 = vpop.f32.mrb[0].mxu0
      %424 = vdwg.mxu0
      %s425 = scalar_lea.vmem %s1, 32
      %v426 = vld [vmem:[%s425] sm:$0xff]
      %v427 = vld [vmem:[%s425 + $0x8] sm:$0xff]
      %428 = vrot.lane.b32.xlu0 %v196, 126
      %v429 = vpop.permute.xlu0 %428
      %430 = vrot.lane.b32.xlu0 %v197, 126
      %v431 = vpop.permute.xlu0 %430
      %432 = vrot.lane.b32.xlu0 %v198, 126
      %v433 = vpop.permute.xlu0 %432
      %434 = vrot.lane.b32.xlu0 %v199, 126
      %v435 = vpop.permute.xlu0 %434
      %436 = vrot.lane.b32.xlu0 %v200, 126
      %v437 = vpop.permute.xlu0 %436
      %438 = vrot.lane.b32.xlu0 %v201, 126
      %v439 = vpop.permute.xlu0 %438
      %440 = vrot.lane.b32.xlu0 %v202, 126
      %v441 = vpop.permute.xlu0 %440
      %442 = vrot.lane.b32.xlu0 %v203, 126
      %v443 = vpop.permute.xlu0 %442
      %444 = vrot.lane.b32.xlu0 %v204, 126
      %v445 = vpop.permute.xlu0 %444
      %446 = vrot.lane.b32.xlu0 %v205, 126
      %v447 = vpop.permute.xlu0 %446
      %448 = vrot.lane.b32.xlu0 %v206, 126
      %v449 = vpop.permute.xlu0 %448
      %450 = vrot.lane.b32.xlu0 %v207, 126
      %v451 = vpop.permute.xlu0 %450
      %vm452 = vcmask 1031168
      %v453 = vsel %vm452, %v429, %v431
      %v454 = vsel %vm452, %v433, %v435
      %v455 = vsel %vm452, %v437, %v439
      %v456 = vsel %vm452, %v441, %v443
      %v457 = vsel %vm452, %v445, %v447
      %v458 = vsel %vm452, %v449, %v451
      %v466 = vsel %vm262, %v426, 0
      %v469 = vsel %vm262, %v427, 0
      %471 = vmatprep.subr.mxu0 0.0
      %472 = vmatpush1.msra.mxu0 %v453
      %473 = vmatprep.subr.mxu0 0.0
      %474 = vmatpush1.msra.mxu0 %v454
      %475 = vmatprep.subr.mxu0 0.0
      %476 = vmatpush1.msra.mxu0 %v455
      %477 = vmatprep.subr.mxu0 0.0
      %478 = vmatpush1.msra.mxu0 %v456
      %479 = vmatprep.subr.mxu0 0.0
      %480 = vmatpush1.msra.mxu0 %v457
      %481 = vmatprep.subr.mxu0 0.0
      %482 = vmatpush1.msra.mxu0 %v458
      %483 = vmatprep.subr.mxu0 0.0
      %484 = vmatpush1.msra.mxu0 0.0
      %485 = vmatprep.subr.mxu0 0.0
      %486 = vmatpush1.msra.mxu0 0.0
      %487 = vmatprep.subr.mxu0 0.0
      %488 = vmatpush1.msra.mxu0 0.0
      %489 = vmatprep.subr.mxu0 0.0
      %490 = vmatpush1.msra.mxu0 0.0
      %491 = vmatprep.subr.mxu0 0.0
      %492 = vmatpush1.msra.mxu0 0.0
      %493 = vmatprep.subr.mxu0 0.0
      %494 = vmatpush1.msra.mxu0 0.0
      %495 = vmatprep.subr.mxu0 0.0
      %496 = vmatpush1.msra.mxu0 0.0
      %497 = vmatprep.subr.mxu0 0.0
      %498 = vmatpush1.msra.mxu0 0.0
      %499 = vmatprep.subr.mxu0 0.0
      %500 = vmatpush1.msra.mxu0 0.0
      %501 = vmatprep.subr.mxu0 0.0
      %502 = vmatpush1.msra.mxu0 0.0
      %503 = vmatprep.subr.mxu0 0.0
      %504 = vmatpush1.msra.mxu0 0.0
      %505 = vmatprep.subr.mxu0 0.0
      %506 = vmatpush1.msra.mxu0 0.0
      %507 = vmatprep.subr.mxu0 0.0
      %508 = vmatpush1.msra.mxu0 0.0
      %509 = vmatprep.subr.mxu0 0.0
      %510 = vmatpush1.msra.mxu0 0.0
      %511 = vmatprep.subr.mxu0 0.0
      %512 = vmatpush1.msra.mxu0 0.0
      %513 = vmatprep.subr.mxu0 0.0
      %514 = vmatpush1.msra.mxu0 0.0
      %515 = vmatprep.subr.mxu0 0.0
      %516 = vmatpush1.msra.mxu0 0.0
      %517 = vmatprep.subr.mxu0 0.0
      %518 = vmatpush1.msra.mxu0 0.0
      %519 = vmatprep.subr.mxu0 0.0
      %520 = vmatpush1.msra.mxu0 0.0
      %521 = vmatprep.subr.mxu0 0.0
      %522 = vmatpush1.msra.mxu0 0.0
      %523 = vmatprep.subr.mxu0 0.0
      %524 = vmatpush1.msra.mxu0 0.0
      %525 = vmatprep.subr.mxu0 0.0
      %526 = vmatpush1.msra.mxu0 0.0
      %527 = vmatprep.subr.mxu0 0.0
      %528 = vmatpush1.msra.mxu0 0.0
      %529 = vmatprep.subr.mxu0 0.0
      %530 = vmatpush1.msra.mxu0 0.0
      %531 = vmatprep.subr.mxu0 0.0
      %532 = vmatpush1.msra.mxu0 0.0
      %533 = vmatprep.subr.mxu0 0.0
      %534 = vmatpush1.msra.mxu0 0.0
      %535 = vmatprep.mubr.f32.mxu0 0.0
      %536 = vmatmul.mubr.f32.gmra.mrb[0].mxu0 %v466
      %v537 = vpop.f32.mrb[0].mxu0
      %v538 = vadd.f32 0.0, %v537
      %v539 = vpop.f32.mrb[0].mxu0
      %540 = vmatprep.mubr.f32.mxu0 0.0
      %541 = vmatmul.mubr.f32.gmra.mrb[0].mxu0 %v469
      %v542 = vpop.f32.mrb[0].mxu0
      %v543 = vadd.f32 0.0, %v542
      %v544 = vpop.f32.mrb[0].mxu0
      %545 = vdwg.mxu0
      %v546 = vadd.f32 %v417, %v538
      %v547 = vadd.f32 %v422, %v543
      %s548 = scalar_lea.vmem %s1, 48
      %v549 = vld [vmem:[%s548] sm:$0xff]
      %v550 = vld [vmem:[%s548 + $0x8] sm:$0xff]
      %551 = vrot.lane.b32.xlu0 %v196, 84
      %v552 = vpop.permute.xlu0 %551
      %553 = vrot.lane.b32.xlu0 %v197, 84
      %v554 = vpop.permute.xlu0 %553
      %555 = vrot.lane.b32.xlu0 %v198, 84
      %v556 = vpop.permute.xlu0 %555
      %557 = vrot.lane.b32.xlu0 %v199, 84
      %v558 = vpop.permute.xlu0 %557
      %559 = vrot.lane.b32.xlu0 %v200, 84
      %v560 = vpop.permute.xlu0 %559
      %561 = vrot.lane.b32.xlu0 %v201, 84
      %v562 = vpop.permute.xlu0 %561
      %563 = vrot.lane.b32.xlu0 %v202, 84
      %v564 = vpop.permute.xlu0 %563
      %565 = vrot.lane.b32.xlu0 %v203, 84
      %v566 = vpop.permute.xlu0 %565
      %567 = vrot.lane.b32.xlu0 %v204, 84
      %v568 = vpop.permute.xlu0 %567
      %569 = vrot.lane.b32.xlu0 %v205, 84
      %v570 = vpop.permute.xlu0 %569
      %571 = vrot.lane.b32.xlu0 %v206, 84
      %v572 = vpop.permute.xlu0 %571
      %573 = vrot.lane.b32.xlu0 %v207, 84
      %v574 = vpop.permute.xlu0 %573
      %vm575 = vcmask 687104
      %v576 = vsel %vm575, %v552, %v554
      %v577 = vsel %vm575, %v556, %v558
      %v578 = vsel %vm575, %v560, %v562
      %v579 = vsel %vm575, %v564, %v566
      %v580 = vsel %vm575, %v568, %v570
      %v581 = vsel %vm575, %v572, %v574
      %v589 = vsel %vm262, %v549, 0
      %v592 = vsel %vm262, %v550, 0
      %594 = vmatprep.subr.mxu0 0.0
      %595 = vmatpush1.msra.mxu0 %v576
      %596 = vmatprep.subr.mxu0 0.0
      %597 = vmatpush1.msra.mxu0 %v577
      %598 = vmatprep.subr.mxu0 0.0
      %599 = vmatpush1.msra.mxu0 %v578
      %600 = vmatprep.subr.mxu0 0.0
      %601 = vmatpush1.msra.mxu0 %v579
      %602 = vmatprep.subr.mxu0 0.0
      %603 = vmatpush1.msra.mxu0 %v580
      %604 = vmatprep.subr.mxu0 0.0
      %605 = vmatpush1.msra.mxu0 %v581
      %606 = vmatprep.subr.mxu0 0.0
      %607 = vmatpush1.msra.mxu0 0.0
      %608 = vmatprep.subr.mxu0 0.0
      %609 = vmatpush1.msra.mxu0 0.0
      %610 = vmatprep.subr.mxu0 0.0
      %611 = vmatpush1.msra.mxu0 0.0
      %612 = vmatprep.subr.mxu0 0.0
      %613 = vmatpush1.msra.mxu0 0.0
      %614 = vmatprep.subr.mxu0 0.0
      %615 = vmatpush1.msra.mxu0 0.0
      %616 = vmatprep.subr.mxu0 0.0
      %617 = vmatpush1.msra.mxu0 0.0
      %618 = vmatprep.subr.mxu0 0.0
      %619 = vmatpush1.msra.mxu0 0.0
      %620 = vmatprep.subr.mxu0 0.0
      %621 = vmatpush1.msra.mxu0 0.0
      %622 = vmatprep.subr.mxu0 0.0
      %623 = vmatpush1.msra.mxu0 0.0
      %624 = vmatprep.subr.mxu0 0.0
      %625 = vmatpush1.msra.mxu0 0.0
      %626 = vmatprep.subr.mxu0 0.0
      %627 = vmatpush1.msra.mxu0 0.0
      %628 = vmatprep.subr.mxu0 0.0
      %629 = vmatpush1.msra.mxu0 0.0
      %630 = vmatprep.subr.mxu0 0.0
      %631 = vmatpush1.msra.mxu0 0.0
      %632 = vmatprep.subr.mxu0 0.0
      %633 = vmatpush1.msra.mxu0 0.0
      %634 = vmatprep.subr.mxu0 0.0
      %635 = vmatpush1.msra.mxu0 0.0
      %636 = vmatprep.subr.mxu0 0.0
      %637 = vmatpush1.msra.mxu0 0.0
      %638 = vmatprep.subr.mxu0 0.0
      %639 = vmatpush1.msra.mxu0 0.0
      %640 = vmatprep.subr.mxu0 0.0
      %641 = vmatpush1.msra.mxu0 0.0
      %642 = vmatprep.subr.mxu0 0.0
      %643 = vmatpush1.msra.mxu0 0.0
      %644 = vmatprep.subr.mxu0 0.0
      %645 = vmatpush1.msra.mxu0 0.0
      %646 = vmatprep.subr.mxu0 0.0
      %647 = vmatpush1.msra.mxu0 0.0
      %648 = vmatprep.subr.mxu0 0.0
      %649 = vmatpush1.msra.mxu0 0.0
      %650 = vmatprep.subr.mxu0 0.0
      %651 = vmatpush1.msra.mxu0 0.0
      %652 = vmatprep.subr.mxu0 0.0
      %653 = vmatpush1.msra.mxu0 0.0
      %654 = vmatprep.subr.mxu0 0.0
      %655 = vmatpush1.msra.mxu0 0.0
      %656 = vmatprep.subr.mxu0 0.0
      %657 = vmatpush1.msra.mxu0 0.0
      %658 = vmatprep.mubr.f32.mxu0 0.0
      %659 = vmatmul.mubr.f32.gmra.mrb[0].mxu0 %v589
      %v660 = vpop.f32.mrb[0].mxu0
      %v661 = vadd.f32 0.0, %v660
      %v662 = vpop.f32.mrb[0].mxu0
      %663 = vmatprep.mubr.f32.mxu0 0.0
      %664 = vmatmul.mubr.f32.gmra.mrb[0].mxu0 %v592
      %v665 = vpop.f32.mrb[0].mxu0
      %v666 = vadd.f32 0.0, %v665
      %v667 = vpop.f32.mrb[0].mxu0
      %668 = vdwg.mxu0
      %v669 = vadd.f32 %v546, %v661
      %v670 = vadd.f32 %v547, %v666
      %s671 = scalar_lea.vmem %s1, 64
      %v672 = vld [vmem:[%s671] sm:$0xff]
      %v673 = vld [vmem:[%s671 + $0x8] sm:$0xff]
      %674 = vrot.lane.b32.xlu0 %v196, 83
      %v675 = vpop.permute.xlu0 %674
      %676 = vrot.lane.b32.xlu0 %v197, 83
      %v677 = vpop.permute.xlu0 %676
      %678 = vrot.lane.b32.xlu0 %v198, 83
      %v679 = vpop.permute.xlu0 %678
      %680 = vrot.lane.b32.xlu0 %v199, 83
      %v681 = vpop.permute.xlu0 %680
      %682 = vrot.lane.b32.xlu0 %v200, 83
      %v683 = vpop.permute.xlu0 %682
      %684 = vrot.lane.b32.xlu0 %v201, 83
      %v685 = vpop.permute.xlu0 %684
      %686 = vrot.lane.b32.xlu0 %v202, 83
      %v687 = vpop.permute.xlu0 %686
      %688 = vrot.lane.b32.xlu0 %v203, 83
      %v689 = vpop.permute.xlu0 %688
      %690 = vrot.lane.b32.xlu0 %v204, 83
      %v691 = vpop.permute.xlu0 %690
      %692 = vrot.lane.b32.xlu0 %v205, 83
      %v693 = vpop.permute.xlu0 %692
      %694 = vrot.lane.b32.xlu0 %v206, 83
      %v695 = vpop.permute.xlu0 %694
      %696 = vrot.lane.b32.xlu0 %v207, 83
      %v697 = vpop.permute.xlu0 %696
      %vm698 = vcmask 678912
      %v699 = vsel %vm698, %v675, %v677
      %v700 = vsel %vm698, %v679, %v681
      %v701 = vsel %vm698, %v683, %v685
      %v702 = vsel %vm698, %v687, %v689
      %v703 = vsel %vm698, %v691, %v693
      %v704 = vsel %vm698, %v695, %v697
      %v712 = vsel %vm262, %v672, 0
      %v715 = vsel %vm262, %v673, 0
      %717 = vmatprep.subr.mxu0 0.0
      %718 = vmatpush1.msra.mxu0 %v699
      %719 = vmatprep.subr.mxu0 0.0
      %720 = vmatpush1.msra.mxu0 %v700
      %721 = vmatprep.subr.mxu0 0.0
      %722 = vmatpush1.msra.mxu0 %v701
      %723 = vmatprep.subr.mxu0 0.0
      %724 = vmatpush1.msra.mxu0 %v702
      %725 = vmatprep.subr.mxu0 0.0
      %726 = vmatpush1.msra.mxu0 %v703
      %727 = vmatprep.subr.mxu0 0.0
      %728 = vmatpush1.msra.mxu0 %v704
      %729 = vmatprep.subr.mxu0 0.0
      %730 = vmatpush1.msra.mxu0 0.0
      %731 = vmatprep.subr.mxu0 0.0
      %732 = vmatpush1.msra.mxu0 0.0
      %733 = vmatprep.subr.mxu0 0.0
      %734 = vmatpush1.msra.mxu0 0.0
      %735 = vmatprep.subr.mxu0 0.0
      %736 = vmatpush1.msra.mxu0 0.0
      %737 = vmatprep.subr.mxu0 0.0
      %738 = vmatpush1.msra.mxu0 0.0
      %739 = vmatprep.subr.mxu0 0.0
      %740 = vmatpush1.msra.mxu0 0.0
      %741 = vmatprep.subr.mxu0 0.0
      %742 = vmatpush1.msra.mxu0 0.0
      %743 = vmatprep.subr.mxu0 0.0
      %744 = vmatpush1.msra.mxu0 0.0
      %745 = vmatprep.subr.mxu0 0.0
      %746 = vmatpush1.msra.mxu0 0.0
      %747 = vmatprep.subr.mxu0 0.0
      %748 = vmatpush1.msra.mxu0 0.0
      %749 = vmatprep.subr.mxu0 0.0
      %750 = vmatpush1.msra.mxu0 0.0
      %751 = vmatprep.subr.mxu0 0.0
      %752 = vmatpush1.msra.mxu0 0.0
      %753 = vmatprep.subr.mxu0 0.0
      %754 = vmatpush1.msra.mxu0 0.0
      %755 = vmatprep.subr.mxu0 0.0
      %756 = vmatpush1.msra.mxu0 0.0
      %757 = vmatprep.subr.mxu0 0.0
      %758 = vmatpush1.msra.mxu0 0.0
      %759 = vmatprep.subr.mxu0 0.0
      %760 = vmatpush1.msra.mxu0 0.0
      %761 = vmatprep.subr.mxu0 0.0
      %762 = vmatpush1.msra.mxu0 0.0
      %763 = vmatprep.subr.mxu0 0.0
      %764 = vmatpush1.msra.mxu0 0.0
      %765 = vmatprep.subr.mxu0 0.0
      %766 = vmatpush1.msra.mxu0 0.0
      %767 = vmatprep.subr.mxu0 0.0
      %768 = vmatpush1.msra.mxu0 0.0
      %769 = vmatprep.subr.mxu0 0.0
      %770 = vmatpush1.msra.mxu0 0.0
      %771 = vmatprep.subr.mxu0 0.0
      %772 = vmatpush1.msra.mxu0 0.0
      %773 = vmatprep.subr.mxu0 0.0
      %774 = vmatpush1.msra.mxu0 0.0
      %775 = vmatprep.subr.mxu0 0.0
      %776 = vmatpush1.msra.mxu0 0.0
      %777 = vmatprep.subr.mxu0 0.0
      %778 = vmatpush1.msra.mxu0 0.0
      %779 = vmatprep.subr.mxu0 0.0
      %780 = vmatpush1.msra.mxu0 0.0
      %781 = vmatprep.mubr.f32.mxu0 0.0
      %782 = vmatmul.mubr.f32.gmra.mrb[0].mxu0 %v712
      %v783 = vpop.f32.mrb[0].mxu0
      %v784 = vadd.f32 0.0, %v783
      %v785 = vpop.f32.mrb[0].mxu0
      %786 = vmatprep.mubr.f32.mxu0 0.0
      %787 = vmatmul.mubr.f32.gmra.mrb[0].mxu0 %v715
      %v788 = vpop.f32.mrb[0].mxu0
      %v789 = vadd.f32 0.0, %v788
      %v790 = vpop.f32.mrb[0].mxu0
      %791 = vdwg.mxu0
      %v792 = vadd.f32 %v669, %v784
      %v793 = vadd.f32 %v670, %v789
      %s794 = scalar_lea.vmem %s1, 80
      %v795 = vld [vmem:[%s794] sm:$0xff]
      %v796 = vld [vmem:[%s794 + $0x8] sm:$0xff]
      %797 = vrot.lane.b32.xlu0 %v196, 82
      %v798 = vpop.permute.xlu0 %797
      %799 = vrot.lane.b32.xlu0 %v197, 82
      %v800 = vpop.permute.xlu0 %799
      %801 = vrot.lane.b32.xlu0 %v198, 82
      %v802 = vpop.permute.xlu0 %801
      %803 = vrot.lane.b32.xlu0 %v199, 82
      %v804 = vpop.permute.xlu0 %803
      %805 = vrot.lane.b32.xlu0 %v200, 82
      %v806 = vpop.permute.xlu0 %805
      %807 = vrot.lane.b32.xlu0 %v201, 82
      %v808 = vpop.permute.xlu0 %807
      %809 = vrot.lane.b32.xlu0 %v202, 82
      %v810 = vpop.permute.xlu0 %809
      %811 = vrot.lane.b32.xlu0 %v203, 82
      %v812 = vpop.permute.xlu0 %811
      %813 = vrot.lane.b32.xlu0 %v204, 82
      %v814 = vpop.permute.xlu0 %813
      %815 = vrot.lane.b32.xlu0 %v205, 82
      %v816 = vpop.permute.xlu0 %815
      %817 = vrot.lane.b32.xlu0 %v206, 82
      %v818 = vpop.permute.xlu0 %817
      %819 = vrot.lane.b32.xlu0 %v207, 82
      %v820 = vpop.permute.xlu0 %819
      %vm821 = vcmask 670720
      %v822 = vsel %vm821, %v798, %v800
      %v823 = vsel %vm821, %v802, %v804
      %v824 = vsel %vm821, %v806, %v808
      %v825 = vsel %vm821, %v810, %v812
      %v826 = vsel %vm821, %v814, %v816
      %v827 = vsel %vm821, %v818, %v820
      %v835 = vsel %vm262, %v795, 0
      %v838 = vsel %vm262, %v796, 0
      %840 = vmatprep.subr.mxu0 0.0
      %841 = vmatpush1.msra.mxu0 %v822
      %842 = vmatprep.subr.mxu0 0.0
      %843 = vmatpush1.msra.mxu0 %v823
      %844 = vmatprep.subr.mxu0 0.0
      %845 = vmatpush1.msra.mxu0 %v824
      %846 = vmatprep.subr.mxu0 0.0
      %847 = vmatpush1.msra.mxu0 %v825
      %848 = vmatprep.subr.mxu0 0.0
      %849 = vmatpush1.msra.mxu0 %v826
      %850 = vmatprep.subr.mxu0 0.0
      %851 = vmatpush1.msra.mxu0 %v827
      %852 = vmatprep.subr.mxu0 0.0
      %853 = vmatpush1.msra.mxu0 0.0
      %854 = vmatprep.subr.mxu0 0.0
      %855 = vmatpush1.msra.mxu0 0.0
      %856 = vmatprep.subr.mxu0 0.0
      %857 = vmatpush1.msra.mxu0 0.0
      %858 = vmatprep.subr.mxu0 0.0
      %859 = vmatpush1.msra.mxu0 0.0
      %860 = vmatprep.subr.mxu0 0.0
      %861 = vmatpush1.msra.mxu0 0.0
      %862 = vmatprep.subr.mxu0 0.0
      %863 = vmatpush1.msra.mxu0 0.0
      %864 = vmatprep.subr.mxu0 0.0
      %865 = vmatpush1.msra.mxu0 0.0
      %866 = vmatprep.subr.mxu0 0.0
      %867 = vmatpush1.msra.mxu0 0.0
      %868 = vmatprep.subr.mxu0 0.0
      %869 = vmatpush1.msra.mxu0 0.0
      %870 = vmatprep.subr.mxu0 0.0
      %871 = vmatpush1.msra.mxu0 0.0
      %872 = vmatprep.subr.mxu0 0.0
      %873 = vmatpush1.msra.mxu0 0.0
      %874 = vmatprep.subr.mxu0 0.0
      %875 = vmatpush1.msra.mxu0 0.0
      %876 = vmatprep.subr.mxu0 0.0
      %877 = vmatpush1.msra.mxu0 0.0
      %878 = vmatprep.subr.mxu0 0.0
      %879 = vmatpush1.msra.mxu0 0.0
      %880 = vmatprep.subr.mxu0 0.0
      %881 = vmatpush1.msra.mxu0 0.0
      %882 = vmatprep.subr.mxu0 0.0
      %883 = vmatpush1.msra.mxu0 0.0
      %884 = vmatprep.subr.mxu0 0.0
      %885 = vmatpush1.msra.mxu0 0.0
      %886 = vmatprep.subr.mxu0 0.0
      %887 = vmatpush1.msra.mxu0 0.0
      %888 = vmatprep.subr.mxu0 0.0
      %889 = vmatpush1.msra.mxu0 0.0
      %890 = vmatprep.subr.mxu0 0.0
      %891 = vmatpush1.msra.mxu0 0.0
      %892 = vmatprep.subr.mxu0 0.0
      %893 = vmatpush1.msra.mxu0 0.0
      %894 = vmatprep.subr.mxu0 0.0
      %895 = vmatpush1.msra.mxu0 0.0
      %896 = vmatprep.subr.mxu0 0.0
      %897 = vmatpush1.msra.mxu0 0.0
      %898 = vmatprep.subr.mxu0 0.0
      %899 = vmatpush1.msra.mxu0 0.0
      %900 = vmatprep.subr.mxu0 0.0
      %901 = vmatpush1.msra.mxu0 0.0
      %902 = vmatprep.subr.mxu0 0.0
      %903 = vmatpush1.msra.mxu0 0.0
      %904 = vmatprep.mubr.f32.mxu0 0.0
      %905 = vmatmul.mubr.f32.gmra.mrb[0].mxu0 %v835
      %v906 = vpop.f32.mrb[0].mxu0
      %v907 = vadd.f32 0.0, %v906
      %v908 = vpop.f32.mrb[0].mxu0
      %909 = vmatprep.mubr.f32.mxu0 0.0
      %910 = vmatmul.mubr.f32.gmra.mrb[0].mxu0 %v838
      %v911 = vpop.f32.mrb[0].mxu0
      %v912 = vadd.f32 0.0, %v911
      %v913 = vpop.f32.mrb[0].mxu0
      %914 = vdwg.mxu0
      %v915 = vadd.f32 %v792, %v907
      %v916 = vadd.f32 %v793, %v912
      %v917 = vld [vmem:[%s2] sm:$0xff]
      %v918 = vld [vmem:[%s2 + $0x8] sm:$0xff]
      %920 = vset.pattern.permute.xlu0 0
      %921 = vperm.xlu0 %920, %v917
      %v922 = vpop.permute.xlu0 %921
      %925 = vset.pattern.permute.xlu0 0
      %926 = vperm.xlu0 %925, %v918
      %v927 = vpop.permute.xlu0 %926
      %v929 = vadd.f32 %v915, %v922
      %v930 = vadd.f32 %v916, %v927
      %931 = vst [vmem:[%s190] sm:$0xff] %v929
      %932 = vst [vmem:[%s190 + $0x8] sm:$0xff] %v930
      %p933 = scmp.lt.s32.totalorder %s18, 1
      %s934 = scalar_select %p933, %s18, 1
      %p935 = scmp.lt.s32.totalorder %s19, 0
      %s936 = scalar_select %p935, %s19, 0
      %s937 = smul.addr %s934, 2
      %s938 = sadd.s32 %s936, %s937
      %s939 = smul.addr %s938, 8
      %s940 = scalar_lea.vmem %s3, %s939
      // Predicated region
      $region33: #{_phase_decoder_impl.15} parent=31 // pred_check
        %p941 = pneg %p114
      $region34: #{_phase_decoder_impl.15} parent=31 // pred_check_branch
        %943 = sbr.rel (%p941) target = $region36
      $region35: #{_phase_decoder_impl.15} parent=31 // pred_region
        _
      $region36: #{_phase_decoder_impl.15} parent=31 // pred_fallthru
        _
    $region32: #{_phase_decoder_impl.15} parent=5 // pred_fallthru
      _
    %p944 = scmp.le.s32.totalorder 2, %s9
    // Predicated region
    $region37: #{_phase_decoder_impl.15} parent=5 // pred_check
      %p945 = pneg %p944
    $region38: #{_phase_decoder_impl.15} parent=5 // pred_check_branch
      %947 = sbr.rel (%p945) target = $region40
    $region39: #{_phase_decoder_impl.15} parent=5 // pred_region
      %s948 = ssub.s32 %s9, 2
      // Predicated region
      $region41: #{_phase_decoder_impl.15} parent=39 // pred_check
        %p949 = pneg %p120
      $region42: #{_phase_decoder_impl.15} parent=39 // pred_check_branch
        %951 = sbr.rel (%p949) target = $region44
      $region43: #{_phase_decoder_impl.15} parent=39 // pred_region
        %p952 = scmp.lt.s32.totalorder %s20, 1
        %s953 = scalar_select %p952, %s20, 1
        %p954 = scmp.lt.s32.totalorder %s21, 0
        %s955 = scalar_select %p954, %s21, 0
        %s956 = smul.addr %s953, 2
        %s957 = sadd.s32 %s955, %s956
        %s958 = smul.addr %s957, 8
        %s959 = scalar_lea.vmem %s3, %s958
      $region44: #{_phase_decoder_impl.15} parent=39 // pred_fallthru
        _
    $region40: #{_phase_decoder_impl.15} parent=5 // pred_fallthru
      _
  $region6: #{_phase_decoder_impl.15} parent=0 // loop_footer
    %s13 = sadd.s32 1, %s9
  $region7: #{_phase_decoder_impl.15} parent=0 // loop_footer_branch
    %8 = sbr.rel target = $region3
  $region8: #{_phase_decoder_impl.15} parent=0 // loop_exit
    _

// kernel: _phase_decoder_impl.17
$region0: #{_phase_decoder_impl.17}
  #allocation0 [shape = 'u32[]', space=smem, size = 0x4, offset = 0x4, fixed_abs, tag = 'smem constant byte address 0x4 - core index']
  #allocation1 [shape = 'u32[144,128]{1,0:T(1,128)}', space=vmem, size = 0x12000, scoped, tag = 'internal scratch']
  %s0 = inlined_call_operand.vmem [shape: f32[2,64,256], index: 0, kind: input, shape index: {}]
  %s1 = inlined_call_operand.vmem [shape: f32[6,16,64], index: 1, kind: input, shape index: {}]
  %s2 = inlined_call_operand.vmem [shape: f32[16,1], index: 2, kind: input, shape index: {}]
  %s3 = inlined_call_operand.vmem [shape: f32[2,16,128], index: 3, kind: output, shape index: {}]
  %s4 = sld [smem:[#allocation0]]
  $region45: #{_phase_decoder_impl.17} parent=0
    _
  %s6 = ssub.s32 1, %s4
  %s7 = scalar_select 0, %s6, %s4
  loop: start=0, step=1, limit=4
  $region2: #{_phase_decoder_impl.17} parent=0 // loop_pre_header
    _
  $region3: #{_phase_decoder_impl.17} parent=0 // loop_header
    %s9 = sphi 0, %s13
    %p10 = scmp.ge.s32.totalorder %s9, 4
    %s16 = sphi 0, %s28
    %s17 = sphi 0, %s24
    %s18 = sphi 0, %s16
    %s19 = sphi 0, %s17
    %s20 = sphi 0, %s18
    %s21 = sphi 0, %s19
    %s31 = sphi 0, %s33
    %s34 = sphi 0, %s31
    %s35 = sphi 0, %s34
    %s51 = sphi 0, %s35
    %s55 = sphi 0, %s55
    %s57 = sphi 0, %s55
    %s58 = sphi 0, %s57
    %s72 = sphi 0, %s58
    %s76 = sphi 0, %s76
    %s78 = sphi 0, %s76
    %s79 = sphi 0, %s78
    %s93 = sphi 0, %s79
    %s101 = sphi 0, %s103
    %s104 = sphi 0, %s101
    %s105 = sphi 0, %s104
    %s121 = sphi 0, %s105
  $region4: #{_phase_decoder_impl.17} parent=0 // loop_header_branch
    %12 = sbr.rel (%p10) target = $region8
  $region5: #{_phase_decoder_impl.17} parent=0 // loop_body
    %s14 = ssub.s32 %s9, 1
    %s15 = ssub.s32 %s9, 2
    %s22 = sadd.s32 1, %s17
    %p23 = scmp.ge.s32.totalorder %s22, 1
    %s24 = scalar_select %p23, 0, %s22
    %s25 = sadd.s32 1, %s16
    %s26 = scalar_select %p23, %s25, %s16
    %p27 = scmp.ge.s32.totalorder %s26, 2
    %s28 = scalar_select %p27, 0, %s26
    %s29 = ssub.s32 %s16, %s28
    %p30 = scmp.eq.s32.totalorder %s29, 0
    %s32 = sadd.s32 %s31, 1
    %s33 = scalar_select %p30, %s31, %s32
    %p36 = pneg %p30
    %p37 = scmp.eq.s32.totalorder %s9, 1
    %p38 = por %p36, %p37
    %p39 = scmp.ne.s32.totalorder %s31, %s34
    %p40 = scmp.eq.s32.totalorder %s9, 0
    %p41 = por %p39, %p40
    %p42 = scmp.ne.s32.totalorder %s31, %s34
    %p43 = scmp.eq.s32.totalorder %s14, 1
    %p44 = por %p42, %p43
    %p45 = scmp.ne.s32.totalorder %s34, %s35
    %p46 = scmp.eq.s32.totalorder %s14, 0
    %p47 = por %p45, %p46
    %p48 = scmp.ne.s32.totalorder %s34, %s35
    %p49 = scmp.eq.s32.totalorder %s15, 1
    %p50 = por %p48, %p49
    %p52 = scmp.ne.s32.totalorder %s35, %s51
    %p53 = scmp.eq.s32.totalorder %s15, 0
    %p54 = por %p52, %p53
    %s56 = sadd.s32 %s55, 1
    %p59 = scmp.eq.s32.totalorder %s9, 1
    %p60 = scmp.ne.s32.totalorder %s55, %s57
    %p61 = scmp.eq.s32.totalorder %s9, 0
    %p62 = por %p60, %p61
    %p63 = scmp.ne.s32.totalorder %s55, %s57
    %p64 = scmp.eq.s32.totalorder %s14, 1
    %p65 = por %p63, %p64
    %p66 = scmp.ne.s32.totalorder %s57, %s58
    %p67 = scmp.eq.s32.totalorder %s14, 0
    %p68 = por %p66, %p67
    %p69 = scmp.ne.s32.totalorder %s57, %s58
    %p70 = scmp.eq.s32.totalorder %s15, 1
    %p71 = por %p69, %p70
    %p73 = scmp.ne.s32.totalorder %s58, %s72
    %p74 = scmp.eq.s32.totalorder %s15, 0
    %p75 = por %p73, %p74
    %s77 = sadd.s32 %s76, 1
    %p80 = scmp.eq.s32.totalorder %s9, 1
    %p81 = scmp.ne.s32.totalorder %s76, %s78
    %p82 = scmp.eq.s32.totalorder %s9, 0
    %p83 = por %p81, %p82
    %p84 = scmp.ne.s32.totalorder %s76, %s78
    %p85 = scmp.eq.s32.totalorder %s14, 1
    %p86 = por %p84, %p85
    %p87 = scmp.ne.s32.totalorder %s78, %s79
    %p88 = scmp.eq.s32.totalorder %s14, 0
    %p89 = por %p87, %p88
    %p90 = scmp.ne.s32.totalorder %s78, %s79
    %p91 = scmp.eq.s32.totalorder %s15, 1
    %p92 = por %p90, %p91
    %p94 = scmp.ne.s32.totalorder %s79, %s93
    %p95 = scmp.eq.s32.totalorder %s15, 0
    %p96 = por %p94, %p95
    %s97 = ssub.s32 %s16, %s28
    %s98 = ssub.s32 %s17, %s24
    %s99 = sor.u32 %s97, %s98
    %p100 = scmp.eq.s32.totalorder %s99, 0
    %s102 = sadd.s32 %s101, 1
    %s103 = scalar_select %p100, %s101, %s102
    %p106 = pneg %p100
    %p107 = scmp.eq.s32.totalorder %s9, 1
    %p108 = por %p106, %p107
    %p109 = scmp.ne.s32.totalorder %s101, %s104
    %p110 = scmp.eq.s32.totalorder %s9, 0
    %p111 = por %p109, %p110
    %p112 = scmp.ne.s32.totalorder %s101, %s104
    %p113 = scmp.eq.s32.totalorder %s14, 1
    %p114 = por %p112, %p113
    %p115 = scmp.ne.s32.totalorder %s104, %s105
    %p116 = scmp.eq.s32.totalorder %s14, 0
    %p117 = por %p115, %p116
    %p118 = scmp.ne.s32.totalorder %s104, %s105
    %p119 = scmp.eq.s32.totalorder %s15, 1
    %p120 = por %p118, %p119
    %p122 = scmp.ne.s32.totalorder %s105, %s121
    %p123 = scmp.eq.s32.totalorder %s15, 0
    %p124 = por %p122, %p123
    %p125 = scmp.le.s32.totalorder 1, %s9
    %p126 = scmp.lt.s32.totalorder %s9, 3
    %p127 = pnand %p125, %p126
    %p128 = pneg %p127
    // Predicated region
    $region9: #{_phase_decoder_impl.17} parent=5 // pred_check
      _
    $region10: #{_phase_decoder_impl.17} parent=5 // pred_check_branch
      %130 = sbr.rel (%p127) target = $region12
    $region11: #{_phase_decoder_impl.17} parent=5 // pred_region
      %s131 = ssub.s32 %s9, 1
      // Predicated region
      $region13: #{_phase_decoder_impl.17} parent=11 // pred_check
        %p132 = pneg %p68
      $region14: #{_phase_decoder_impl.17} parent=11 // pred_check_branch
        %134 = sbr.rel (%p132) target = $region16
      $region15: #{_phase_decoder_impl.17} parent=11 // pred_region
        _
      $region16: #{_phase_decoder_impl.17} parent=11 // pred_fallthru
        _
      // Predicated region
      $region17: #{_phase_decoder_impl.17} parent=11 // pred_check
        %p135 = pneg %p89
      $region18: #{_phase_decoder_impl.17} parent=11 // pred_check_branch
        %137 = sbr.rel (%p135) target = $region20
      $region19: #{_phase_decoder_impl.17} parent=11 // pred_region
        _
      $region20: #{_phase_decoder_impl.17} parent=11 // pred_fallthru
        _
    $region12: #{_phase_decoder_impl.17} parent=5 // pred_fallthru
      _
    %p138 = scmp.lt.s32.totalorder %s9, 2
    // Predicated region
    $region21: #{_phase_decoder_impl.17} parent=5 // pred_check
      %p139 = pneg %p138
    $region22: #{_phase_decoder_impl.17} parent=5 // pred_check_branch
      %141 = sbr.rel (%p139) target = $region24
    $region23: #{_phase_decoder_impl.17} parent=5 // pred_region
      // Predicated region
      $region25: #{_phase_decoder_impl.17} parent=23 // pred_check
        %p142 = pneg %p41
      $region26: #{_phase_decoder_impl.17} parent=23 // pred_check_branch
        %144 = sbr.rel (%p142) target = $region28
      $region27: #{_phase_decoder_impl.17} parent=23 // pred_region
        %p145 = scmp.lt.s32.totalorder %s16, 1
        %s146 = scalar_select %p145, %s16, 1
        %s147 = smul.addr %s146, 16
        %s148 = smul.addr %s147, 8
        %s149 = scalar_lea.vmem %s0, %s148
      $region28: #{_phase_decoder_impl.17} parent=23 // pred_fallthru
        _
    $region24: #{_phase_decoder_impl.17} parent=5 // pred_fallthru
      _
    %p150 = scmp.le.s32.totalorder 1, %s9
    %p151 = scmp.lt.s32.totalorder %s9, 3
    %p152 = pnand %p150, %p151
    %p153 = pneg %p152
    // Predicated region
    $region29: #{_phase_decoder_impl.17} parent=5 // pred_check
      _
    $region30: #{_phase_decoder_impl.17} parent=5 // pred_check_branch
      %155 = sbr.rel (%p152) target = $region32
    $region31: #{_phase_decoder_impl.17} parent=5 // pred_region
      %s156 = ssub.s32 %s9, 1
      %p157 = scmp.lt.s32.totalorder %s18, 1
      %s158 = scalar_select %p157, %s18, 1
      %s159 = smul.addr %s158, 16
      %s160 = smul.addr %s159, 8
      %s161 = scalar_lea.vmem %s0, %s160
      %p162 = pneg %p47
      %p163 = pneg %p44
      %p164 = pneg %p68
      %p165 = pneg %p65
      %p166 = pneg %p89
      %p167 = pneg %p86
      %p168 = pneg %p117
      %p169 = pneg %p114
      %p170 = scmp.lt.s32.totalorder %s18, 1
      %s171 = scalar_select %p170, %s18, 1
      %p172 = scmp.lt.s32.totalorder %s19, 0
      %s173 = scalar_select %p172, %s19, 0
      %s174 = smul.addr %s171, 2
      %s175 = sadd.s32 %s173, %s174
      %s176 = smul.addr %s175, 8
      %s177 = scalar_lea.vmem %s3, %s176
      %p178 = scmp.lt.s32.totalorder %s18, 1
      %s179 = scalar_select %p178, %s18, 1
      %s180 = smul.addr %s179, 16
      %s181 = smul.addr %s180, 8
      %s182 = scalar_lea.vmem %s0, %s181
      %p183 = scmp.lt.s32.totalorder %s18, 1
      %s184 = scalar_select %p183, %s18, 1
      %p185 = scmp.lt.s32.totalorder %s19, 0
      %s186 = scalar_select %p185, %s19, 0
      %s187 = smul.addr %s184, 2
      %s188 = sadd.s32 %s186, %s187
      %s189 = smul.addr %s188, 8
      %s190 = scalar_lea.vmem %s3, %s189
      %s191 = smul.u32 %s19, 128
      %s192 = sshra.s32 %s191, 7
      %s193 = sand.u32 %s191, 127
      %s194 = smul.addr %s192, 8
      %s195 = scalar_lea.vmem %s182, %s194
      %v196 = vld [vmem:[%s195] sm:$0xff]
      %v197 = vld [vmem:[%s195 + $0x8] sm:$0xff]
      %v198 = vld [vmem:[%s195 + $0x10] sm:$0xff]
      %v199 = vld [vmem:[%s195 + $0x18] sm:$0xff]
      %v200 = vld [vmem:[%s195 + $0x20] sm:$0xff]
      %v201 = vld [vmem:[%s195 + $0x28] sm:$0xff]
      %v202 = vld [vmem:[%s195 + $0x30] sm:$0xff]
      %v203 = vld [vmem:[%s195 + $0x38] sm:$0xff]
      %v204 = vld [vmem:[%s195 + $0x40] sm:$0xff]
      %v205 = vld [vmem:[%s195 + $0x48] sm:$0xff]
      %v206 = vld [vmem:[%s195 + $0x50] sm:$0xff]
      %v207 = vld [vmem:[%s195 + $0x58] sm:$0xff]
      %v208 = vld [vmem:[%s195 + $0x60] sm:$0xff]
      %v209 = vld [vmem:[%s195 + $0x68] sm:$0xff]
      %v210 = vld [vmem:[%s195 + $0x70] sm:$0xff]
      %v211 = vld [vmem:[%s195 + $0x78] sm:$0xff]
      %v212 = vld [vmem:[%s1] sm:$0xff]
      %v213 = vld [vmem:[%s1 + $0x8] sm:$0xff]
      %s214 = scalar_lea.vmem %s1, 16
      %v215 = vld [vmem:[%s214] sm:$0xff]
      %v216 = vld [vmem:[%s214 + $0x8] sm:$0xff]
      %233 = vrot.lane.b32.xlu0 %v196, 127
      %v234 = vpop.permute.xlu0 %233
      %235 = vrot.lane.b32.xlu0 %v197, 127
      %v236 = vpop.permute.xlu0 %235
      %237 = vrot.lane.b32.xlu0 %v198, 127
      %v238 = vpop.permute.xlu0 %237
      %239 = vrot.lane.b32.xlu0 %v199, 127
      %v240 = vpop.permute.xlu0 %239
      %241 = vrot.lane.b32.xlu0 %v200, 127
      %v242 = vpop.permute.xlu0 %241
      %243 = vrot.lane.b32.xlu0 %v201, 127
      %v244 = vpop.permute.xlu0 %243
      %245 = vrot.lane.b32.xlu0 %v202, 127
      %v246 = vpop.permute.xlu0 %245
      %247 = vrot.lane.b32.xlu0 %v203, 127
      %v248 = vpop.permute.xlu0 %247
      %249 = vrot.lane.b32.xlu0 %v204, 127
      %v250 = vpop.permute.xlu0 %249
      %251 = vrot.lane.b32.xlu0 %v205, 127
      %v252 = vpop.permute.xlu0 %251
      %253 = vrot.lane.b32.xlu0 %v206, 127
      %v254 = vpop.permute.xlu0 %253
      %255 = vrot.lane.b32.xlu0 %v207, 127
      %v256 = vpop.permute.xlu0 %255
      %257 = vrot.lane.b32.xlu0 %v208, 127
      %v258 = vpop.permute.xlu0 %257
      %259 = vrot.lane.b32.xlu0 %v209, 127
      %v260 = vpop.permute.xlu0 %259
      %261 = vrot.lane.b32.xlu0 %v210, 127
      %v262 = vpop.permute.xlu0 %261
      %263 = vrot.lane.b32.xlu0 %v211, 127
      %v264 = vpop.permute.xlu0 %263
      %vm265 = vcmask 1039360
      %v266 = vsel %vm265, %v234, %v236
      %v267 = vsel %vm265, %v238, %v240
      %v268 = vsel %vm265, %v242, %v244
      %v269 = vsel %vm265, %v246, %v248
      %v270 = vsel %vm265, %v250, %v252
      %v271 = vsel %vm265, %v254, %v256
      %v272 = vsel %vm265, %v258, %v260
      %v273 = vsel %vm265, %v262, %v264
      %vm282 = vcmask 523264
      %v284 = vsel %vm282, %v215, 0
      %v287 = vsel %vm282, %v216, 0
      %289 = vmatprep.subr.mxu0 0.0
      %290 = vmatpush1.msra.mxu0 %v266
      %291 = vmatprep.subr.mxu0 0.0
      %292 = vmatpush1.msra.mxu0 %v267
      %293 = vmatprep.subr.mxu0 0.0
      %294 = vmatpush1.msra.mxu0 %v268
      %295 = vmatprep.subr.mxu0 0.0
      %296 = vmatpush1.msra.mxu0 %v269
      %297 = vmatprep.subr.mxu0 0.0
      %298 = vmatpush1.msra.mxu0 %v270
      %299 = vmatprep.subr.mxu0 0.0
      %300 = vmatpush1.msra.mxu0 %v271
      %301 = vmatprep.subr.mxu0 0.0
      %302 = vmatpush1.msra.mxu0 %v272
      %303 = vmatprep.subr.mxu0 0.0
      %304 = vmatpush1.msra.mxu0 %v273
      %305 = vmatprep.subr.mxu0 0.0
      %306 = vmatpush1.msra.mxu0 0.0
      %307 = vmatprep.subr.mxu0 0.0
      %308 = vmatpush1.msra.mxu0 0.0
      %309 = vmatprep.subr.mxu0 0.0
      %310 = vmatpush1.msra.mxu0 0.0
      %311 = vmatprep.subr.mxu0 0.0
      %312 = vmatpush1.msra.mxu0 0.0
      %313 = vmatprep.subr.mxu0 0.0
      %314 = vmatpush1.msra.mxu0 0.0
      %315 = vmatprep.subr.mxu0 0.0
      %316 = vmatpush1.msra.mxu0 0.0
      %317 = vmatprep.subr.mxu0 0.0
      %318 = vmatpush1.msra.mxu0 0.0
      %319 = vmatprep.subr.mxu0 0.0
      %320 = vmatpush1.msra.mxu0 0.0
      %321 = vmatprep.subr.mxu0 0.0
      %322 = vmatpush1.msra.mxu0 0.0
      %323 = vmatprep.subr.mxu0 0.0
      %324 = vmatpush1.msra.mxu0 0.0
      %325 = vmatprep.subr.mxu0 0.0
      %326 = vmatpush1.msra.mxu0 0.0
      %327 = vmatprep.subr.mxu0 0.0
      %328 = vmatpush1.msra.mxu0 0.0
      %329 = vmatprep.subr.mxu0 0.0
      %330 = vmatpush1.msra.mxu0 0.0
      %331 = vmatprep.subr.mxu0 0.0
      %332 = vmatpush1.msra.mxu0 0.0
      %333 = vmatprep.subr.mxu0 0.0
      %334 = vmatpush1.msra.mxu0 0.0
      %335 = vmatprep.subr.mxu0 0.0
      %336 = vmatpush1.msra.mxu0 0.0
      %337 = vmatprep.subr.mxu0 0.0
      %338 = vmatpush1.msra.mxu0 0.0
      %339 = vmatprep.subr.mxu0 0.0
      %340 = vmatpush1.msra.mxu0 0.0
      %341 = vmatprep.subr.mxu0 0.0
      %342 = vmatpush1.msra.mxu0 0.0
      %343 = vmatprep.subr.mxu0 0.0
      %344 = vmatpush1.msra.mxu0 0.0
      %345 = vmatprep.subr.mxu0 0.0
      %346 = vmatpush1.msra.mxu0 0.0
      %347 = vmatprep.subr.mxu0 0.0
      %348 = vmatpush1.msra.mxu0 0.0
      %349 = vmatprep.subr.mxu0 0.0
      %350 = vmatpush1.msra.mxu0 0.0
      %351 = vmatprep.subr.mxu0 0.0
      %352 = vmatpush1.msra.mxu0 0.0
      %353 = vmatprep.mubr.f32.mxu0 0.0
      %354 = vmatmul.mubr.f32.gmra.mrb[0].mxu0 %v284
      %v355 = vpop.f32.mrb[0].mxu0
      %v356 = vadd.f32 0.0, %v355
      %v357 = vpop.f32.mrb[0].mxu0
      %358 = vmatprep.mubr.f32.mxu0 0.0
      %359 = vmatmul.mubr.f32.gmra.mrb[0].mxu0 %v287
      %v360 = vpop.f32.mrb[0].mxu0
      %v361 = vadd.f32 0.0, %v360
      %v362 = vpop.f32.mrb[0].mxu0
      %363 = vdwg.mxu0
      %v365 = vsel %vm282, %v212, 0
      %v368 = vsel %vm282, %v213, 0
      %370 = vmatprep.subr.mxu0 0.0
      %371 = vmatpush1.msra.mxu0 %v196
      %372 = vmatprep.subr.mxu0 0.0
      %373 = vmatpush1.msra.mxu0 %v198
      %374 = vmatprep.subr.mxu0 0.0
      %375 = vmatpush1.msra.mxu0 %v200
      %376 = vmatprep.subr.mxu0 0.0
      %377 = vmatpush1.msra.mxu0 %v202
      %378 = vmatprep.subr.mxu0 0.0
      %379 = vmatpush1.msra.mxu0 %v204
      %380 = vmatprep.subr.mxu0 0.0
      %381 = vmatpush1.msra.mxu0 %v206
      %382 = vmatprep.subr.mxu0 0.0
      %383 = vmatpush1.msra.mxu0 %v208
      %384 = vmatprep.subr.mxu0 0.0
      %385 = vmatpush1.msra.mxu0 %v210
      %386 = vmatprep.subr.mxu0 0.0
      %387 = vmatpush1.msra.mxu0 0.0
      %388 = vmatprep.subr.mxu0 0.0
      %389 = vmatpush1.msra.mxu0 0.0
      %390 = vmatprep.subr.mxu0 0.0
      %391 = vmatpush1.msra.mxu0 0.0
      %392 = vmatprep.subr.mxu0 0.0
      %393 = vmatpush1.msra.mxu0 0.0
      %394 = vmatprep.subr.mxu0 0.0
      %395 = vmatpush1.msra.mxu0 0.0
      %396 = vmatprep.subr.mxu0 0.0
      %397 = vmatpush1.msra.mxu0 0.0
      %398 = vmatprep.subr.mxu0 0.0
      %399 = vmatpush1.msra.mxu0 0.0
      %400 = vmatprep.subr.mxu0 0.0
      %401 = vmatpush1.msra.mxu0 0.0
      %402 = vmatprep.subr.mxu0 0.0
      %403 = vmatpush1.msra.mxu0 0.0
      %404 = vmatprep.subr.mxu0 0.0
      %405 = vmatpush1.msra.mxu0 0.0
      %406 = vmatprep.subr.mxu0 0.0
      %407 = vmatpush1.msra.mxu0 0.0
      %408 = vmatprep.subr.mxu0 0.0
      %409 = vmatpush1.msra.mxu0 0.0
      %410 = vmatprep.subr.mxu0 0.0
      %411 = vmatpush1.msra.mxu0 0.0
      %412 = vmatprep.subr.mxu0 0.0
      %413 = vmatpush1.msra.mxu0 0.0
      %414 = vmatprep.subr.mxu0 0.0
      %415 = vmatpush1.msra.mxu0 0.0
      %416 = vmatprep.subr.mxu0 0.0
      %417 = vmatpush1.msra.mxu0 0.0
      %418 = vmatprep.subr.mxu0 0.0
      %419 = vmatpush1.msra.mxu0 0.0
      %420 = vmatprep.subr.mxu0 0.0
      %421 = vmatpush1.msra.mxu0 0.0
      %422 = vmatprep.subr.mxu0 0.0
      %423 = vmatpush1.msra.mxu0 0.0
      %424 = vmatprep.subr.mxu0 0.0
      %425 = vmatpush1.msra.mxu0 0.0
      %426 = vmatprep.subr.mxu0 0.0
      %427 = vmatpush1.msra.mxu0 0.0
      %428 = vmatprep.subr.mxu0 0.0
      %429 = vmatpush1.msra.mxu0 0.0
      %430 = vmatprep.subr.mxu0 0.0
      %431 = vmatpush1.msra.mxu0 0.0
      %432 = vmatprep.subr.mxu0 0.0
      %433 = vmatpush1.msra.mxu0 0.0
      %434 = vmatprep.mubr.f32.mxu0 0.0
      %435 = vmatmul.mubr.f32.gmra.mrb[0].mxu0 %v365
      %v436 = vpop.f32.mrb[0].mxu0
      %v437 = vadd.f32 %v356, %v436
      %v438 = vpop.f32.mrb[0].mxu0
      %439 = vmatprep.mubr.f32.mxu0 0.0
      %440 = vmatmul.mubr.f32.gmra.mrb[0].mxu0 %v368
      %v441 = vpop.f32.mrb[0].mxu0
      %v442 = vadd.f32 %v361, %v441
      %v443 = vpop.f32.mrb[0].mxu0
      %444 = vdwg.mxu0
      %s445 = scalar_lea.vmem %s1, 32
      %v446 = vld [vmem:[%s445] sm:$0xff]
      %v447 = vld [vmem:[%s445 + $0x8] sm:$0xff]
      %448 = vrot.lane.b32.xlu0 %v196, 126
      %v449 = vpop.permute.xlu0 %448
      %450 = vrot.lane.b32.xlu0 %v197, 126
      %v451 = vpop.permute.xlu0 %450
      %452 = vrot.lane.b32.xlu0 %v198, 126
      %v453 = vpop.permute.xlu0 %452
      %454 = vrot.lane.b32.xlu0 %v199, 126
      %v455 = vpop.permute.xlu0 %454
      %456 = vrot.lane.b32.xlu0 %v200, 126
      %v457 = vpop.permute.xlu0 %456
      %458 = vrot.lane.b32.xlu0 %v201, 126
      %v459 = vpop.permute.xlu0 %458
      %460 = vrot.lane.b32.xlu0 %v202, 126
      %v461 = vpop.permute.xlu0 %460
      %462 = vrot.lane.b32.xlu0 %v203, 126
      %v463 = vpop.permute.xlu0 %462
      %464 = vrot.lane.b32.xlu0 %v204, 126
      %v465 = vpop.permute.xlu0 %464
      %466 = vrot.lane.b32.xlu0 %v205, 126
      %v467 = vpop.permute.xlu0 %466
      %468 = vrot.lane.b32.xlu0 %v206, 126
      %v469 = vpop.permute.xlu0 %468
      %470 = vrot.lane.b32.xlu0 %v207, 126
      %v471 = vpop.permute.xlu0 %470
      %472 = vrot.lane.b32.xlu0 %v208, 126
      %v473 = vpop.permute.xlu0 %472
      %474 = vrot.lane.b32.xlu0 %v209, 126
      %v475 = vpop.permute.xlu0 %474
      %476 = vrot.lane.b32.xlu0 %v210, 126
      %v477 = vpop.permute.xlu0 %476
      %478 = vrot.lane.b32.xlu0 %v211, 126
      %v479 = vpop.permute.xlu0 %478
      %vm480 = vcmask 1031168
      %v481 = vsel %vm480, %v449, %v451
      %v482 = vsel %vm480, %v453, %v455
      %v483 = vsel %vm480, %v457, %v459
      %v484 = vsel %vm480, %v461, %v463
      %v485 = vsel %vm480, %v465, %v467
      %v486 = vsel %vm480, %v469, %v471
      %v487 = vsel %vm480, %v473, %v475
      %v488 = vsel %vm480, %v477, %v479
      %v498 = vsel %vm282, %v446, 0
      %v501 = vsel %vm282, %v447, 0
      %503 = vmatprep.subr.mxu0 0.0
      %504 = vmatpush1.msra.mxu0 %v481
      %505 = vmatprep.subr.mxu0 0.0
      %506 = vmatpush1.msra.mxu0 %v482
      %507 = vmatprep.subr.mxu0 0.0
      %508 = vmatpush1.msra.mxu0 %v483
      %509 = vmatprep.subr.mxu0 0.0
      %510 = vmatpush1.msra.mxu0 %v484
      %511 = vmatprep.subr.mxu0 0.0
      %512 = vmatpush1.msra.mxu0 %v485
      %513 = vmatprep.subr.mxu0 0.0
      %514 = vmatpush1.msra.mxu0 %v486
      %515 = vmatprep.subr.mxu0 0.0
      %516 = vmatpush1.msra.mxu0 %v487
      %517 = vmatprep.subr.mxu0 0.0
      %518 = vmatpush1.msra.mxu0 %v488
      %519 = vmatprep.subr.mxu0 0.0
      %520 = vmatpush1.msra.mxu0 0.0
      %521 = vmatprep.subr.mxu0 0.0
      %522 = vmatpush1.msra.mxu0 0.0
      %523 = vmatprep.subr.mxu0 0.0
      %524 = vmatpush1.msra.mxu0 0.0
      %525 = vmatprep.subr.mxu0 0.0
      %526 = vmatpush1.msra.mxu0 0.0
      %527 = vmatprep.subr.mxu0 0.0
      %528 = vmatpush1.msra.mxu0 0.0
      %529 = vmatprep.subr.mxu0 0.0
      %530 = vmatpush1.msra.mxu0 0.0
      %531 = vmatprep.subr.mxu0 0.0
      %532 = vmatpush1.msra.mxu0 0.0
      %533 = vmatprep.subr.mxu0 0.0
      %534 = vmatpush1.msra.mxu0 0.0
      %535 = vmatprep.subr.mxu0 0.0
      %536 = vmatpush1.msra.mxu0 0.0
      %537 = vmatprep.subr.mxu0 0.0
      %538 = vmatpush1.msra.mxu0 0.0
      %539 = vmatprep.subr.mxu0 0.0
      %540 = vmatpush1.msra.mxu0 0.0
      %541 = vmatprep.subr.mxu0 0.0
      %542 = vmatpush1.msra.mxu0 0.0
      %543 = vmatprep.subr.mxu0 0.0
      %544 = vmatpush1.msra.mxu0 0.0
      %545 = vmatprep.subr.mxu0 0.0
      %546 = vmatpush1.msra.mxu0 0.0
      %547 = vmatprep.subr.mxu0 0.0
      %548 = vmatpush1.msra.mxu0 0.0
      %549 = vmatprep.subr.mxu0 0.0
      %550 = vmatpush1.msra.mxu0 0.0
      %551 = vmatprep.subr.mxu0 0.0
      %552 = vmatpush1.msra.mxu0 0.0
      %553 = vmatprep.subr.mxu0 0.0
      %554 = vmatpush1.msra.mxu0 0.0
      %555 = vmatprep.subr.mxu0 0.0
      %556 = vmatpush1.msra.mxu0 0.0
      %557 = vmatprep.subr.mxu0 0.0
      %558 = vmatpush1.msra.mxu0 0.0
      %559 = vmatprep.subr.mxu0 0.0
      %560 = vmatpush1.msra.mxu0 0.0
      %561 = vmatprep.subr.mxu0 0.0
      %562 = vmatpush1.msra.mxu0 0.0
      %563 = vmatprep.subr.mxu0 0.0
      %564 = vmatpush1.msra.mxu0 0.0
      %565 = vmatprep.subr.mxu0 0.0
      %566 = vmatpush1.msra.mxu0 0.0
      %567 = vmatprep.mubr.f32.mxu0 0.0
      %568 = vmatmul.mubr.f32.gmra.mrb[0].mxu0 %v498
      %v569 = vpop.f32.mrb[0].mxu0
      %v570 = vadd.f32 0.0, %v569
      %v571 = vpop.f32.mrb[0].mxu0
      %572 = vmatprep.mubr.f32.mxu0 0.0
      %573 = vmatmul.mubr.f32.gmra.mrb[0].mxu0 %v501
      %v574 = vpop.f32.mrb[0].mxu0
      %v575 = vadd.f32 0.0, %v574
      %v576 = vpop.f32.mrb[0].mxu0
      %577 = vdwg.mxu0
      %v578 = vadd.f32 %v437, %v570
      %v579 = vadd.f32 %v442, %v575
      %s580 = scalar_lea.vmem %s1, 48
      %v581 = vld [vmem:[%s580] sm:$0xff]
      %v582 = vld [vmem:[%s580 + $0x8] sm:$0xff]
      %583 = vrot.lane.b32.xlu0 %v196, 40
      %v584 = vpop.permute.xlu0 %583
      %585 = vrot.lane.b32.xlu0 %v197, 40
      %v586 = vpop.permute.xlu0 %585
      %587 = vrot.lane.b32.xlu0 %v198, 40
      %v588 = vpop.permute.xlu0 %587
      %589 = vrot.lane.b32.xlu0 %v199, 40
      %v590 = vpop.permute.xlu0 %589
      %591 = vrot.lane.b32.xlu0 %v200, 40
      %v592 = vpop.permute.xlu0 %591
      %593 = vrot.lane.b32.xlu0 %v201, 40
      %v594 = vpop.permute.xlu0 %593
      %595 = vrot.lane.b32.xlu0 %v202, 40
      %v596 = vpop.permute.xlu0 %595
      %597 = vrot.lane.b32.xlu0 %v203, 40
      %v598 = vpop.permute.xlu0 %597
      %599 = vrot.lane.b32.xlu0 %v204, 40
      %v600 = vpop.permute.xlu0 %599
      %601 = vrot.lane.b32.xlu0 %v205, 40
      %v602 = vpop.permute.xlu0 %601
      %603 = vrot.lane.b32.xlu0 %v206, 40
      %v604 = vpop.permute.xlu0 %603
      %605 = vrot.lane.b32.xlu0 %v207, 40
      %v606 = vpop.permute.xlu0 %605
      %607 = vrot.lane.b32.xlu0 %v208, 40
      %v608 = vpop.permute.xlu0 %607
      %609 = vrot.lane.b32.xlu0 %v209, 40
      %v610 = vpop.permute.xlu0 %609
      %611 = vrot.lane.b32.xlu0 %v210, 40
      %v612 = vpop.permute.xlu0 %611
      %613 = vrot.lane.b32.xlu0 %v211, 40
      %v614 = vpop.permute.xlu0 %613
      %vm615 = vcmask 326656
      %v616 = vsel %vm615, %v584, %v586
      %v617 = vsel %vm615, %v588, %v590
      %v618 = vsel %vm615, %v592, %v594
      %v619 = vsel %vm615, %v596, %v598
      %v620 = vsel %vm615, %v600, %v602
      %v621 = vsel %vm615, %v604, %v606
      %v622 = vsel %vm615, %v608, %v610
      %v623 = vsel %vm615, %v612, %v614
      %v633 = vsel %vm282, %v581, 0
      %v636 = vsel %vm282, %v582, 0
      %638 = vmatprep.subr.mxu0 0.0
      %639 = vmatpush1.msra.mxu0 %v616
      %640 = vmatprep.subr.mxu0 0.0
      %641 = vmatpush1.msra.mxu0 %v617
      %642 = vmatprep.subr.mxu0 0.0
      %643 = vmatpush1.msra.mxu0 %v618
      %644 = vmatprep.subr.mxu0 0.0
      %645 = vmatpush1.msra.mxu0 %v619
      %646 = vmatprep.subr.mxu0 0.0
      %647 = vmatpush1.msra.mxu0 %v620
      %648 = vmatprep.subr.mxu0 0.0
      %649 = vmatpush1.msra.mxu0 %v621
      %650 = vmatprep.subr.mxu0 0.0
      %651 = vmatpush1.msra.mxu0 %v622
      %652 = vmatprep.subr.mxu0 0.0
      %653 = vmatpush1.msra.mxu0 %v623
      %654 = vmatprep.subr.mxu0 0.0
      %655 = vmatpush1.msra.mxu0 0.0
      %656 = vmatprep.subr.mxu0 0.0
      %657 = vmatpush1.msra.mxu0 0.0
      %658 = vmatprep.subr.mxu0 0.0
      %659 = vmatpush1.msra.mxu0 0.0
      %660 = vmatprep.subr.mxu0 0.0
      %661 = vmatpush1.msra.mxu0 0.0
      %662 = vmatprep.subr.mxu0 0.0
      %663 = vmatpush1.msra.mxu0 0.0
      %664 = vmatprep.subr.mxu0 0.0
      %665 = vmatpush1.msra.mxu0 0.0
      %666 = vmatprep.subr.mxu0 0.0
      %667 = vmatpush1.msra.mxu0 0.0
      %668 = vmatprep.subr.mxu0 0.0
      %669 = vmatpush1.msra.mxu0 0.0
      %670 = vmatprep.subr.mxu0 0.0
      %671 = vmatpush1.msra.mxu0 0.0
      %672 = vmatprep.subr.mxu0 0.0
      %673 = vmatpush1.msra.mxu0 0.0
      %674 = vmatprep.subr.mxu0 0.0
      %675 = vmatpush1.msra.mxu0 0.0
      %676 = vmatprep.subr.mxu0 0.0
      %677 = vmatpush1.msra.mxu0 0.0
      %678 = vmatprep.subr.mxu0 0.0
      %679 = vmatpush1.msra.mxu0 0.0
      %680 = vmatprep.subr.mxu0 0.0
      %681 = vmatpush1.msra.mxu0 0.0
      %682 = vmatprep.subr.mxu0 0.0
      %683 = vmatpush1.msra.mxu0 0.0
      %684 = vmatprep.subr.mxu0 0.0
      %685 = vmatpush1.msra.mxu0 0.0
      %686 = vmatprep.subr.mxu0 0.0
      %687 = vmatpush1.msra.mxu0 0.0
      %688 = vmatprep.subr.mxu0 0.0
      %689 = vmatpush1.msra.mxu0 0.0
      %690 = vmatprep.subr.mxu0 0.0
      %691 = vmatpush1.msra.mxu0 0.0
      %692 = vmatprep.subr.mxu0 0.0
      %693 = vmatpush1.msra.mxu0 0.0
      %694 = vmatprep.subr.mxu0 0.0
      %695 = vmatpush1.msra.mxu0 0.0
      %696 = vmatprep.subr.mxu0 0.0
      %697 = vmatpush1.msra.mxu0 0.0
      %698 = vmatprep.subr.mxu0 0.0
      %699 = vmatpush1.msra.mxu0 0.0
      %700 = vmatprep.subr.mxu0 0.0
      %701 = vmatpush1.msra.mxu0 0.0
      %702 = vmatprep.mubr.f32.mxu0 0.0
      %703 = vmatmul.mubr.f32.gmra.mrb[0].mxu0 %v633
      %v704 = vpop.f32.mrb[0].mxu0
      %v705 = vadd.f32 0.0, %v704
      %v706 = vpop.f32.mrb[0].mxu0
      %707 = vmatprep.mubr.f32.mxu0 0.0
      %708 = vmatmul.mubr.f32.gmra.mrb[0].mxu0 %v636
      %v709 = vpop.f32.mrb[0].mxu0
      %v710 = vadd.f32 0.0, %v709
      %v711 = vpop.f32.mrb[0].mxu0
      %712 = vdwg.mxu0
      %v713 = vadd.f32 %v578, %v705
      %v714 = vadd.f32 %v579, %v710
      %s715 = scalar_lea.vmem %s1, 64
      %v716 = vld [vmem:[%s715] sm:$0xff]
      %v717 = vld [vmem:[%s715 + $0x8] sm:$0xff]
      %718 = vrot.lane.b32.xlu0 %v196, 39
      %v719 = vpop.permute.xlu0 %718
      %720 = vrot.lane.b32.xlu0 %v197, 39
      %v721 = vpop.permute.xlu0 %720
      %722 = vrot.lane.b32.xlu0 %v198, 39
      %v723 = vpop.permute.xlu0 %722
      %724 = vrot.lane.b32.xlu0 %v199, 39
      %v725 = vpop.permute.xlu0 %724
      %726 = vrot.lane.b32.xlu0 %v200, 39
      %v727 = vpop.permute.xlu0 %726
      %728 = vrot.lane.b32.xlu0 %v201, 39
      %v729 = vpop.permute.xlu0 %728
      %730 = vrot.lane.b32.xlu0 %v202, 39
      %v731 = vpop.permute.xlu0 %730
      %732 = vrot.lane.b32.xlu0 %v203, 39
      %v733 = vpop.permute.xlu0 %732
      %734 = vrot.lane.b32.xlu0 %v204, 39
      %v735 = vpop.permute.xlu0 %734
      %736 = vrot.lane.b32.xlu0 %v205, 39
      %v737 = vpop.permute.xlu0 %736
      %738 = vrot.lane.b32.xlu0 %v206, 39
      %v739 = vpop.permute.xlu0 %738
      %740 = vrot.lane.b32.xlu0 %v207, 39
      %v741 = vpop.permute.xlu0 %740
      %742 = vrot.lane.b32.xlu0 %v208, 39
      %v743 = vpop.permute.xlu0 %742
      %744 = vrot.lane.b32.xlu0 %v209, 39
      %v745 = vpop.permute.xlu0 %744
      %746 = vrot.lane.b32.xlu0 %v210, 39
      %v747 = vpop.permute.xlu0 %746
      %748 = vrot.lane.b32.xlu0 %v211, 39
      %v749 = vpop.permute.xlu0 %748
      %vm750 = vcmask 318464
      %v751 = vsel %vm750, %v719, %v721
      %v752 = vsel %vm750, %v723, %v725
      %v753 = vsel %vm750, %v727, %v729
      %v754 = vsel %vm750, %v731, %v733
      %v755 = vsel %vm750, %v735, %v737
      %v756 = vsel %vm750, %v739, %v741
      %v757 = vsel %vm750, %v743, %v745
      %v758 = vsel %vm750, %v747, %v749
      %v768 = vsel %vm282, %v716, 0
      %v771 = vsel %vm282, %v717, 0
      %773 = vmatprep.subr.mxu0 0.0
      %774 = vmatpush1.msra.mxu0 %v751
      %775 = vmatprep.subr.mxu0 0.0
      %776 = vmatpush1.msra.mxu0 %v752
      %777 = vmatprep.subr.mxu0 0.0
      %778 = vmatpush1.msra.mxu0 %v753
      %779 = vmatprep.subr.mxu0 0.0
      %780 = vmatpush1.msra.mxu0 %v754
      %781 = vmatprep.subr.mxu0 0.0
      %782 = vmatpush1.msra.mxu0 %v755
      %783 = vmatprep.subr.mxu0 0.0
      %784 = vmatpush1.msra.mxu0 %v756
      %785 = vmatprep.subr.mxu0 0.0
      %786 = vmatpush1.msra.mxu0 %v757
      %787 = vmatprep.subr.mxu0 0.0
      %788 = vmatpush1.msra.mxu0 %v758
      %789 = vmatprep.subr.mxu0 0.0
      %790 = vmatpush1.msra.mxu0 0.0
      %791 = vmatprep.subr.mxu0 0.0
      %792 = vmatpush1.msra.mxu0 0.0
      %793 = vmatprep.subr.mxu0 0.0
      %794 = vmatpush1.msra.mxu0 0.0
      %795 = vmatprep.subr.mxu0 0.0
      %796 = vmatpush1.msra.mxu0 0.0
      %797 = vmatprep.subr.mxu0 0.0
      %798 = vmatpush1.msra.mxu0 0.0
      %799 = vmatprep.subr.mxu0 0.0
      %800 = vmatpush1.msra.mxu0 0.0
      %801 = vmatprep.subr.mxu0 0.0
      %802 = vmatpush1.msra.mxu0 0.0
      %803 = vmatprep.subr.mxu0 0.0
      %804 = vmatpush1.msra.mxu0 0.0
      %805 = vmatprep.subr.mxu0 0.0
      %806 = vmatpush1.msra.mxu0 0.0
      %807 = vmatprep.subr.mxu0 0.0
      %808 = vmatpush1.msra.mxu0 0.0
      %809 = vmatprep.subr.mxu0 0.0
      %810 = vmatpush1.msra.mxu0 0.0
      %811 = vmatprep.subr.mxu0 0.0
      %812 = vmatpush1.msra.mxu0 0.0
      %813 = vmatprep.subr.mxu0 0.0
      %814 = vmatpush1.msra.mxu0 0.0
      %815 = vmatprep.subr.mxu0 0.0
      %816 = vmatpush1.msra.mxu0 0.0
      %817 = vmatprep.subr.mxu0 0.0
      %818 = vmatpush1.msra.mxu0 0.0
      %819 = vmatprep.subr.mxu0 0.0
      %820 = vmatpush1.msra.mxu0 0.0
      %821 = vmatprep.subr.mxu0 0.0
      %822 = vmatpush1.msra.mxu0 0.0
      %823 = vmatprep.subr.mxu0 0.0
      %824 = vmatpush1.msra.mxu0 0.0
      %825 = vmatprep.subr.mxu0 0.0
      %826 = vmatpush1.msra.mxu0 0.0
      %827 = vmatprep.subr.mxu0 0.0
      %828 = vmatpush1.msra.mxu0 0.0
      %829 = vmatprep.subr.mxu0 0.0
      %830 = vmatpush1.msra.mxu0 0.0
      %831 = vmatprep.subr.mxu0 0.0
      %832 = vmatpush1.msra.mxu0 0.0
      %833 = vmatprep.subr.mxu0 0.0
      %834 = vmatpush1.msra.mxu0 0.0
      %835 = vmatprep.subr.mxu0 0.0
      %836 = vmatpush1.msra.mxu0 0.0
      %837 = vmatprep.mubr.f32.mxu0 0.0
      %838 = vmatmul.mubr.f32.gmra.mrb[0].mxu0 %v768
      %v839 = vpop.f32.mrb[0].mxu0
      %v840 = vadd.f32 0.0, %v839
      %v841 = vpop.f32.mrb[0].mxu0
      %842 = vmatprep.mubr.f32.mxu0 0.0
      %843 = vmatmul.mubr.f32.gmra.mrb[0].mxu0 %v771
      %v844 = vpop.f32.mrb[0].mxu0
      %v845 = vadd.f32 0.0, %v844
      %v846 = vpop.f32.mrb[0].mxu0
      %847 = vdwg.mxu0
      %v848 = vadd.f32 %v713, %v840
      %v849 = vadd.f32 %v714, %v845
      %s850 = scalar_lea.vmem %s1, 80
      %v851 = vld [vmem:[%s850] sm:$0xff]
      %v852 = vld [vmem:[%s850 + $0x8] sm:$0xff]
      %853 = vrot.lane.b32.xlu0 %v196, 38
      %v854 = vpop.permute.xlu0 %853
      %855 = vrot.lane.b32.xlu0 %v197, 38
      %v856 = vpop.permute.xlu0 %855
      %857 = vrot.lane.b32.xlu0 %v198, 38
      %v858 = vpop.permute.xlu0 %857
      %859 = vrot.lane.b32.xlu0 %v199, 38
      %v860 = vpop.permute.xlu0 %859
      %861 = vrot.lane.b32.xlu0 %v200, 38
      %v862 = vpop.permute.xlu0 %861
      %863 = vrot.lane.b32.xlu0 %v201, 38
      %v864 = vpop.permute.xlu0 %863
      %865 = vrot.lane.b32.xlu0 %v202, 38
      %v866 = vpop.permute.xlu0 %865
      %867 = vrot.lane.b32.xlu0 %v203, 38
      %v868 = vpop.permute.xlu0 %867
      %869 = vrot.lane.b32.xlu0 %v204, 38
      %v870 = vpop.permute.xlu0 %869
      %871 = vrot.lane.b32.xlu0 %v205, 38
      %v872 = vpop.permute.xlu0 %871
      %873 = vrot.lane.b32.xlu0 %v206, 38
      %v874 = vpop.permute.xlu0 %873
      %875 = vrot.lane.b32.xlu0 %v207, 38
      %v876 = vpop.permute.xlu0 %875
      %877 = vrot.lane.b32.xlu0 %v208, 38
      %v878 = vpop.permute.xlu0 %877
      %879 = vrot.lane.b32.xlu0 %v209, 38
      %v880 = vpop.permute.xlu0 %879
      %881 = vrot.lane.b32.xlu0 %v210, 38
      %v882 = vpop.permute.xlu0 %881
      %883 = vrot.lane.b32.xlu0 %v211, 38
      %v884 = vpop.permute.xlu0 %883
      %vm885 = vcmask 310272
      %v886 = vsel %vm885, %v854, %v856
      %v887 = vsel %vm885, %v858, %v860
      %v888 = vsel %vm885, %v862, %v864
      %v889 = vsel %vm885, %v866, %v868
      %v890 = vsel %vm885, %v870, %v872
      %v891 = vsel %vm885, %v874, %v876
      %v892 = vsel %vm885, %v878, %v880
      %v893 = vsel %vm885, %v882, %v884
      %v903 = vsel %vm282, %v851, 0
      %v906 = vsel %vm282, %v852, 0
      %908 = vmatprep.subr.mxu0 0.0
      %909 = vmatpush1.msra.mxu0 %v886
      %910 = vmatprep.subr.mxu0 0.0
      %911 = vmatpush1.msra.mxu0 %v887
      %912 = vmatprep.subr.mxu0 0.0
      %913 = vmatpush1.msra.mxu0 %v888
      %914 = vmatprep.subr.mxu0 0.0
      %915 = vmatpush1.msra.mxu0 %v889
      %916 = vmatprep.subr.mxu0 0.0
      %917 = vmatpush1.msra.mxu0 %v890
      %918 = vmatprep.subr.mxu0 0.0
      %919 = vmatpush1.msra.mxu0 %v891
      %920 = vmatprep.subr.mxu0 0.0
      %921 = vmatpush1.msra.mxu0 %v892
      %922 = vmatprep.subr.mxu0 0.0
      %923 = vmatpush1.msra.mxu0 %v893
      %924 = vmatprep.subr.mxu0 0.0
      %925 = vmatpush1.msra.mxu0 0.0
      %926 = vmatprep.subr.mxu0 0.0
      %927 = vmatpush1.msra.mxu0 0.0
      %928 = vmatprep.subr.mxu0 0.0
      %929 = vmatpush1.msra.mxu0 0.0
      %930 = vmatprep.subr.mxu0 0.0
      %931 = vmatpush1.msra.mxu0 0.0
      %932 = vmatprep.subr.mxu0 0.0
      %933 = vmatpush1.msra.mxu0 0.0
      %934 = vmatprep.subr.mxu0 0.0
      %935 = vmatpush1.msra.mxu0 0.0
      %936 = vmatprep.subr.mxu0 0.0
      %937 = vmatpush1.msra.mxu0 0.0
      %938 = vmatprep.subr.mxu0 0.0
      %939 = vmatpush1.msra.mxu0 0.0
      %940 = vmatprep.subr.mxu0 0.0
      %941 = vmatpush1.msra.mxu0 0.0
      %942 = vmatprep.subr.mxu0 0.0
      %943 = vmatpush1.msra.mxu0 0.0
      %944 = vmatprep.subr.mxu0 0.0
      %945 = vmatpush1.msra.mxu0 0.0
      %946 = vmatprep.subr.mxu0 0.0
      %947 = vmatpush1.msra.mxu0 0.0
      %948 = vmatprep.subr.mxu0 0.0
      %949 = vmatpush1.msra.mxu0 0.0
      %950 = vmatprep.subr.mxu0 0.0
      %951 = vmatpush1.msra.mxu0 0.0
      %952 = vmatprep.subr.mxu0 0.0
      %953 = vmatpush1.msra.mxu0 0.0
      %954 = vmatprep.subr.mxu0 0.0
      %955 = vmatpush1.msra.mxu0 0.0
      %956 = vmatprep.subr.mxu0 0.0
      %957 = vmatpush1.msra.mxu0 0.0
      %958 = vmatprep.subr.mxu0 0.0
      %959 = vmatpush1.msra.mxu0 0.0
      %960 = vmatprep.subr.mxu0 0.0
      %961 = vmatpush1.msra.mxu0 0.0
      %962 = vmatprep.subr.mxu0 0.0
      %963 = vmatpush1.msra.mxu0 0.0
      %964 = vmatprep.subr.mxu0 0.0
      %965 = vmatpush1.msra.mxu0 0.0
      %966 = vmatprep.subr.mxu0 0.0
      %967 = vmatpush1.msra.mxu0 0.0
      %968 = vmatprep.subr.mxu0 0.0
      %969 = vmatpush1.msra.mxu0 0.0
      %970 = vmatprep.subr.mxu0 0.0
      %971 = vmatpush1.msra.mxu0 0.0
      %972 = vmatprep.mubr.f32.mxu0 0.0
      %973 = vmatmul.mubr.f32.gmra.mrb[0].mxu0 %v903
      %v974 = vpop.f32.mrb[0].mxu0
      %v975 = vadd.f32 0.0, %v974
      %v976 = vpop.f32.mrb[0].mxu0
      %977 = vmatprep.mubr.f32.mxu0 0.0
      %978 = vmatmul.mubr.f32.gmra.mrb[0].mxu0 %v906
      %v979 = vpop.f32.mrb[0].mxu0
      %v980 = vadd.f32 0.0, %v979
      %v981 = vpop.f32.mrb[0].mxu0
      %982 = vdwg.mxu0
      %v983 = vadd.f32 %v848, %v975
      %v984 = vadd.f32 %v849, %v980
      %v985 = vld [vmem:[%s2] sm:$0xff]
      %v986 = vld [vmem:[%s2 + $0x8] sm:$0xff]
      %988 = vset.pattern.permute.xlu0 0
      %989 = vperm.xlu0 %988, %v985
      %v990 = vpop.permute.xlu0 %989
      %993 = vset.pattern.permute.xlu0 0
      %994 = vperm.xlu0 %993, %v986
      %v995 = vpop.permute.xlu0 %994
      %v997 = vadd.f32 %v983, %v990
      %v998 = vadd.f32 %v984, %v995
      %999 = vst [vmem:[%s190] sm:$0xff] %v997
      %1000 = vst [vmem:[%s190 + $0x8] sm:$0xff] %v998
      %p1001 = scmp.lt.s32.totalorder %s18, 1
      %s1002 = scalar_select %p1001, %s18, 1
      %p1003 = scmp.lt.s32.totalorder %s19, 0
      %s1004 = scalar_select %p1003, %s19, 0
      %s1005 = smul.addr %s1002, 2
      %s1006 = sadd.s32 %s1004, %s1005
      %s1007 = smul.addr %s1006, 8
      %s1008 = scalar_lea.vmem %s3, %s1007
      // Predicated region
      $region33: #{_phase_decoder_impl.17} parent=31 // pred_check
        %p1009 = pneg %p114
      $region34: #{_phase_decoder_impl.17} parent=31 // pred_check_branch
        %1011 = sbr.rel (%p1009) target = $region36
      $region35: #{_phase_decoder_impl.17} parent=31 // pred_region
        _
      $region36: #{_phase_decoder_impl.17} parent=31 // pred_fallthru
        _
    $region32: #{_phase_decoder_impl.17} parent=5 // pred_fallthru
      _
    %p1012 = scmp.le.s32.totalorder 2, %s9
    // Predicated region
    $region37: #{_phase_decoder_impl.17} parent=5 // pred_check
      %p1013 = pneg %p1012
    $region38: #{_phase_decoder_impl.17} parent=5 // pred_check_branch
      %1015 = sbr.rel (%p1013) target = $region40
    $region39: #{_phase_decoder_impl.17} parent=5 // pred_region
      %s1016 = ssub.s32 %s9, 2
      // Predicated region
      $region41: #{_phase_decoder_impl.17} parent=39 // pred_check
        %p1017 = pneg %p120
      $region42: #{_phase_decoder_impl.17} parent=39 // pred_check_branch
        %1019 = sbr.rel (%p1017) target = $region44
      $region43: #{_phase_decoder_impl.17} parent=39 // pred_region
        %p1020 = scmp.lt.s32.totalorder %s20, 1
        %s1021 = scalar_select %p1020, %s20, 1
        %p1022 = scmp.lt.s32.totalorder %s21, 0
        %s1023 = scalar_select %p1022, %s21, 0
        %s1024 = smul.addr %s1021, 2
        %s1025 = sadd.s32 %s1023, %s1024
        %s1026 = smul.addr %s1025, 8
        %s1027 = scalar_lea.vmem %s3, %s1026
      $region44: #{_phase_decoder_impl.17} parent=39 // pred_fallthru
        _
    $region40: #{_phase_decoder_impl.17} parent=5 // pred_fallthru
      _
  $region6: #{_phase_decoder_impl.17} parent=0 // loop_footer
    %s13 = sadd.s32 1, %s9
  $region7: #{_phase_decoder_impl.17} parent=0 // loop_footer_branch
    %8 = sbr.rel target = $region3
  $region8: #{_phase_decoder_impl.17} parent=0 // loop_exit
    _

// kernel: _phase_decoder_impl.19
$region0: #{_phase_decoder_impl.19}
  #allocation0 [shape = 'u32[]', space=smem, size = 0x4, offset = 0x4, fixed_abs, tag = 'smem constant byte address 0x4 - core index']
  #allocation1 [shape = 'u32[144,128]{1,0:T(1,128)}', space=vmem, size = 0x12000, scoped, tag = 'internal scratch']
  %s0 = inlined_call_operand.vmem [shape: f32[2,16,256], index: 0, kind: input, shape index: {}]
  %s1 = inlined_call_operand.vmem [shape: f32[3,32,16], index: 1, kind: input, shape index: {}]
  %s2 = inlined_call_operand.vmem [shape: f32[32,1], index: 2, kind: input, shape index: {}]
  %s3 = inlined_call_operand.vmem [shape: f32[2,32,128], index: 3, kind: output, shape index: {}]
  %s4 = sld [smem:[#allocation0]]
  $region45: #{_phase_decoder_impl.19} parent=0
    _
  %s6 = ssub.s32 1, %s4
  %s7 = scalar_select 0, %s6, %s4
  loop: start=0, step=1, limit=4
  $region2: #{_phase_decoder_impl.19} parent=0 // loop_pre_header
    _
  $region3: #{_phase_decoder_impl.19} parent=0 // loop_header
    %s9 = sphi 0, %s13
    %p10 = scmp.ge.s32.totalorder %s9, 4
    %s16 = sphi 0, %s28
    %s17 = sphi 0, %s24
    %s18 = sphi 0, %s16
    %s19 = sphi 0, %s17
    %s20 = sphi 0, %s18
    %s21 = sphi 0, %s19
    %s31 = sphi 0, %s33
    %s34 = sphi 0, %s31
    %s35 = sphi 0, %s34
    %s51 = sphi 0, %s35
    %s55 = sphi 0, %s55
    %s57 = sphi 0, %s55
    %s58 = sphi 0, %s57
    %s72 = sphi 0, %s58
    %s76 = sphi 0, %s76
    %s78 = sphi 0, %s76
    %s79 = sphi 0, %s78
    %s93 = sphi 0, %s79
    %s101 = sphi 0, %s103
    %s104 = sphi 0, %s101
    %s105 = sphi 0, %s104
    %s121 = sphi 0, %s105
  $region4: #{_phase_decoder_impl.19} parent=0 // loop_header_branch
    %12 = sbr.rel (%p10) target = $region8
  $region5: #{_phase_decoder_impl.19} parent=0 // loop_body
    %s14 = ssub.s32 %s9, 1
    %s15 = ssub.s32 %s9, 2
    %s22 = sadd.s32 1, %s17
    %p23 = scmp.ge.s32.totalorder %s22, 1
    %s24 = scalar_select %p23, 0, %s22
    %s25 = sadd.s32 1, %s16
    %s26 = scalar_select %p23, %s25, %s16
    %p27 = scmp.ge.s32.totalorder %s26, 2
    %s28 = scalar_select %p27, 0, %s26
    %s29 = ssub.s32 %s16, %s28
    %p30 = scmp.eq.s32.totalorder %s29, 0
    %s32 = sadd.s32 %s31, 1
    %s33 = scalar_select %p30, %s31, %s32
    %p36 = pneg %p30
    %p37 = scmp.eq.s32.totalorder %s9, 1
    %p38 = por %p36, %p37
    %p39 = scmp.ne.s32.totalorder %s31, %s34
    %p40 = scmp.eq.s32.totalorder %s9, 0
    %p41 = por %p39, %p40
    %p42 = scmp.ne.s32.totalorder %s31, %s34
    %p43 = scmp.eq.s32.totalorder %s14, 1
    %p44 = por %p42, %p43
    %p45 = scmp.ne.s32.totalorder %s34, %s35
    %p46 = scmp.eq.s32.totalorder %s14, 0
    %p47 = por %p45, %p46
    %p48 = scmp.ne.s32.totalorder %s34, %s35
    %p49 = scmp.eq.s32.totalorder %s15, 1
    %p50 = por %p48, %p49
    %p52 = scmp.ne.s32.totalorder %s35, %s51
    %p53 = scmp.eq.s32.totalorder %s15, 0
    %p54 = por %p52, %p53
    %s56 = sadd.s32 %s55, 1
    %p59 = scmp.eq.s32.totalorder %s9, 1
    %p60 = scmp.ne.s32.totalorder %s55, %s57
    %p61 = scmp.eq.s32.totalorder %s9, 0
    %p62 = por %p60, %p61
    %p63 = scmp.ne.s32.totalorder %s55, %s57
    %p64 = scmp.eq.s32.totalorder %s14, 1
    %p65 = por %p63, %p64
    %p66 = scmp.ne.s32.totalorder %s57, %s58
    %p67 = scmp.eq.s32.totalorder %s14, 0
    %p68 = por %p66, %p67
    %p69 = scmp.ne.s32.totalorder %s57, %s58
    %p70 = scmp.eq.s32.totalorder %s15, 1
    %p71 = por %p69, %p70
    %p73 = scmp.ne.s32.totalorder %s58, %s72
    %p74 = scmp.eq.s32.totalorder %s15, 0
    %p75 = por %p73, %p74
    %s77 = sadd.s32 %s76, 1
    %p80 = scmp.eq.s32.totalorder %s9, 1
    %p81 = scmp.ne.s32.totalorder %s76, %s78
    %p82 = scmp.eq.s32.totalorder %s9, 0
    %p83 = por %p81, %p82
    %p84 = scmp.ne.s32.totalorder %s76, %s78
    %p85 = scmp.eq.s32.totalorder %s14, 1
    %p86 = por %p84, %p85
    %p87 = scmp.ne.s32.totalorder %s78, %s79
    %p88 = scmp.eq.s32.totalorder %s14, 0
    %p89 = por %p87, %p88
    %p90 = scmp.ne.s32.totalorder %s78, %s79
    %p91 = scmp.eq.s32.totalorder %s15, 1
    %p92 = por %p90, %p91
    %p94 = scmp.ne.s32.totalorder %s79, %s93
    %p95 = scmp.eq.s32.totalorder %s15, 0
    %p96 = por %p94, %p95
    %s97 = ssub.s32 %s16, %s28
    %s98 = ssub.s32 %s17, %s24
    %s99 = sor.u32 %s97, %s98
    %p100 = scmp.eq.s32.totalorder %s99, 0
    %s102 = sadd.s32 %s101, 1
    %s103 = scalar_select %p100, %s101, %s102
    %p106 = pneg %p100
    %p107 = scmp.eq.s32.totalorder %s9, 1
    %p108 = por %p106, %p107
    %p109 = scmp.ne.s32.totalorder %s101, %s104
    %p110 = scmp.eq.s32.totalorder %s9, 0
    %p111 = por %p109, %p110
    %p112 = scmp.ne.s32.totalorder %s101, %s104
    %p113 = scmp.eq.s32.totalorder %s14, 1
    %p114 = por %p112, %p113
    %p115 = scmp.ne.s32.totalorder %s104, %s105
    %p116 = scmp.eq.s32.totalorder %s14, 0
    %p117 = por %p115, %p116
    %p118 = scmp.ne.s32.totalorder %s104, %s105
    %p119 = scmp.eq.s32.totalorder %s15, 1
    %p120 = por %p118, %p119
    %p122 = scmp.ne.s32.totalorder %s105, %s121
    %p123 = scmp.eq.s32.totalorder %s15, 0
    %p124 = por %p122, %p123
    %p125 = scmp.le.s32.totalorder 1, %s9
    %p126 = scmp.lt.s32.totalorder %s9, 3
    %p127 = pnand %p125, %p126
    %p128 = pneg %p127
    // Predicated region
    $region9: #{_phase_decoder_impl.19} parent=5 // pred_check
      _
    $region10: #{_phase_decoder_impl.19} parent=5 // pred_check_branch
      %130 = sbr.rel (%p127) target = $region12
    $region11: #{_phase_decoder_impl.19} parent=5 // pred_region
      %s131 = ssub.s32 %s9, 1
      // Predicated region
      $region13: #{_phase_decoder_impl.19} parent=11 // pred_check
        %p132 = pneg %p68
      $region14: #{_phase_decoder_impl.19} parent=11 // pred_check_branch
        %134 = sbr.rel (%p132) target = $region16
      $region15: #{_phase_decoder_impl.19} parent=11 // pred_region
        _
      $region16: #{_phase_decoder_impl.19} parent=11 // pred_fallthru
        _
      // Predicated region
      $region17: #{_phase_decoder_impl.19} parent=11 // pred_check
        %p135 = pneg %p89
      $region18: #{_phase_decoder_impl.19} parent=11 // pred_check_branch
        %137 = sbr.rel (%p135) target = $region20
      $region19: #{_phase_decoder_impl.19} parent=11 // pred_region
        _
      $region20: #{_phase_decoder_impl.19} parent=11 // pred_fallthru
        _
    $region12: #{_phase_decoder_impl.19} parent=5 // pred_fallthru
      _
    %p138 = scmp.lt.s32.totalorder %s9, 2
    // Predicated region
    $region21: #{_phase_decoder_impl.19} parent=5 // pred_check
      %p139 = pneg %p138
    $region22: #{_phase_decoder_impl.19} parent=5 // pred_check_branch
      %141 = sbr.rel (%p139) target = $region24
    $region23: #{_phase_decoder_impl.19} parent=5 // pred_region
      // Predicated region
      $region25: #{_phase_decoder_impl.19} parent=23 // pred_check
        %p142 = pneg %p41
      $region26: #{_phase_decoder_impl.19} parent=23 // pred_check_branch
        %144 = sbr.rel (%p142) target = $region28
      $region27: #{_phase_decoder_impl.19} parent=23 // pred_region
        %p145 = scmp.lt.s32.totalorder %s16, 1
        %s146 = scalar_select %p145, %s16, 1
        %s147 = smul.addr %s146, 4
        %s148 = smul.addr %s147, 8
        %s149 = scalar_lea.vmem %s0, %s148
      $region28: #{_phase_decoder_impl.19} parent=23 // pred_fallthru
        _
    $region24: #{_phase_decoder_impl.19} parent=5 // pred_fallthru
      _
    %p150 = scmp.le.s32.totalorder 1, %s9
    %p151 = scmp.lt.s32.totalorder %s9, 3
    %p152 = pnand %p150, %p151
    %p153 = pneg %p152
    // Predicated region
    $region29: #{_phase_decoder_impl.19} parent=5 // pred_check
      _
    $region30: #{_phase_decoder_impl.19} parent=5 // pred_check_branch
      %155 = sbr.rel (%p152) target = $region32
    $region31: #{_phase_decoder_impl.19} parent=5 // pred_region
      %s156 = ssub.s32 %s9, 1
      %p157 = scmp.lt.s32.totalorder %s18, 1
      %s158 = scalar_select %p157, %s18, 1
      %s159 = smul.addr %s158, 4
      %s160 = smul.addr %s159, 8
      %s161 = scalar_lea.vmem %s0, %s160
      %p162 = pneg %p47
      %p163 = pneg %p44
      %p164 = pneg %p68
      %p165 = pneg %p65
      %p166 = pneg %p89
      %p167 = pneg %p86
      %p168 = pneg %p117
      %p169 = pneg %p114
      %p170 = scmp.lt.s32.totalorder %s18, 1
      %s171 = scalar_select %p170, %s18, 1
      %p172 = scmp.lt.s32.totalorder %s19, 0
      %s173 = scalar_select %p172, %s19, 0
      %s174 = smul.addr %s171, 4
      %s175 = sadd.s32 %s173, %s174
      %s176 = smul.addr %s175, 8
      %s177 = scalar_lea.vmem %s3, %s176
      %p178 = scmp.lt.s32.totalorder %s18, 1
      %s179 = scalar_select %p178, %s18, 1
      %s180 = smul.addr %s179, 4
      %s181 = smul.addr %s180, 8
      %s182 = scalar_lea.vmem %s0, %s181
      %p183 = scmp.lt.s32.totalorder %s18, 1
      %s184 = scalar_select %p183, %s18, 1
      %p185 = scmp.lt.s32.totalorder %s19, 0
      %s186 = scalar_select %p185, %s19, 0
      %s187 = smul.addr %s184, 4
      %s188 = sadd.s32 %s186, %s187
      %s189 = smul.addr %s188, 8
      %s190 = scalar_lea.vmem %s3, %s189
      %s191 = smul.u32 %s19, 128
      %s192 = sshra.s32 %s191, 7
      %s193 = sand.u32 %s191, 127
      %s194 = smul.addr %s192, 8
      %s195 = scalar_lea.vmem %s182, %s194
      %v196 = vld [vmem:[%s195] sm:$0xff]
      %v197 = vld [vmem:[%s195 + $0x8] sm:$0xff]
      %v198 = vld [vmem:[%s195 + $0x10] sm:$0xff]
      %v199 = vld [vmem:[%s195 + $0x18] sm:$0xff]
      %v200 = vld [vmem:[%s1] sm:$0xff]
      %v201 = vld [vmem:[%s1 + $0x8] sm:$0xff]
      %v202 = vld [vmem:[%s1 + $0x10] sm:$0xff]
      %v203 = vld [vmem:[%s1 + $0x18] sm:$0xff]
      %s204 = scalar_lea.vmem %s1, 32
      %v205 = vld [vmem:[%s204] sm:$0xff]
      %v206 = vld [vmem:[%s204 + $0x8] sm:$0xff]
      %v207 = vld [vmem:[%s204 + $0x10] sm:$0xff]
      %v208 = vld [vmem:[%s204 + $0x18] sm:$0xff]
      %213 = vrot.lane.b32.xlu0 %v196, 127
      %v214 = vpop.permute.xlu0 %213
      %215 = vrot.lane.b32.xlu0 %v197, 127
      %v216 = vpop.permute.xlu0 %215
      %217 = vrot.lane.b32.xlu0 %v198, 127
      %v218 = vpop.permute.xlu0 %217
      %219 = vrot.lane.b32.xlu0 %v199, 127
      %v220 = vpop.permute.xlu0 %219
      %vm221 = vcmask 1039360
      %v222 = vsel %vm221, %v214, %v216
      %v223 = vsel %vm221, %v218, %v220
      %vm226 = vcmask 130048
      %v228 = vsel %vm226, %v205, 0
      %v231 = vsel %vm226, %v206, 0
      %v234 = vsel %vm226, %v207, 0
      %v237 = vsel %vm226, %v208, 0
      %239 = vmatprep.subr.mxu0 0.0
      %240 = vmatpush1.msra.mxu0 %v222
      %241 = vmatprep.subr.mxu0 0.0
      %242 = vmatpush1.msra.mxu0 %v223
      %243 = vmatprep.subr.mxu0 0.0
      %244 = vmatpush1.msra.mxu0 0.0
      %245 = vmatprep.subr.mxu0 0.0
      %246 = vmatpush1.msra.mxu0 0.0
      %247 = vmatprep.subr.mxu0 0.0
      %248 = vmatpush1.msra.mxu0 0.0
      %249 = vmatprep.subr.mxu0 0.0
      %250 = vmatpush1.msra.mxu0 0.0
      %251 = vmatprep.subr.mxu0 0.0
      %252 = vmatpush1.msra.mxu0 0.0
      %253 = vmatprep.subr.mxu0 0.0
      %254 = vmatpush1.msra.mxu0 0.0
      %255 = vmatprep.subr.mxu0 0.0
      %256 = vmatpush1.msra.mxu0 0.0
      %257 = vmatprep.subr.mxu0 0.0
      %258 = vmatpush1.msra.mxu0 0.0
      %259 = vmatprep.subr.mxu0 0.0
      %260 = vmatpush1.msra.mxu0 0.0
      %261 = vmatprep.subr.mxu0 0.0
      %262 = vmatpush1.msra.mxu0 0.0
      %263 = vmatprep.subr.mxu0 0.0
      %264 = vmatpush1.msra.mxu0 0.0
      %265 = vmatprep.subr.mxu0 0.0
      %266 = vmatpush1.msra.mxu0 0.0
      %267 = vmatprep.subr.mxu0 0.0
      %268 = vmatpush1.msra.mxu0 0.0
      %269 = vmatprep.subr.mxu0 0.0
      %270 = vmatpush1.msra.mxu0 0.0
      %271 = vmatprep.subr.mxu0 0.0
      %272 = vmatpush1.msra.mxu0 0.0
      %273 = vmatprep.subr.mxu0 0.0
      %274 = vmatpush1.msra.mxu0 0.0
      %275 = vmatprep.subr.mxu0 0.0
      %276 = vmatpush1.msra.mxu0 0.0
      %277 = vmatprep.subr.mxu0 0.0
      %278 = vmatpush1.msra.mxu0 0.0
      %279 = vmatprep.subr.mxu0 0.0
      %280 = vmatpush1.msra.mxu0 0.0
      %281 = vmatprep.subr.mxu0 0.0
      %282 = vmatpush1.msra.mxu0 0.0
      %283 = vmatprep.subr.mxu0 0.0
      %284 = vmatpush1.msra.mxu0 0.0
      %285 = vmatprep.subr.mxu0 0.0
      %286 = vmatpush1.msra.mxu0 0.0
      %287 = vmatprep.subr.mxu0 0.0
      %288 = vmatpush1.msra.mxu0 0.0
      %289 = vmatprep.subr.mxu0 0.0
      %290 = vmatpush1.msra.mxu0 0.0
      %291 = vmatprep.subr.mxu0 0.0
      %292 = vmatpush1.msra.mxu0 0.0
      %293 = vmatprep.subr.mxu0 0.0
      %294 = vmatpush1.msra.mxu0 0.0
      %295 = vmatprep.subr.mxu0 0.0
      %296 = vmatpush1.msra.mxu0 0.0
      %297 = vmatprep.subr.mxu0 0.0
      %298 = vmatpush1.msra.mxu0 0.0
      %299 = vmatprep.subr.mxu0 0.0
      %300 = vmatpush1.msra.mxu0 0.0
      %301 = vmatprep.subr.mxu0 0.0
      %302 = vmatpush1.msra.mxu0 0.0
      %303 = vmatprep.mubr.f32.mxu0 0.0
      %304 = vmatmul.mubr.f32.gmra.mrb[0].mxu0 %v228
      %v305 = vpop.f32.mrb[0].mxu0
      %v306 = vadd.f32 0.0, %v305
      %v307 = vpop.f32.mrb[0].mxu0
      %308 = vmatprep.mubr.f32.mxu0 0.0
      %309 = vmatmul.mubr.f32.gmra.mrb[0].mxu0 %v231
      %v310 = vpop.f32.mrb[0].mxu0
      %v311 = vadd.f32 0.0, %v310
      %v312 = vpop.f32.mrb[0].mxu0
      %313 = vmatprep.mubr.f32.mxu0 0.0
      %314 = vmatmul.mubr.f32.gmra.mrb[0].mxu0 %v234
      %v315 = vpop.f32.mrb[0].mxu0
      %v316 = vadd.f32 0.0, %v315
      %v317 = vpop.f32.mrb[0].mxu0
      %318 = vmatprep.mubr.f32.mxu0 0.0
      %319 = vmatmul.mubr.f32.gmra.mrb[0].mxu0 %v237
      %v320 = vpop.f32.mrb[0].mxu0
      %v321 = vadd.f32 0.0, %v320
      %v322 = vpop.f32.mrb[0].mxu0
      %323 = vdwg.mxu0
      %v325 = vsel %vm226, %v200, 0
      %v328 = vsel %vm226, %v201, 0
      %v331 = vsel %vm226, %v202, 0
      %v334 = vsel %vm226, %v203, 0
      %336 = vmatprep.subr.mxu0 0.0
      %337 = vmatpush1.msra.mxu0 %v196
      %338 = vmatprep.subr.mxu0 0.0
      %339 = vmatpush1.msra.mxu0 %v198
      %340 = vmatprep.subr.mxu0 0.0
      %341 = vmatpush1.msra.mxu0 0.0
      %342 = vmatprep.subr.mxu0 0.0
      %343 = vmatpush1.msra.mxu0 0.0
      %344 = vmatprep.subr.mxu0 0.0
      %345 = vmatpush1.msra.mxu0 0.0
      %346 = vmatprep.subr.mxu0 0.0
      %347 = vmatpush1.msra.mxu0 0.0
      %348 = vmatprep.subr.mxu0 0.0
      %349 = vmatpush1.msra.mxu0 0.0
      %350 = vmatprep.subr.mxu0 0.0
      %351 = vmatpush1.msra.mxu0 0.0
      %352 = vmatprep.subr.mxu0 0.0
      %353 = vmatpush1.msra.mxu0 0.0
      %354 = vmatprep.subr.mxu0 0.0
      %355 = vmatpush1.msra.mxu0 0.0
      %356 = vmatprep.subr.mxu0 0.0
      %357 = vmatpush1.msra.mxu0 0.0
      %358 = vmatprep.subr.mxu0 0.0
      %359 = vmatpush1.msra.mxu0 0.0
      %360 = vmatprep.subr.mxu0 0.0
      %361 = vmatpush1.msra.mxu0 0.0
      %362 = vmatprep.subr.mxu0 0.0
      %363 = vmatpush1.msra.mxu0 0.0
      %364 = vmatprep.subr.mxu0 0.0
      %365 = vmatpush1.msra.mxu0 0.0
      %366 = vmatprep.subr.mxu0 0.0
      %367 = vmatpush1.msra.mxu0 0.0
      %368 = vmatprep.subr.mxu0 0.0
      %369 = vmatpush1.msra.mxu0 0.0
      %370 = vmatprep.subr.mxu0 0.0
      %371 = vmatpush1.msra.mxu0 0.0
      %372 = vmatprep.subr.mxu0 0.0
      %373 = vmatpush1.msra.mxu0 0.0
      %374 = vmatprep.subr.mxu0 0.0
      %375 = vmatpush1.msra.mxu0 0.0
      %376 = vmatprep.subr.mxu0 0.0
      %377 = vmatpush1.msra.mxu0 0.0
      %378 = vmatprep.subr.mxu0 0.0
      %379 = vmatpush1.msra.mxu0 0.0
      %380 = vmatprep.subr.mxu0 0.0
      %381 = vmatpush1.msra.mxu0 0.0
      %382 = vmatprep.subr.mxu0 0.0
      %383 = vmatpush1.msra.mxu0 0.0
      %384 = vmatprep.subr.mxu0 0.0
      %385 = vmatpush1.msra.mxu0 0.0
      %386 = vmatprep.subr.mxu0 0.0
      %387 = vmatpush1.msra.mxu0 0.0
      %388 = vmatprep.subr.mxu0 0.0
      %389 = vmatpush1.msra.mxu0 0.0
      %390 = vmatprep.subr.mxu0 0.0
      %391 = vmatpush1.msra.mxu0 0.0
      %392 = vmatprep.subr.mxu0 0.0
      %393 = vmatpush1.msra.mxu0 0.0
      %394 = vmatprep.subr.mxu0 0.0
      %395 = vmatpush1.msra.mxu0 0.0
      %396 = vmatprep.subr.mxu0 0.0
      %397 = vmatpush1.msra.mxu0 0.0
      %398 = vmatprep.subr.mxu0 0.0
      %399 = vmatpush1.msra.mxu0 0.0
      %400 = vmatprep.mubr.f32.mxu0 0.0
      %401 = vmatmul.mubr.f32.gmra.mrb[0].mxu0 %v325
      %v402 = vpop.f32.mrb[0].mxu0
      %v403 = vadd.f32 %v306, %v402
      %v404 = vpop.f32.mrb[0].mxu0
      %405 = vmatprep.mubr.f32.mxu0 0.0
      %406 = vmatmul.mubr.f32.gmra.mrb[0].mxu0 %v328
      %v407 = vpop.f32.mrb[0].mxu0
      %v408 = vadd.f32 %v311, %v407
      %v409 = vpop.f32.mrb[0].mxu0
      %410 = vmatprep.mubr.f32.mxu0 0.0
      %411 = vmatmul.mubr.f32.gmra.mrb[0].mxu0 %v331
      %v412 = vpop.f32.mrb[0].mxu0
      %v413 = vadd.f32 %v316, %v412
      %v414 = vpop.f32.mrb[0].mxu0
      %415 = vmatprep.mubr.f32.mxu0 0.0
      %416 = vmatmul.mubr.f32.gmra.mrb[0].mxu0 %v334
      %v417 = vpop.f32.mrb[0].mxu0
      %v418 = vadd.f32 %v321, %v417
      %v419 = vpop.f32.mrb[0].mxu0
      %420 = vdwg.mxu0
      %s421 = scalar_lea.vmem %s1, 64
      %v422 = vld [vmem:[%s421] sm:$0xff]
      %v423 = vld [vmem:[%s421 + $0x8] sm:$0xff]
      %v424 = vld [vmem:[%s421 + $0x10] sm:$0xff]
      %v425 = vld [vmem:[%s421 + $0x18] sm:$0xff]
      %426 = vrot.lane.b32.xlu0 %v196, 126
      %v427 = vpop.permute.xlu0 %426
      %428 = vrot.lane.b32.xlu0 %v197, 126
      %v429 = vpop.permute.xlu0 %428
      %430 = vrot.lane.b32.xlu0 %v198, 126
      %v431 = vpop.permute.xlu0 %430
      %432 = vrot.lane.b32.xlu0 %v199, 126
      %v433 = vpop.permute.xlu0 %432
      %vm434 = vcmask 1031168
      %v435 = vsel %vm434, %v427, %v429
      %v436 = vsel %vm434, %v431, %v433
      %v440 = vsel %vm226, %v422, 0
      %v443 = vsel %vm226, %v423, 0
      %v446 = vsel %vm226, %v424, 0
      %v449 = vsel %vm226, %v425, 0
      %451 = vmatprep.subr.mxu0 0.0
      %452 = vmatpush1.msra.mxu0 %v435
      %453 = vmatprep.subr.mxu0 0.0
      %454 = vmatpush1.msra.mxu0 %v436
      %455 = vmatprep.subr.mxu0 0.0
      %456 = vmatpush1.msra.mxu0 0.0
      %457 = vmatprep.subr.mxu0 0.0
      %458 = vmatpush1.msra.mxu0 0.0
      %459 = vmatprep.subr.mxu0 0.0
      %460 = vmatpush1.msra.mxu0 0.0
      %461 = vmatprep.subr.mxu0 0.0
      %462 = vmatpush1.msra.mxu0 0.0
      %463 = vmatprep.subr.mxu0 0.0
      %464 = vmatpush1.msra.mxu0 0.0
      %465 = vmatprep.subr.mxu0 0.0
      %466 = vmatpush1.msra.mxu0 0.0
      %467 = vmatprep.subr.mxu0 0.0
      %468 = vmatpush1.msra.mxu0 0.0
      %469 = vmatprep.subr.mxu0 0.0
      %470 = vmatpush1.msra.mxu0 0.0
      %471 = vmatprep.subr.mxu0 0.0
      %472 = vmatpush1.msra.mxu0 0.0
      %473 = vmatprep.subr.mxu0 0.0
      %474 = vmatpush1.msra.mxu0 0.0
      %475 = vmatprep.subr.mxu0 0.0
      %476 = vmatpush1.msra.mxu0 0.0
      %477 = vmatprep.subr.mxu0 0.0
      %478 = vmatpush1.msra.mxu0 0.0
      %479 = vmatprep.subr.mxu0 0.0
      %480 = vmatpush1.msra.mxu0 0.0
      %481 = vmatprep.subr.mxu0 0.0
      %482 = vmatpush1.msra.mxu0 0.0
      %483 = vmatprep.subr.mxu0 0.0
      %484 = vmatpush1.msra.mxu0 0.0
      %485 = vmatprep.subr.mxu0 0.0
      %486 = vmatpush1.msra.mxu0 0.0
      %487 = vmatprep.subr.mxu0 0.0
      %488 = vmatpush1.msra.mxu0 0.0
      %489 = vmatprep.subr.mxu0 0.0
      %490 = vmatpush1.msra.mxu0 0.0
      %491 = vmatprep.subr.mxu0 0.0
      %492 = vmatpush1.msra.mxu0 0.0
      %493 = vmatprep.subr.mxu0 0.0
      %494 = vmatpush1.msra.mxu0 0.0
      %495 = vmatprep.subr.mxu0 0.0
      %496 = vmatpush1.msra.mxu0 0.0
      %497 = vmatprep.subr.mxu0 0.0
      %498 = vmatpush1.msra.mxu0 0.0
      %499 = vmatprep.subr.mxu0 0.0
      %500 = vmatpush1.msra.mxu0 0.0
      %501 = vmatprep.subr.mxu0 0.0
      %502 = vmatpush1.msra.mxu0 0.0
      %503 = vmatprep.subr.mxu0 0.0
      %504 = vmatpush1.msra.mxu0 0.0
      %505 = vmatprep.subr.mxu0 0.0
      %506 = vmatpush1.msra.mxu0 0.0
      %507 = vmatprep.subr.mxu0 0.0
      %508 = vmatpush1.msra.mxu0 0.0
      %509 = vmatprep.subr.mxu0 0.0
      %510 = vmatpush1.msra.mxu0 0.0
      %511 = vmatprep.subr.mxu0 0.0
      %512 = vmatpush1.msra.mxu0 0.0
      %513 = vmatprep.subr.mxu0 0.0
      %514 = vmatpush1.msra.mxu0 0.0
      %515 = vmatprep.mubr.f32.mxu0 0.0
      %516 = vmatmul.mubr.f32.gmra.mrb[0].mxu0 %v440
      %v517 = vpop.f32.mrb[0].mxu0
      %v518 = vadd.f32 0.0, %v517
      %v519 = vpop.f32.mrb[0].mxu0
      %520 = vmatprep.mubr.f32.mxu0 0.0
      %521 = vmatmul.mubr.f32.gmra.mrb[0].mxu0 %v443
      %v522 = vpop.f32.mrb[0].mxu0
      %v523 = vadd.f32 0.0, %v522
      %v524 = vpop.f32.mrb[0].mxu0
      %525 = vmatprep.mubr.f32.mxu0 0.0
      %526 = vmatmul.mubr.f32.gmra.mrb[0].mxu0 %v446
      %v527 = vpop.f32.mrb[0].mxu0
      %v528 = vadd.f32 0.0, %v527
      %v529 = vpop.f32.mrb[0].mxu0
      %530 = vmatprep.mubr.f32.mxu0 0.0
      %531 = vmatmul.mubr.f32.gmra.mrb[0].mxu0 %v449
      %v532 = vpop.f32.mrb[0].mxu0
      %v533 = vadd.f32 0.0, %v532
      %v534 = vpop.f32.mrb[0].mxu0
      %535 = vdwg.mxu0
      %v536 = vadd.f32 %v403, %v518
      %v537 = vadd.f32 %v408, %v523
      %v538 = vadd.f32 %v413, %v528
      %v539 = vadd.f32 %v418, %v533
      %v540 = vld [vmem:[%s2] sm:$0xff]
      %v541 = vld [vmem:[%s2 + $0x8] sm:$0xff]
      %v542 = vld [vmem:[%s2 + $0x10] sm:$0xff]
      %v543 = vld [vmem:[%s2 + $0x18] sm:$0xff]
      %545 = vset.pattern.permute.xlu0 0
      %546 = vperm.xlu0 %545, %v540
      %v547 = vpop.permute.xlu0 %546
      %550 = vset.pattern.permute.xlu0 0
      %551 = vperm.xlu0 %550, %v541
      %v552 = vpop.permute.xlu0 %551
      %555 = vset.pattern.permute.xlu0 0
      %556 = vperm.xlu0 %555, %v542
      %v557 = vpop.permute.xlu0 %556
      %560 = vset.pattern.permute.xlu0 0
      %561 = vperm.xlu0 %560, %v543
      %v562 = vpop.permute.xlu0 %561
      %v564 = vadd.f32 %v536, %v547
      %v565 = vadd.f32 %v537, %v552
      %v566 = vadd.f32 %v538, %v557
      %v567 = vadd.f32 %v539, %v562
      %568 = vst [vmem:[%s190] sm:$0xff] %v564
      %569 = vst [vmem:[%s190 + $0x8] sm:$0xff] %v565
      %570 = vst [vmem:[%s190 + $0x10] sm:$0xff] %v566
      %571 = vst [vmem:[%s190 + $0x18] sm:$0xff] %v567
      %p572 = scmp.lt.s32.totalorder %s18, 1
      %s573 = scalar_select %p572, %s18, 1
      %p574 = scmp.lt.s32.totalorder %s19, 0
      %s575 = scalar_select %p574, %s19, 0
      %s576 = smul.addr %s573, 4
      %s577 = sadd.s32 %s575, %s576
      %s578 = smul.addr %s577, 8
      %s579 = scalar_lea.vmem %s3, %s578
      // Predicated region
      $region33: #{_phase_decoder_impl.19} parent=31 // pred_check
        %p580 = pneg %p114
      $region34: #{_phase_decoder_impl.19} parent=31 // pred_check_branch
        %582 = sbr.rel (%p580) target = $region36
      $region35: #{_phase_decoder_impl.19} parent=31 // pred_region
        _
      $region36: #{_phase_decoder_impl.19} parent=31 // pred_fallthru
        _
    $region32: #{_phase_decoder_impl.19} parent=5 // pred_fallthru
      _
    %p583 = scmp.le.s32.totalorder 2, %s9
    // Predicated region
    $region37: #{_phase_decoder_impl.19} parent=5 // pred_check
      %p584 = pneg %p583
    $region38: #{_phase_decoder_impl.19} parent=5 // pred_check_branch
      %586 = sbr.rel (%p584) target = $region40
    $region39: #{_phase_decoder_impl.19} parent=5 // pred_region
      %s587 = ssub.s32 %s9, 2
      // Predicated region
      $region41: #{_phase_decoder_impl.19} parent=39 // pred_check
        %p588 = pneg %p120
      $region42: #{_phase_decoder_impl.19} parent=39 // pred_check_branch
        %590 = sbr.rel (%p588) target = $region44
      $region43: #{_phase_decoder_impl.19} parent=39 // pred_region
        %p591 = scmp.lt.s32.totalorder %s20, 1
        %s592 = scalar_select %p591, %s20, 1
        %p593 = scmp.lt.s32.totalorder %s21, 0
        %s594 = scalar_select %p593, %s21, 0
        %s595 = smul.addr %s592, 4
        %s596 = sadd.s32 %s594, %s595
        %s597 = smul.addr %s596, 8
        %s598 = scalar_lea.vmem %s3, %s597
      $region44: #{_phase_decoder_impl.19} parent=39 // pred_fallthru
        _
    $region40: #{_phase_decoder_impl.19} parent=5 // pred_fallthru
      _
  $region6: #{_phase_decoder_impl.19} parent=0 // loop_footer
    %s13 = sadd.s32 1, %s9
  $region7: #{_phase_decoder_impl.19} parent=0 // loop_footer_branch
    %8 = sbr.rel target = $region3
  $region8: #{_phase_decoder_impl.19} parent=0 // loop_exit
    _

// kernel: _phase_decoder_impl.20
$region0: #{_phase_decoder_impl.20}
  #allocation0 [shape = 'u32[]', space=smem, size = 0x4, offset = 0x4, fixed_abs, tag = 'smem constant byte address 0x4 - core index']
  #allocation1 [shape = 'u32[144,128]{1,0:T(1,128)}', space=vmem, size = 0x12000, scoped, tag = 'internal scratch']
  %s0 = inlined_call_operand.vmem [shape: f32[32,144], index: 0, kind: input, shape index: {}]
  %s1 = inlined_call_operand.vmem [shape: f32[32,1], index: 1, kind: input, shape index: {}]
  %s2 = inlined_call_operand.vmem [shape: f32[32,1], index: 2, kind: input, shape index: {}]
  %s3 = inlined_call_operand.vmem [shape: f32[32,1], index: 3, kind: input, shape index: {}]
  %s4 = inlined_call_operand.vmem [shape: f32[32,144], index: 4, kind: output, shape index: {}]
  %s5 = sld [smem:[#allocation0]]
  $region49: #{_phase_decoder_impl.20} parent=0
    _
  %s7 = ssub.s32 1, %s5
  %s8 = scalar_select 0, %s7, %s5
  loop: start=0, step=1, limit=6
  $region2: #{_phase_decoder_impl.20} parent=0 // loop_pre_header
    _
  $region3: #{_phase_decoder_impl.20} parent=0 // loop_header
    %s10 = sphi 0, %s14
    %p11 = scmp.ge.s32.totalorder %s10, 6
    %s20 = sphi 0, %s22
    %s23 = sphi 0, %s20
    %s24 = sphi 0, %s23
    %s40 = sphi 0, %s24
    %s46 = sphi 0, %s48
    %s49 = sphi 0, %s46
    %s50 = sphi 0, %s49
    %s66 = sphi 0, %s50
    %s72 = sphi 0, %s74
    %s75 = sphi 0, %s72
    %s76 = sphi 0, %s75
    %s92 = sphi 0, %s76
    %s98 = sphi 0, %s100
    %s101 = sphi 0, %s98
    %s102 = sphi 0, %s101
    %s118 = sphi 0, %s102
    %s124 = sphi 0, %s126
    %s127 = sphi 0, %s124
    %s128 = sphi 0, %s127
    %s144 = sphi 0, %s128
  $region4: #{_phase_decoder_impl.20} parent=0 // loop_header_branch
    %13 = sbr.rel (%p11) target = $region8
  $region5: #{_phase_decoder_impl.20} parent=0 // loop_body
    %s15 = ssub.s32 %s10, 1
    %s16 = ssub.s32 %s10, 2
    %s17 = sadd.s32 %s10, 1
    %s18 = ssub.s32 %s10, %s17
    %p19 = scmp.eq.s32.totalorder %s18, 0
    %s21 = sadd.s32 %s20, 1
    %s22 = scalar_select %p19, %s20, %s21
    %p25 = pneg %p19
    %p26 = scmp.eq.s32.totalorder %s10, 3
    %p27 = por %p25, %p26
    %p28 = scmp.ne.s32.totalorder %s20, %s23
    %p29 = scmp.eq.s32.totalorder %s10, 0
    %p30 = por %p28, %p29
    %p31 = scmp.ne.s32.totalorder %s20, %s23
    %p32 = scmp.eq.s32.totalorder %s15, 3
    %p33 = por %p31, %p32
    %p34 = scmp.ne.s32.totalorder %s23, %s24
    %p35 = scmp.eq.s32.totalorder %s15, 0
    %p36 = por %p34, %p35
    %p37 = scmp.ne.s32.totalorder %s23, %s24
    %p38 = scmp.eq.s32.totalorder %s16, 3
    %p39 = por %p37, %p38
    %p41 = scmp.ne.s32.totalorder %s24, %s40
    %p42 = scmp.eq.s32.totalorder %s16, 0
    %p43 = por %p41, %p42
    %s44 = ssub.s32 %s10, %s17
    %p45 = scmp.eq.s32.totalorder %s44, 0
    %s47 = sadd.s32 %s46, 1
    %s48 = scalar_select %p45, %s46, %s47
    %p51 = pneg %p45
    %p52 = scmp.eq.s32.totalorder %s10, 3
    %p53 = por %p51, %p52
    %p54 = scmp.ne.s32.totalorder %s46, %s49
    %p55 = scmp.eq.s32.totalorder %s10, 0
    %p56 = por %p54, %p55
    %p57 = scmp.ne.s32.totalorder %s46, %s49
    %p58 = scmp.eq.s32.totalorder %s15, 3
    %p59 = por %p57, %p58
    %p60 = scmp.ne.s32.totalorder %s49, %s50
    %p61 = scmp.eq.s32.totalorder %s15, 0
    %p62 = por %p60, %p61
    %p63 = scmp.ne.s32.totalorder %s49, %s50
    %p64 = scmp.eq.s32.totalorder %s16, 3
    %p65 = por %p63, %p64
    %p67 = scmp.ne.s32.totalorder %s50, %s66
    %p68 = scmp.eq.s32.totalorder %s16, 0
    %p69 = por %p67, %p68
    %s70 = ssub.s32 %s10, %s17
    %p71 = scmp.eq.s32.totalorder %s70, 0
    %s73 = sadd.s32 %s72, 1
    %s74 = scalar_select %p71, %s72, %s73
    %p77 = pneg %p71
    %p78 = scmp.eq.s32.totalorder %s10, 3
    %p79 = por %p77, %p78
    %p80 = scmp.ne.s32.totalorder %s72, %s75
    %p81 = scmp.eq.s32.totalorder %s10, 0
    %p82 = por %p80, %p81
    %p83 = scmp.ne.s32.totalorder %s72, %s75
    %p84 = scmp.eq.s32.totalorder %s15, 3
    %p85 = por %p83, %p84
    %p86 = scmp.ne.s32.totalorder %s75, %s76
    %p87 = scmp.eq.s32.totalorder %s15, 0
    %p88 = por %p86, %p87
    %p89 = scmp.ne.s32.totalorder %s75, %s76
    %p90 = scmp.eq.s32.totalorder %s16, 3
    %p91 = por %p89, %p90
    %p93 = scmp.ne.s32.totalorder %s76, %s92
    %p94 = scmp.eq.s32.totalorder %s16, 0
    %p95 = por %p93, %p94
    %s96 = ssub.s32 %s10, %s17
    %p97 = scmp.eq.s32.totalorder %s96, 0
    %s99 = sadd.s32 %s98, 1
    %s100 = scalar_select %p97, %s98, %s99
    %p103 = pneg %p97
    %p104 = scmp.eq.s32.totalorder %s10, 3
    %p105 = por %p103, %p104
    %p106 = scmp.ne.s32.totalorder %s98, %s101
    %p107 = scmp.eq.s32.totalorder %s10, 0
    %p108 = por %p106, %p107
    %p109 = scmp.ne.s32.totalorder %s98, %s101
    %p110 = scmp.eq.s32.totalorder %s15, 3
    %p111 = por %p109, %p110
    %p112 = scmp.ne.s32.totalorder %s101, %s102
    %p113 = scmp.eq.s32.totalorder %s15, 0
    %p114 = por %p112, %p113
    %p115 = scmp.ne.s32.totalorder %s101, %s102
    %p116 = scmp.eq.s32.totalorder %s16, 3
    %p117 = por %p115, %p116
    %p119 = scmp.ne.s32.totalorder %s102, %s118
    %p120 = scmp.eq.s32.totalorder %s16, 0
    %p121 = por %p119, %p120
    %s122 = ssub.s32 %s10, %s17
    %p123 = scmp.eq.s32.totalorder %s122, 0
    %s125 = sadd.s32 %s124, 1
    %s126 = scalar_select %p123, %s124, %s125
    %p129 = pneg %p123
    %p130 = scmp.eq.s32.totalorder %s10, 3
    %p131 = por %p129, %p130
    %p132 = scmp.ne.s32.totalorder %s124, %s127
    %p133 = scmp.eq.s32.totalorder %s10, 0
    %p134 = por %p132, %p133
    %p135 = scmp.ne.s32.totalorder %s124, %s127
    %p136 = scmp.eq.s32.totalorder %s15, 3
    %p137 = por %p135, %p136
    %p138 = scmp.ne.s32.totalorder %s127, %s128
    %p139 = scmp.eq.s32.totalorder %s15, 0
    %p140 = por %p138, %p139
    %p141 = scmp.ne.s32.totalorder %s127, %s128
    %p142 = scmp.eq.s32.totalorder %s16, 3
    %p143 = por %p141, %p142
    %p145 = scmp.ne.s32.totalorder %s128, %s144
    %p146 = scmp.eq.s32.totalorder %s16, 0
    %p147 = por %p145, %p146
    %p148 = scmp.le.s32.totalorder 1, %s10
    %p149 = scmp.lt.s32.totalorder %s10, 5
    %p150 = pnand %p148, %p149
    %p151 = pneg %p150
    // Predicated region
    $region9: #{_phase_decoder_impl.20} parent=5 // pred_check
      _
    $region10: #{_phase_decoder_impl.20} parent=5 // pred_check_branch
      %153 = sbr.rel (%p150) target = $region12
    $region11: #{_phase_decoder_impl.20} parent=5 // pred_region
      %s154 = ssub.s32 %s10, 1
    $region12: #{_phase_decoder_impl.20} parent=5 // pred_fallthru
      _
    %p155 = scmp.lt.s32.totalorder %s10, 4
    // Predicated region
    $region13: #{_phase_decoder_impl.20} parent=5 // pred_check
      %p156 = pneg %p155
    $region14: #{_phase_decoder_impl.20} parent=5 // pred_check_branch
      %158 = sbr.rel (%p156) target = $region16
    $region15: #{_phase_decoder_impl.20} parent=5 // pred_region
      // Predicated region
      $region17: #{_phase_decoder_impl.20} parent=15 // pred_check
        %p159 = pneg %p30
      $region18: #{_phase_decoder_impl.20} parent=15 // pred_check_branch
        %161 = sbr.rel (%p159) target = $region20
      $region19: #{_phase_decoder_impl.20} parent=15 // pred_region
        %p162 = scmp.lt.s32.totalorder %s10, 3
        %s163 = scalar_select %p162, %s10, 3
        %s164 = smul.addr %s163, 2
        %s165 = smul.addr %s164, 8
        %s166 = scalar_lea.vmem %s0, %s165
      $region20: #{_phase_decoder_impl.20} parent=15 // pred_fallthru
        _
      // Predicated region
      $region21: #{_phase_decoder_impl.20} parent=15 // pred_check
        %p167 = pneg %p56
      $region22: #{_phase_decoder_impl.20} parent=15 // pred_check_branch
        %169 = sbr.rel (%p167) target = $region24
      $region23: #{_phase_decoder_impl.20} parent=15 // pred_region
        %p170 = scmp.lt.s32.totalorder %s10, 3
        %s171 = scalar_select %p170, %s10, 3
        %s172 = smul.addr %s171, 8
        %s173 = scalar_lea.vmem %s1, %s172
      $region24: #{_phase_decoder_impl.20} parent=15 // pred_fallthru
        _
      // Predicated region
      $region25: #{_phase_decoder_impl.20} parent=15 // pred_check
        %p174 = pneg %p82
      $region26: #{_phase_decoder_impl.20} parent=15 // pred_check_branch
        %176 = sbr.rel (%p174) target = $region28
      $region27: #{_phase_decoder_impl.20} parent=15 // pred_region
        %p177 = scmp.lt.s32.totalorder %s10, 3
        %s178 = scalar_select %p177, %s10, 3
        %s179 = smul.addr %s178, 8
        %s180 = scalar_lea.vmem %s2, %s179
      $region28: #{_phase_decoder_impl.20} parent=15 // pred_fallthru
        _
      // Predicated region
      $region29: #{_phase_decoder_impl.20} parent=15 // pred_check
        %p181 = pneg %p108
      $region30: #{_phase_decoder_impl.20} parent=15 // pred_check_branch
        %183 = sbr.rel (%p181) target = $region32
      $region31: #{_phase_decoder_impl.20} parent=15 // pred_region
        %p184 = scmp.lt.s32.totalorder %s10, 3
        %s185 = scalar_select %p184, %s10, 3
        %s186 = smul.addr %s185, 8
        %s187 = scalar_lea.vmem %s3, %s186
      $region32: #{_phase_decoder_impl.20} parent=15 // pred_fallthru
        _
    $region16: #{_phase_decoder_impl.20} parent=5 // pred_fallthru
      _
    %p188 = scmp.le.s32.totalorder 1, %s10
    %p189 = scmp.lt.s32.totalorder %s10, 5
    %p190 = pnand %p188, %p189
    %p191 = pneg %p190
    // Predicated region
    $region33: #{_phase_decoder_impl.20} parent=5 // pred_check
      _
    $region34: #{_phase_decoder_impl.20} parent=5 // pred_check_branch
      %193 = sbr.rel (%p190) target = $region36
    $region35: #{_phase_decoder_impl.20} parent=5 // pred_region
      %s194 = ssub.s32 %s10, 1
      %p195 = scmp.lt.s32.totalorder %s15, 3
      %s196 = scalar_select %p195, %s15, 3
      %s197 = smul.addr %s196, 2
      %s198 = smul.addr %s197, 8
      %s199 = scalar_lea.vmem %s0, %s198
      %p200 = pneg %p36
      %p201 = pneg %p33
      %p202 = scmp.lt.s32.totalorder %s15, 3
      %s203 = scalar_select %p202, %s15, 3
      %s204 = smul.addr %s203, 8
      %s205 = scalar_lea.vmem %s1, %s204
      %p206 = pneg %p62
      %p207 = pneg %p59
      %p208 = scmp.lt.s32.totalorder %s15, 3
      %s209 = scalar_select %p208, %s15, 3
      %s210 = smul.addr %s209, 8
      %s211 = scalar_lea.vmem %s2, %s210
      %p212 = pneg %p88
      %p213 = pneg %p85
      %p214 = scmp.lt.s32.totalorder %s15, 3
      %s215 = scalar_select %p214, %s15, 3
      %s216 = smul.addr %s215, 8
      %s217 = scalar_lea.vmem %s3, %s216
      %p218 = pneg %p114
      %p219 = pneg %p111
      %p220 = pneg %p140
      %p221 = pneg %p137
      %p222 = scmp.lt.s32.totalorder %s15, 3
      %s223 = scalar_select %p222, %s15, 3
      %s224 = smul.addr %s223, 2
      %s225 = smul.addr %s224, 8
      %s226 = scalar_lea.vmem %s4, %s225
      %p227 = scmp.lt.s32.totalorder %s15, 3
      %s228 = scalar_select %p227, %s15, 3
      %s229 = smul.addr %s228, 2
      %s230 = smul.addr %s229, 8
      %s231 = scalar_lea.vmem %s0, %s230
      %p232 = scmp.lt.s32.totalorder %s15, 3
      %s233 = scalar_select %p232, %s15, 3
      %s234 = smul.addr %s233, 8
      %s235 = scalar_lea.vmem %s1, %s234
      %p236 = scmp.lt.s32.totalorder %s15, 3
      %s237 = scalar_select %p236, %s15, 3
      %s238 = smul.addr %s237, 8
      %s239 = scalar_lea.vmem %s2, %s238
      %p240 = scmp.lt.s32.totalorder %s15, 3
      %s241 = scalar_select %p240, %s15, 3
      %s242 = smul.addr %s241, 8
      %s243 = scalar_lea.vmem %s3, %s242
      %p244 = scmp.lt.s32.totalorder %s15, 3
      %s245 = scalar_select %p244, %s15, 3
      %s246 = smul.addr %s245, 2
      %s247 = smul.addr %s246, 8
      %s248 = scalar_lea.vmem %s4, %s247
      %v249 = vld [vmem:[%s231] sm:$0xff]
      %v250 = vld [vmem:[%s231 + $0x8] sm:$0xff]
      %vm251 = vcmask 130048
      %v252 = vsel %vm251, %v250, 0.0
      %v253 = vadd.f32 %v249, %v252
      %254 = vadd.xlane.f32.xlu0 %v253
      %v255 = vpop.xlane.xlu0 %254
      %v256 = vrcp.pop 144.0
      %v257 = vmul.f32 %v255, %v256
      %v258 = vsub.f32 %v249, %v257
      %v259 = vsub.f32 %v250, %v257
      %v260 = vmul.f32 %v258, %v258
      %v261 = vmul.f32 %v259, %v259
      %v262 = vsel %vm251, %v261, 0.0
      %v263 = vadd.f32 %v260, %v262
      %264 = vadd.xlane.f32.xlu0 %v263
      %v265 = vpop.xlane.xlu0 %264
      %v266 = vmul.f32 %v265, %v256
      %v267 = vadd.f32 %v266, 1e-05
      %v268 = vrsqrt.pop %v267
      %v269 = vmul.f32 %v258, %v268
      %v270 = vmul.f32 %v259, %v268
      %v271 = vld [vmem:[%s235] sm:$0xff]
      %273 = vset.pattern.permute.xlu0 0
      %274 = vperm.xlu0 %273, %v271
      %v275 = vpop.permute.xlu0 %274
      %v277 = vmul.f32 %v269, %v275
      %v278 = vmul.f32 %v270, %v275
      %v279 = vld [vmem:[%s239] sm:$0xff]
      %281 = vset.pattern.permute.xlu0 0
      %282 = vperm.xlu0 %281, %v279
      %v283 = vpop.permute.xlu0 %282
      %v285 = vadd.f32 %v277, %v283
      %v286 = vadd.f32 %v278, %v283
      %vm287 = vcmp.gt.f32.partialorder %v285, 0.0
      %vm288 = vcmp.gt.f32.partialorder %v286, 0.0
      %v289 = vld [vmem:[%s243] sm:$0xff]
      %291 = vset.pattern.permute.xlu0 0
      %292 = vperm.xlu0 %291, %v289
      %v293 = vpop.permute.xlu0 %292
      %v295 = vmul.f32 %v293, %v285
      %v296 = vmul.f32 %v293, %v286
      %v297 = vsel %vm287, %v285, %v295
      %v298 = vsel %vm288, %v286, %v296
      %299 = vst [vmem:[%s248] sm:$0xff] %v297
      %300 = vst.msk [vmem:[%s248 + $0x8] sm:$0xff] %vm251, %v298
      %p301 = scmp.lt.s32.totalorder %s15, 3
      %s302 = scalar_select %p301, %s15, 3
      %s303 = smul.addr %s302, 2
      %s304 = smul.addr %s303, 8
      %s305 = scalar_lea.vmem %s4, %s304
      // Predicated region
      $region37: #{_phase_decoder_impl.20} parent=35 // pred_check
        %p306 = pneg %p137
      $region38: #{_phase_decoder_impl.20} parent=35 // pred_check_branch
        %308 = sbr.rel (%p306) target = $region40
      $region39: #{_phase_decoder_impl.20} parent=35 // pred_region
        _
      $region40: #{_phase_decoder_impl.20} parent=35 // pred_fallthru
        _
    $region36: #{_phase_decoder_impl.20} parent=5 // pred_fallthru
      _
    %p309 = scmp.le.s32.totalorder 2, %s10
    // Predicated region
    $region41: #{_phase_decoder_impl.20} parent=5 // pred_check
      %p310 = pneg %p309
    $region42: #{_phase_decoder_impl.20} parent=5 // pred_check_branch
      %312 = sbr.rel (%p310) target = $region44
    $region43: #{_phase_decoder_impl.20} parent=5 // pred_region
      %s313 = ssub.s32 %s10, 2
      // Predicated region
      $region45: #{_phase_decoder_impl.20} parent=43 // pred_check
        %p314 = pneg %p143
      $region46: #{_phase_decoder_impl.20} parent=43 // pred_check_branch
        %316 = sbr.rel (%p314) target = $region48
      $region47: #{_phase_decoder_impl.20} parent=43 // pred_region
        %p317 = scmp.lt.s32.totalorder %s16, 3
        %s318 = scalar_select %p317, %s16, 3
        %s319 = smul.addr %s318, 2
        %s320 = smul.addr %s319, 8
        %s321 = scalar_lea.vmem %s4, %s320
      $region48: #{_phase_decoder_impl.20} parent=43 // pred_fallthru
        _
    $region44: #{_phase_decoder_impl.20} parent=5 // pred_fallthru
      _
  $region6: #{_phase_decoder_impl.20} parent=0 // loop_footer
    %s14 = sadd.s32 1, %s10
  $region7: #{_phase_decoder_impl.20} parent=0 // loop_footer_branch
    %9 = sbr.rel target = $region3
  $region8: #{_phase_decoder_impl.20} parent=0 // loop_exit
    _

// kernel: _phase_decoder_impl.21
$region0: #{_phase_decoder_impl.21}
  #allocation0 [shape = 'u32[]', space=smem, size = 0x4, offset = 0x4, fixed_abs, tag = 'smem constant byte address 0x4 - core index']
  #allocation1 [shape = 'u32[144,128]{1,0:T(1,128)}', space=vmem, size = 0x12000, scoped, tag = 'internal scratch']
  %s0 = inlined_call_operand.vmem [shape: f32[2,16,384], index: 0, kind: input, shape index: {}]
  %s1 = inlined_call_operand.vmem [shape: f32[2,2,16], index: 1, kind: input, shape index: {}]
  %s2 = inlined_call_operand.vmem [shape: f32[2,1], index: 2, kind: input, shape index: {}]
  %s3 = inlined_call_operand.vmem [shape: f32[2,2,256], index: 3, kind: output, shape index: {}]
  %s4 = sld [smem:[#allocation0]]
  $region45: #{_phase_decoder_impl.21} parent=0
    _
  %s6 = ssub.s32 1, %s4
  %s7 = scalar_select 0, %s6, %s4
  loop: start=0, step=1, limit=4
  $region2: #{_phase_decoder_impl.21} parent=0 // loop_pre_header
    _
  $region3: #{_phase_decoder_impl.21} parent=0 // loop_header
    %s9 = sphi 0, %s13
    %p10 = scmp.ge.s32.totalorder %s9, 4
    %s16 = sphi 0, %s28
    %s17 = sphi 0, %s24
    %s18 = sphi 0, %s16
    %s19 = sphi 0, %s17
    %s20 = sphi 0, %s18
    %s21 = sphi 0, %s19
    %s31 = sphi 0, %s33
    %s34 = sphi 0, %s31
    %s35 = sphi 0, %s34
    %s51 = sphi 0, %s35
    %s55 = sphi 0, %s55
    %s57 = sphi 0, %s55
    %s58 = sphi 0, %s57
    %s72 = sphi 0, %s58
    %s76 = sphi 0, %s76
    %s78 = sphi 0, %s76
    %s79 = sphi 0, %s78
    %s93 = sphi 0, %s79
    %s101 = sphi 0, %s103
    %s104 = sphi 0, %s101
    %s105 = sphi 0, %s104
    %s121 = sphi 0, %s105
  $region4: #{_phase_decoder_impl.21} parent=0 // loop_header_branch
    %12 = sbr.rel (%p10) target = $region8
  $region5: #{_phase_decoder_impl.21} parent=0 // loop_body
    %s14 = ssub.s32 %s9, 1
    %s15 = ssub.s32 %s9, 2
    %s22 = sadd.s32 1, %s17
    %p23 = scmp.ge.s32.totalorder %s22, 1
    %s24 = scalar_select %p23, 0, %s22
    %s25 = sadd.s32 1, %s16
    %s26 = scalar_select %p23, %s25, %s16
    %p27 = scmp.ge.s32.totalorder %s26, 2
    %s28 = scalar_select %p27, 0, %s26
    %s29 = ssub.s32 %s16, %s28
    %p30 = scmp.eq.s32.totalorder %s29, 0
    %s32 = sadd.s32 %s31, 1
    %s33 = scalar_select %p30, %s31, %s32
    %p36 = pneg %p30
    %p37 = scmp.eq.s32.totalorder %s9, 1
    %p38 = por %p36, %p37
    %p39 = scmp.ne.s32.totalorder %s31, %s34
    %p40 = scmp.eq.s32.totalorder %s9, 0
    %p41 = por %p39, %p40
    %p42 = scmp.ne.s32.totalorder %s31, %s34
    %p43 = scmp.eq.s32.totalorder %s14, 1
    %p44 = por %p42, %p43
    %p45 = scmp.ne.s32.totalorder %s34, %s35
    %p46 = scmp.eq.s32.totalorder %s14, 0
    %p47 = por %p45, %p46
    %p48 = scmp.ne.s32.totalorder %s34, %s35
    %p49 = scmp.eq.s32.totalorder %s15, 1
    %p50 = por %p48, %p49
    %p52 = scmp.ne.s32.totalorder %s35, %s51
    %p53 = scmp.eq.s32.totalorder %s15, 0
    %p54 = por %p52, %p53
    %s56 = sadd.s32 %s55, 1
    %p59 = scmp.eq.s32.totalorder %s9, 1
    %p60 = scmp.ne.s32.totalorder %s55, %s57
    %p61 = scmp.eq.s32.totalorder %s9, 0
    %p62 = por %p60, %p61
    %p63 = scmp.ne.s32.totalorder %s55, %s57
    %p64 = scmp.eq.s32.totalorder %s14, 1
    %p65 = por %p63, %p64
    %p66 = scmp.ne.s32.totalorder %s57, %s58
    %p67 = scmp.eq.s32.totalorder %s14, 0
    %p68 = por %p66, %p67
    %p69 = scmp.ne.s32.totalorder %s57, %s58
    %p70 = scmp.eq.s32.totalorder %s15, 1
    %p71 = por %p69, %p70
    %p73 = scmp.ne.s32.totalorder %s58, %s72
    %p74 = scmp.eq.s32.totalorder %s15, 0
    %p75 = por %p73, %p74
    %s77 = sadd.s32 %s76, 1
    %p80 = scmp.eq.s32.totalorder %s9, 1
    %p81 = scmp.ne.s32.totalorder %s76, %s78
    %p82 = scmp.eq.s32.totalorder %s9, 0
    %p83 = por %p81, %p82
    %p84 = scmp.ne.s32.totalorder %s76, %s78
    %p85 = scmp.eq.s32.totalorder %s14, 1
    %p86 = por %p84, %p85
    %p87 = scmp.ne.s32.totalorder %s78, %s79
    %p88 = scmp.eq.s32.totalorder %s14, 0
    %p89 = por %p87, %p88
    %p90 = scmp.ne.s32.totalorder %s78, %s79
    %p91 = scmp.eq.s32.totalorder %s15, 1
    %p92 = por %p90, %p91
    %p94 = scmp.ne.s32.totalorder %s79, %s93
    %p95 = scmp.eq.s32.totalorder %s15, 0
    %p96 = por %p94, %p95
    %s97 = ssub.s32 %s16, %s28
    %s98 = ssub.s32 %s17, %s24
    %s99 = sor.u32 %s97, %s98
    %p100 = scmp.eq.s32.totalorder %s99, 0
    %s102 = sadd.s32 %s101, 1
    %s103 = scalar_select %p100, %s101, %s102
    %p106 = pneg %p100
    %p107 = scmp.eq.s32.totalorder %s9, 1
    %p108 = por %p106, %p107
    %p109 = scmp.ne.s32.totalorder %s101, %s104
    %p110 = scmp.eq.s32.totalorder %s9, 0
    %p111 = por %p109, %p110
    %p112 = scmp.ne.s32.totalorder %s101, %s104
    %p113 = scmp.eq.s32.totalorder %s14, 1
    %p114 = por %p112, %p113
    %p115 = scmp.ne.s32.totalorder %s104, %s105
    %p116 = scmp.eq.s32.totalorder %s14, 0
    %p117 = por %p115, %p116
    %p118 = scmp.ne.s32.totalorder %s104, %s105
    %p119 = scmp.eq.s32.totalorder %s15, 1
    %p120 = por %p118, %p119
    %p122 = scmp.ne.s32.totalorder %s105, %s121
    %p123 = scmp.eq.s32.totalorder %s15, 0
    %p124 = por %p122, %p123
    %p125 = scmp.le.s32.totalorder 1, %s9
    %p126 = scmp.lt.s32.totalorder %s9, 3
    %p127 = pnand %p125, %p126
    %p128 = pneg %p127
    // Predicated region
    $region9: #{_phase_decoder_impl.21} parent=5 // pred_check
      _
    $region10: #{_phase_decoder_impl.21} parent=5 // pred_check_branch
      %130 = sbr.rel (%p127) target = $region12
    $region11: #{_phase_decoder_impl.21} parent=5 // pred_region
      %s131 = ssub.s32 %s9, 1
      // Predicated region
      $region13: #{_phase_decoder_impl.21} parent=11 // pred_check
        %p132 = pneg %p68
      $region14: #{_phase_decoder_impl.21} parent=11 // pred_check_branch
        %134 = sbr.rel (%p132) target = $region16
      $region15: #{_phase_decoder_impl.21} parent=11 // pred_region
        _
      $region16: #{_phase_decoder_impl.21} parent=11 // pred_fallthru
        _
      // Predicated region
      $region17: #{_phase_decoder_impl.21} parent=11 // pred_check
        %p135 = pneg %p89
      $region18: #{_phase_decoder_impl.21} parent=11 // pred_check_branch
        %137 = sbr.rel (%p135) target = $region20
      $region19: #{_phase_decoder_impl.21} parent=11 // pred_region
        _
      $region20: #{_phase_decoder_impl.21} parent=11 // pred_fallthru
        _
    $region12: #{_phase_decoder_impl.21} parent=5 // pred_fallthru
      _
    %p138 = scmp.lt.s32.totalorder %s9, 2
    // Predicated region
    $region21: #{_phase_decoder_impl.21} parent=5 // pred_check
      %p139 = pneg %p138
    $region22: #{_phase_decoder_impl.21} parent=5 // pred_check_branch
      %141 = sbr.rel (%p139) target = $region24
    $region23: #{_phase_decoder_impl.21} parent=5 // pred_region
      // Predicated region
      $region25: #{_phase_decoder_impl.21} parent=23 // pred_check
        %p142 = pneg %p41
      $region26: #{_phase_decoder_impl.21} parent=23 // pred_check_branch
        %144 = sbr.rel (%p142) target = $region28
      $region27: #{_phase_decoder_impl.21} parent=23 // pred_region
        %p145 = scmp.lt.s32.totalorder %s16, 1
        %s146 = scalar_select %p145, %s16, 1
        %s147 = smul.addr %s146, 6
        %s148 = smul.addr %s147, 8
        %s149 = scalar_lea.vmem %s0, %s148
      $region28: #{_phase_decoder_impl.21} parent=23 // pred_fallthru
        _
    $region24: #{_phase_decoder_impl.21} parent=5 // pred_fallthru
      _
    %p150 = scmp.le.s32.totalorder 1, %s9
    %p151 = scmp.lt.s32.totalorder %s9, 3
    %p152 = pnand %p150, %p151
    %p153 = pneg %p152
    // Predicated region
    $region29: #{_phase_decoder_impl.21} parent=5 // pred_check
      _
    $region30: #{_phase_decoder_impl.21} parent=5 // pred_check_branch
      %155 = sbr.rel (%p152) target = $region32
    $region31: #{_phase_decoder_impl.21} parent=5 // pred_region
      %s156 = ssub.s32 %s9, 1
      %p157 = scmp.lt.s32.totalorder %s18, 1
      %s158 = scalar_select %p157, %s18, 1
      %s159 = smul.addr %s158, 6
      %s160 = smul.addr %s159, 8
      %s161 = scalar_lea.vmem %s0, %s160
      %p162 = pneg %p47
      %p163 = pneg %p44
      %p164 = pneg %p68
      %p165 = pneg %p65
      %p166 = pneg %p89
      %p167 = pneg %p86
      %p168 = pneg %p117
      %p169 = pneg %p114
      %s170 = smul.u32 2, %s19
      %p171 = scmp.lt.s32.totalorder %s18, 1
      %s172 = scalar_select %p171, %s18, 1
      %p173 = scmp.lt.s32.totalorder %s170, 1
      %s174 = scalar_select %p173, %s170, 1
      %s175 = smul.addr %s172, 2
      %s176 = sadd.s32 %s174, %s175
      %s177 = smul.addr %s176, 2
      %s178 = scalar_lea.vmem %s3, %s177
      %p179 = scmp.lt.s32.totalorder %s18, 1
      %s180 = scalar_select %p179, %s18, 1
      %s181 = smul.addr %s180, 6
      %s182 = smul.addr %s181, 8
      %s183 = scalar_lea.vmem %s0, %s182
      %s184 = smul.u32 2, %s19
      %p185 = scmp.lt.s32.totalorder %s18, 1
      %s186 = scalar_select %p185, %s18, 1
      %p187 = scmp.lt.s32.totalorder %s184, 1
      %s188 = scalar_select %p187, %s184, 1
      %s189 = smul.addr %s186, 2
      %s190 = sadd.s32 %s188, %s189
      %s191 = smul.addr %s190, 2
      %s192 = scalar_lea.vmem %s3, %s191
      %s193 = smul.u32 2, %s19
      %s194 = smul.u32 %s19, 256
      %s195 = sshra.s32 %s194, 7
      %s196 = sand.u32 %s194, 127
      %s197 = smul.addr %s195, 8
      %s198 = scalar_lea.vmem %s183, %s197
      %v199 = vld [vmem:[%s198] sm:$0xff]
      %v200 = vld [vmem:[%s198 + $0x8] sm:$0xff]
      %v201 = vld [vmem:[%s198 + $0x10] sm:$0xff]
      %v202 = vld [vmem:[%s198 + $0x18] sm:$0xff]
      %v203 = vld [vmem:[%s198 + $0x20] sm:$0xff]
      %v204 = vld [vmem:[%s198 + $0x28] sm:$0xff]
      %v205 = vld [vmem:[%s1] sm:$0x3]
      %s206 = scalar_lea.vmem %s1, 2
      %v207 = vld [vmem:[%s206] sm:$0x3]
      %214 = vrot.lane.b32.xlu0 %v199, 127
      %v215 = vpop.permute.xlu0 %214
      %216 = vrot.lane.b32.xlu0 %v200, 127
      %v217 = vpop.permute.xlu0 %216
      %218 = vrot.lane.b32.xlu0 %v201, 127
      %v219 = vpop.permute.xlu0 %218
      %220 = vrot.lane.b32.xlu0 %v202, 127
      %v221 = vpop.permute.xlu0 %220
      %222 = vrot.lane.b32.xlu0 %v203, 127
      %v223 = vpop.permute.xlu0 %222
      %224 = vrot.lane.b32.xlu0 %v204, 127
      %v225 = vpop.permute.xlu0 %224
      %vm226 = vcmask 1039360
      %v227 = vsel %vm226, %v215, %v217
      %v228 = vsel %vm226, %v217, %v219
      %v229 = vsel %vm226, %v221, %v223
      %v230 = vsel %vm226, %v223, %v225
      %vm235 = vcmask 130048
      %v237 = vsel %vm235, %v207, 0
      %239 = vmatprep.subr.mxu0 %v228
      %240 = vmatpush1.msra.mxu0 %v227
      %241 = vmatprep.subr.mxu0 %v230
      %242 = vmatpush1.msra.mxu0 %v229
      %243 = vmatprep.subr.mxu0 0.0
      %244 = vmatpush1.msra.mxu0 0.0
      %245 = vmatprep.subr.mxu0 0.0
      %246 = vmatpush1.msra.mxu0 0.0
      %247 = vmatprep.subr.mxu0 0.0
      %248 = vmatpush1.msra.mxu0 0.0
      %249 = vmatprep.subr.mxu0 0.0
      %250 = vmatpush1.msra.mxu0 0.0
      %251 = vmatprep.subr.mxu0 0.0
      %252 = vmatpush1.msra.mxu0 0.0
      %253 = vmatprep.subr.mxu0 0.0
      %254 = vmatpush1.msra.mxu0 0.0
      %255 = vmatprep.subr.mxu0 0.0
      %256 = vmatpush1.msra.mxu0 0.0
      %257 = vmatprep.subr.mxu0 0.0
      %258 = vmatpush1.msra.mxu0 0.0
      %259 = vmatprep.subr.mxu0 0.0
      %260 = vmatpush1.msra.mxu0 0.0
      %261 = vmatprep.subr.mxu0 0.0
      %262 = vmatpush1.msra.mxu0 0.0
      %263 = vmatprep.subr.mxu0 0.0
      %264 = vmatpush1.msra.mxu0 0.0
      %265 = vmatprep.subr.mxu0 0.0
      %266 = vmatpush1.msra.mxu0 0.0
      %267 = vmatprep.subr.mxu0 0.0
      %268 = vmatpush1.msra.mxu0 0.0
      %269 = vmatprep.subr.mxu0 0.0
      %270 = vmatpush1.msra.mxu0 0.0
      %271 = vmatprep.subr.mxu0 0.0
      %272 = vmatpush1.msra.mxu0 0.0
      %273 = vmatprep.subr.mxu0 0.0
      %274 = vmatpush1.msra.mxu0 0.0
      %275 = vmatprep.subr.mxu0 0.0
      %276 = vmatpush1.msra.mxu0 0.0
      %277 = vmatprep.subr.mxu0 0.0
      %278 = vmatpush1.msra.mxu0 0.0
      %279 = vmatprep.subr.mxu0 0.0
      %280 = vmatpush1.msra.mxu0 0.0
      %281 = vmatprep.subr.mxu0 0.0
      %282 = vmatpush1.msra.mxu0 0.0
      %283 = vmatprep.subr.mxu0 0.0
      %284 = vmatpush1.msra.mxu0 0.0
      %285 = vmatprep.subr.mxu0 0.0
      %286 = vmatpush1.msra.mxu0 0.0
      %287 = vmatprep.subr.mxu0 0.0
      %288 = vmatpush1.msra.mxu0 0.0
      %289 = vmatprep.subr.mxu0 0.0
      %290 = vmatpush1.msra.mxu0 0.0
      %291 = vmatprep.subr.mxu0 0.0
      %292 = vmatpush1.msra.mxu0 0.0
      %293 = vmatprep.subr.mxu0 0.0
      %294 = vmatpush1.msra.mxu0 0.0
      %295 = vmatprep.subr.mxu0 0.0
      %296 = vmatpush1.msra.mxu0 0.0
      %297 = vmatprep.subr.mxu0 0.0
      %298 = vmatpush1.msra.mxu0 0.0
      %299 = vmatprep.subr.mxu0 0.0
      %300 = vmatpush1.msra.mxu0 0.0
      %301 = vmatprep.subr.mxu0 0.0
      %302 = vmatpush1.msra.mxu0 0.0
      %303 = vmatprep.mubr.f32.mxu0 0.0
      %304 = vmatmul.mubr.f32.gmra.mrb[0].mxu0 %v237
      %v305 = vpop.f32.mrb[0].mxu0
      %v306 = vadd.f32 0.0, %v305
      %v307 = vpop.f32.mrb[0].mxu0
      %v308 = vadd.f32 0.0, %v307
      %309 = vdwg.mxu0
      %v311 = vsel %vm235, %v205, 0
      %313 = vmatprep.subr.mxu0 %v200
      %314 = vmatpush1.msra.mxu0 %v199
      %315 = vmatprep.subr.mxu0 %v203
      %316 = vmatpush1.msra.mxu0 %v202
      %317 = vmatprep.subr.mxu0 0.0
      %318 = vmatpush1.msra.mxu0 0.0
      %319 = vmatprep.subr.mxu0 0.0
      %320 = vmatpush1.msra.mxu0 0.0
      %321 = vmatprep.subr.mxu0 0.0
      %322 = vmatpush1.msra.mxu0 0.0
      %323 = vmatprep.subr.mxu0 0.0
      %324 = vmatpush1.msra.mxu0 0.0
      %325 = vmatprep.subr.mxu0 0.0
      %326 = vmatpush1.msra.mxu0 0.0
      %327 = vmatprep.subr.mxu0 0.0
      %328 = vmatpush1.msra.mxu0 0.0
      %329 = vmatprep.subr.mxu0 0.0
      %330 = vmatpush1.msra.mxu0 0.0
      %331 = vmatprep.subr.mxu0 0.0
      %332 = vmatpush1.msra.mxu0 0.0
      %333 = vmatprep.subr.mxu0 0.0
      %334 = vmatpush1.msra.mxu0 0.0
      %335 = vmatprep.subr.mxu0 0.0
      %336 = vmatpush1.msra.mxu0 0.0
      %337 = vmatprep.subr.mxu0 0.0
      %338 = vmatpush1.msra.mxu0 0.0
      %339 = vmatprep.subr.mxu0 0.0
      %340 = vmatpush1.msra.mxu0 0.0
      %341 = vmatprep.subr.mxu0 0.0
      %342 = vmatpush1.msra.mxu0 0.0
      %343 = vmatprep.subr.mxu0 0.0
      %344 = vmatpush1.msra.mxu0 0.0
      %345 = vmatprep.subr.mxu0 0.0
      %346 = vmatpush1.msra.mxu0 0.0
      %347 = vmatprep.subr.mxu0 0.0
      %348 = vmatpush1.msra.mxu0 0.0
      %349 = vmatprep.subr.mxu0 0.0
      %350 = vmatpush1.msra.mxu0 0.0
      %351 = vmatprep.subr.mxu0 0.0
      %352 = vmatpush1.msra.mxu0 0.0
      %353 = vmatprep.subr.mxu0 0.0
      %354 = vmatpush1.msra.mxu0 0.0
      %355 = vmatprep.subr.mxu0 0.0
      %356 = vmatpush1.msra.mxu0 0.0
      %357 = vmatprep.subr.mxu0 0.0
      %358 = vmatpush1.msra.mxu0 0.0
      %359 = vmatprep.subr.mxu0 0.0
      %360 = vmatpush1.msra.mxu0 0.0
      %361 = vmatprep.subr.mxu0 0.0
      %362 = vmatpush1.msra.mxu0 0.0
      %363 = vmatprep.subr.mxu0 0.0
      %364 = vmatpush1.msra.mxu0 0.0
      %365 = vmatprep.subr.mxu0 0.0
      %366 = vmatpush1.msra.mxu0 0.0
      %367 = vmatprep.subr.mxu0 0.0
      %368 = vmatpush1.msra.mxu0 0.0
      %369 = vmatprep.subr.mxu0 0.0
      %370 = vmatpush1.msra.mxu0 0.0
      %371 = vmatprep.subr.mxu0 0.0
      %372 = vmatpush1.msra.mxu0 0.0
      %373 = vmatprep.subr.mxu0 0.0
      %374 = vmatpush1.msra.mxu0 0.0
      %375 = vmatprep.subr.mxu0 0.0
      %376 = vmatpush1.msra.mxu0 0.0
      %377 = vmatprep.mubr.f32.mxu0 0.0
      %378 = vmatmul.mubr.f32.gmra.mrb[0].mxu0 %v311
      %v379 = vpop.f32.mrb[0].mxu0
      %v380 = vadd.f32 %v306, %v379
      %v381 = vpop.f32.mrb[0].mxu0
      %v382 = vadd.f32 %v308, %v381
      %383 = vdwg.mxu0
      %v384 = vld [vmem:[%s2] sm:$0x3]
      %386 = vset.pattern.permute.xlu0 0
      %387 = vperm.xlu0 %386, %v384
      %v388 = vpop.permute.xlu0 %387
      %v390 = vadd.f32 %v380, %v388
      %v391 = vadd.f32 %v382, %v388
      %v394 = vcombine.low %v390, %v391
      %v396 = vunpack.c.l.s4 1983009808
      %v397 = vunpack.c.0.s8 %v396
      %v398 = vlaneseq
      %v399 = vshrl.u32 %v398, 7
      %v400 = vsub.s32 %v397, %v399
      %v401 = vrot.slane %v394, %v400
      %403 = vst [vmem:[%s192] sm:$0xf] %v401
      %s404 = smul.u32 2, %s19
      %p405 = scmp.lt.s32.totalorder %s18, 1
      %s406 = scalar_select %p405, %s18, 1
      %p407 = scmp.lt.s32.totalorder %s404, 1
      %s408 = scalar_select %p407, %s404, 1
      %s409 = smul.addr %s406, 2
      %s410 = sadd.s32 %s408, %s409
      %s411 = smul.addr %s410, 2
      %s412 = scalar_lea.vmem %s3, %s411
      // Predicated region
      $region33: #{_phase_decoder_impl.21} parent=31 // pred_check
        %p413 = pneg %p114
      $region34: #{_phase_decoder_impl.21} parent=31 // pred_check_branch
        %415 = sbr.rel (%p413) target = $region36
      $region35: #{_phase_decoder_impl.21} parent=31 // pred_region
        %s416 = smul.u32 2, %s19
      $region36: #{_phase_decoder_impl.21} parent=31 // pred_fallthru
        _
    $region32: #{_phase_decoder_impl.21} parent=5 // pred_fallthru
      _
    %p417 = scmp.le.s32.totalorder 2, %s9
    // Predicated region
    $region37: #{_phase_decoder_impl.21} parent=5 // pred_check
      %p418 = pneg %p417
    $region38: #{_phase_decoder_impl.21} parent=5 // pred_check_branch
      %420 = sbr.rel (%p418) target = $region40
    $region39: #{_phase_decoder_impl.21} parent=5 // pred_region
      %s421 = ssub.s32 %s9, 2
      // Predicated region
      $region41: #{_phase_decoder_impl.21} parent=39 // pred_check
        %p422 = pneg %p120
      $region42: #{_phase_decoder_impl.21} parent=39 // pred_check_branch
        %424 = sbr.rel (%p422) target = $region44
      $region43: #{_phase_decoder_impl.21} parent=39 // pred_region
        %s425 = smul.u32 2, %s21
        %p426 = scmp.lt.s32.totalorder %s20, 1
        %s427 = scalar_select %p426, %s20, 1
        %p428 = scmp.lt.s32.totalorder %s425, 1
        %s429 = scalar_select %p428, %s425, 1
        %s430 = smul.addr %s427, 2
        %s431 = sadd.s32 %s429, %s430
        %s432 = smul.addr %s431, 2
        %s433 = scalar_lea.vmem %s3, %s432
      $region44: #{_phase_decoder_impl.21} parent=39 // pred_fallthru
        _
    $region40: #{_phase_decoder_impl.21} parent=5 // pred_fallthru
      _
  $region6: #{_phase_decoder_impl.21} parent=0 // loop_footer
    %s13 = sadd.s32 1, %s9
  $region7: #{_phase_decoder_impl.21} parent=0 // loop_footer_branch
    %8 = sbr.rel target = $region3
  $region8: #{_phase_decoder_impl.21} parent=0 // loop_exit
    _

</llo_original>
